<compile_context>
chip_gen: v6e
topology: v6e:2x2x1
jax: 0.10.0
libtpu: 0.0.40
codegen_flags: <defaults>
</compile_context>

<pallas_src>
import math

import numpy as np
import jax
import jax.numpy as jnp
from jax.experimental import pallas as pl
from jax.experimental.pallas import tpu as pltpu

LANES = 128           # lane-padded channel width used inside the kernel
BN_EPS = 1e-5


# ---------------------------------------------------------------------------
# Deterministic synthetic parameters in PyTorch layout, then packing for TPU.
# ---------------------------------------------------------------------------
def init_torch_params(key, in_channels=3, out_dim_backbone=256):
    chans = [in_channels, 32, 64, 128]
    tp = {}
    for i in range(3):
        key, kw, kb, kg, kbt, km, kv = jax.random.split(key, 7)
        cin, cout = chans[i], chans[i + 1]
        fan_in = cin * 9
        tp[f"c{i + 1}"] = dict(
            w=jax.random.normal(kw, (cout, cin, 3, 3), jnp.float32)
            * math.sqrt(2.0 / fan_in),
            b=0.01 * jax.random.normal(kb, (cout,), jnp.float32),
            gamma=1.0 + 0.1 * jax.random.normal(kg, (cout,), jnp.float32),
            beta=0.1 * jax.random.normal(kbt, (cout,), jnp.float32),
            mean=0.1 * jax.random.normal(km, (cout,), jnp.float32),
            var=1.0 + 0.2 * jax.random.uniform(kv, (cout,), jnp.float32),
        )
    key, k1, k2 = jax.random.split(key, 3)
    tp["fc_w"] = jax.random.normal(k1, (out_dim_backbone, 128), jnp.float32) \
        * math.sqrt(1.0 / 128)
    tp["fc_b"] = 0.01 * jax.random.normal(k2, (out_dim_backbone,), jnp.float32)
    return tp


def _fold_bn(layer, cpad):
    """Fold conv bias + eval-mode BatchNorm into per-channel scale/shift."""
    s = layer["gamma"] / jnp.sqrt(layer["var"] + BN_EPS)
    t = (layer["b"] - layer["mean"]) * s + layer["beta"]
    cout = s.shape[0]
    s = jnp.pad(s, (0, cpad - cout)).reshape(1, cpad)
    t = jnp.pad(t, (0, cpad - cout)).reshape(1, cpad)
    return s, t


def pack_params(tp, cpad=LANES):
    # layer 1: exact im2col weight (K = 9*Cin, padded to a multiple of 8);
    # Cout padded to 128 so the whole pipeline stays lane-dense.
    w1t = tp["c1"]["w"]
    cout1, cin1 = w1t.shape[0], w1t.shape[1]
    k1 = 9 * cin1
    k1p = ((k1 + 7) // 8) * 8
    w1 = jnp.transpose(w1t, (2, 3, 1, 0)).reshape(k1, cout1)   # k = (dy*3+dx)*Cin + c
    w1 = jnp.pad(w1, ((0, k1p - k1), (0, cpad - cout1)))
    s1, t1 = _fold_bn(tp["c1"], cpad)

    def pack_padded(wt):
        cout, cin = wt.shape[0], wt.shape[1]
        w = jnp.transpose(wt, (2, 3, 1, 0))                    # (3,3,Cin,Cout)
        w = jnp.pad(w, ((0, 0), (0, 0), (0, cpad - cin), (0, cpad - cout)))
        return w.reshape(9 * cpad, cpad)                       # k = (dy*3+dx)*128 + c

    w2 = pack_padded(tp["c2"]["w"]); s2, t2 = _fold_bn(tp["c2"], cpad)
    w3 = pack_padded(tp["c3"]["w"]); s3, t3 = _fold_bn(tp["c3"], cpad)
    wf = jnp.transpose(tp["fc_w"])                             # (128, out_dim)
    bf = tp["fc_b"].reshape(1, -1)
    return dict(w1=w1, s1=s1, t1=t1, w2=w2, s2=s2, t2=t2,
                w3=w3, s3=s3, t3=t3, wf=wf, bf=bf)


def _placement_matrix(s):
    """((s+2)^2, s^2) 0/1 matrix scattering an s*s row-major grid into the
    interior of an (s+2)*(s+2) zero-padded row-major grid (padding=1)."""
    sp = s + 2
    m = np.zeros((sp * sp, s * s), np.float32)
    for y in range(s):
        for x in range(s):
            m[(y + 1) * sp + (x + 1), y * s + x] = 1.0
    return jnp.asarray(m)


def _im2col_input(x_nhwc, k_pad):
    """3x3/pad-1 im2col of the (tiny) network input, built once at the XLA
    boundary. Returns (N, H*W, k_pad) with column k = (dy*3+dx)*Cin + c."""
    n, h, w, c = x_nhwc.shape
    xp = jnp.pad(x_nhwc, ((0, 0), (1, 1), (1, 1), (0, 0)))
    taps = [xp[:, dy:dy + h, dx:dx + w, :] for dy in range(3) for dx in range(3)]
    col = jnp.concatenate(taps, axis=-1).reshape(n, h * w, 9 * c)
    return jnp.pad(col, ((0, 0), (0, 0), (0, k_pad - 9 * c)))


# ---------------------------------------------------------------------------
# Fused forward pass (one pallas_call for the whole backbone).
# ---------------------------------------------------------------------------
def conv_backbone_forward(x_nchw, packed):
    n, _, h, w = x_nchw.shape
    assert h % 4 == 0 and w % 4 == 0
    cp = packed["w2"].shape[1]              # 128
    k1p = packed["w1"].shape[0]
    out_dim = packed["bf"].shape[1]
    h2, w2 = h // 2, w // 2                 # after pool 1
    h3, w3 = h // 4, w // 4                 # after pool 2

    x = jnp.transpose(x_nchw, (0, 2, 3, 1)).astype(jnp.float32)   # NCHW -> NHWC
    col1 = _im2col_input(x, k1p)                                  # (N, H*W, k1p)
    p2m = _placement_matrix(h2)                                   # (100, 64) for 16x16 input
    p3m = _placement_matrix(h3)                                   # (36, 16)

    def pool2x2(v, hh, ww):
        # v: (hh*ww, cp) row-major -> (hh/2 * ww/2, cp); pairwise maxima on
        # statically sliced views (lane dim untouched).
        t = v.reshape(hh // 2, 2, ww // 2, 2, cp)
        t = jnp.maximum(t[:, 0], t[:, 1])
        t = jnp.maximum(t[:, :, 0], t[:, :, 1])
        return t.reshape((hh // 2) * (ww // 2), cp)

    def im2col(v, hp, wp):
        # v: (hp*wp, cp) zero-padded activation -> ((hp-2)*(wp-2), 9*cp)
        ho, wo = hp - 2, wp - 2
        t = v.reshape(hp, wp, cp)
        col = jnp.concatenate(
            [t[dy:dy + ho, dx:dx + wo, :] for dy in range(3) for dx in range(3)],
            axis=-1)                                   # lane-aligned (128-wide) concat
        return col.reshape(ho * wo, 9 * cp)

    def kernel(col1_ref, w1_ref, s1_ref, t1_ref,
               p2_ref, w2_ref, s2_ref, t2_ref,
               p3_ref, w3_ref, s3_ref, t3_ref,
               wf_ref, bf_ref, out_ref):
        f32 = jnp.float32
        # Block 1: Conv(Cin->32) + BN + ReLU + MaxPool2  (single MXU matmul)
        a = jnp.dot(col1_ref[...], w1_ref[...], preferred_element_type=f32)
        a = jnp.maximum(a * s1_ref[...] + t1_ref[...], 0.0)
        a = pool2x2(a, h, w)                                           # (h2*w2, 128)
        # Block 2: in-kernel zero-pad (placement matmul) + im2col + Conv(32->64)
        a = jnp.dot(p2_ref[...], a, preferred_element_type=f32)        # ((h2+2)^2, 128)
        a = jnp.dot(im2col(a, h2 + 2, w2 + 2), w2_ref[...],
                    preferred_element_type=f32)                        # (h2*w2, 128)
        a = jnp.maximum(a * s2_ref[...] + t2_ref[...], 0.0)
        a = pool2x2(a, h2, w2)                                         # (h3*w3, 128)
        # Block 3: zero-pad + im2col + Conv(64->128) + BN + ReLU
        a = jnp.dot(p3_ref[...], a, preferred_element_type=f32)        # ((h3+2)^2, 128)
        a = jnp.dot(im2col(a, h3 + 2, w3 + 2), w3_ref[...],
                    preferred_element_type=f32)                        # (h3*w3, 128)
        a = jnp.maximum(a * s3_ref[...] + t3_ref[...], 0.0)
        # AdaptiveAvgPool2d((1,1)) + flatten + Linear(128 -> out_dim)
        g = jnp.mean(a, axis=0, keepdims=True)                         # (1, 128)
        out_ref[...] = (jnp.dot(g, wf_ref[...], preferred_element_type=f32)
                        + bf_ref[...])

    def full(shape):
        return pl.BlockSpec(shape, lambda i: (0,) * len(shape))

    out = pl.pallas_call(
        kernel,
        out_shape=jax.ShapeDtypeStruct((n, 1, out_dim), jnp.float32),
        grid=(n,),
        in_specs=[
            pl.BlockSpec((None, h * w, k1p), lambda i: (i, 0, 0)),     # per-image im2col
            full(packed["w1"].shape), full((1, cp)), full((1, cp)),
            full(p2m.shape), full(packed["w2"].shape), full((1, cp)), full((1, cp)),
            full(p3m.shape), full(packed["w3"].shape), full((1, cp)), full((1, cp)),
            full(packed["wf"].shape), full((1, out_dim)),
        ],
        out_specs=pl.BlockSpec((None, 1, out_dim), lambda i: (i, 0, 0)),
        compiler_params=pltpu.CompilerParams(
            dimension_semantics=("parallel",)),   # batch shards over v7x's 2 TCs
    )(col1, packed["w1"], packed["s1"], packed["t1"],
      p2m, packed["w2"], packed["s2"], packed["t2"],
      p3m, packed["w3"], packed["s3"], packed["t3"],
      packed["wf"], packed["bf"])
    return out.reshape(n, out_dim)


# ---------------------------------------------------------------------------
# Pure-JAX (XLA) reference of the PyTorch module, for a correctness check.
# ---------------------------------------------------------------------------
def reference_forward(x_nchw, tp):
    y = jnp.transpose(x_nchw, (0, 2, 3, 1)).astype(jnp.float32)

    def conv_bn_relu(v, layer):
        wk = jnp.transpose(layer["w"], (2, 3, 1, 0))   # OIHW -> HWIO
        v = jax.lax.conv_general_dilated(
            v, wk, window_strides=(1, 1), padding="SAME",
            dimension_numbers=("NHWC", "HWIO", "NHWC"),
            precision=jax.lax.Precision.HIGHEST) + layer["b"]
        v = (v - layer["mean"]) / jnp.sqrt(layer["var"] + BN_EPS) \
            * layer["gamma"] + layer["beta"]
        return jnp.maximum(v, 0.0)

    def maxpool2(v):
        return jax.lax.reduce_window(
            v, jnp.array(-jnp.inf, v.dtype), jax.lax.max,
            (1, 2, 2, 1), (1, 2, 2, 1), "VALID")

    y = maxpool2(conv_bn_relu(y, tp["c1"]))
    y = maxpool2(conv_bn_relu(y, tp["c2"]))
    y = conv_bn_relu(y, tp["c3"])
    y = jnp.mean(y, axis=(1, 2))                       # AdaptiveAvgPool2d((1,1)) + flatten
    return y @ tp["fc_w"].T + tp["fc_b"]


if __name__ == "__main__":
    key = jax.random.PRNGKey(0)
    kx, kp = jax.random.split(key)

    # Small input consistent with the module: NCHW, 3 channels, 16x16 images.
    x = jax.random.normal(kx, (2, 3, 16, 16), jnp.float32)
    tp = init_torch_params(kp, in_channels=3, out_dim_backbone=256)
    packed = pack_params(tp)
    # TODO(synk): self.dropout is never applied in the module's forward(), and
    # BatchNorm is implemented in eval mode (running stats folded); training-
    # mode batch statistics are not implemented.

    fwd = jax.jit(conv_backbone_forward)
    out = jax.block_until_ready(fwd(x, packed))

    assert out.shape == (2, 256), out.shape
    assert bool(jnp.all(jnp.isfinite(out)))

    # Cross-check the fused kernel against the XLA reference of the module.
    ref = jax.block_until_ready(jax.jit(reference_forward)(x, tp))
    np.testing.assert_allclose(np.asarray(out), np.asarray(ref),
                               rtol=5e-2, atol=5e-2)

    print("KERNEL_OK")
</pallas_src>

<mosaic_0001>
module attributes {stable_mosaic.version = 11 : i64} {
  func.func @kernel(%arg0: i32, %arg1: memref<1x256x32xf32, #tpu.memory_space<vmem>>, %arg2: memref<32x128xf32, #tpu.memory_space<vmem>>, %arg3: memref<1x128xf32, #tpu.memory_space<vmem>>, %arg4: memref<1x128xf32, #tpu.memory_space<vmem>>, %arg5: memref<100x64xf32, #tpu.memory_space<vmem>>, %arg6: memref<1152x128xf32, #tpu.memory_space<vmem>>, %arg7: memref<1x128xf32, #tpu.memory_space<vmem>>, %arg8: memref<1x128xf32, #tpu.memory_space<vmem>>, %arg9: memref<36x16xf32, #tpu.memory_space<vmem>>, %arg10: memref<1152x128xf32, #tpu.memory_space<vmem>>, %arg11: memref<1x128xf32, #tpu.memory_space<vmem>>, %arg12: memref<1x128xf32, #tpu.memory_space<vmem>>, %arg13: memref<128x256xf32, #tpu.memory_space<vmem>>, %arg14: memref<1x256xf32, #tpu.memory_space<vmem>>, %arg15: memref<1x1x256xf32, #tpu.memory_space<vmem>>) attributes {dimension_semantics = [#tpu.dimension_semantics<parallel>], iteration_bounds = array<i64: 2>, scalar_prefetch = 0 : i64, scratch_operands = 0 : i64, tpu.core_type = #tpu.core_type<tc>, window_params = [{transform_indices = @transform_0, window_bounds = array<i64: 1, 256, 32>}, {pipeline_mode = #tpu.pipeline_mode<synchronous>, transform_indices = @transform_1, window_bounds = array<i64: 32, 128>}, {pipeline_mode = #tpu.pipeline_mode<synchronous>, transform_indices = @transform_2, window_bounds = array<i64: 1, 128>}, {pipeline_mode = #tpu.pipeline_mode<synchronous>, transform_indices = @transform_3, window_bounds = array<i64: 1, 128>}, {pipeline_mode = #tpu.pipeline_mode<synchronous>, transform_indices = @transform_4, window_bounds = array<i64: 100, 64>}, {pipeline_mode = #tpu.pipeline_mode<synchronous>, transform_indices = @transform_5, window_bounds = array<i64: 1152, 128>}, {pipeline_mode = #tpu.pipeline_mode<synchronous>, transform_indices = @transform_6, window_bounds = array<i64: 1, 128>}, {pipeline_mode = #tpu.pipeline_mode<synchronous>, transform_indices = @transform_7, window_bounds = array<i64: 1, 128>}, {pipeline_mode = #tpu.pipeline_mode<synchronous>, transform_indices = @transform_8, window_bounds = array<i64: 36, 16>}, {pipeline_mode = #tpu.pipeline_mode<synchronous>, transform_indices = @transform_9, window_bounds = array<i64: 1152, 128>}, {pipeline_mode = #tpu.pipeline_mode<synchronous>, transform_indices = @transform_10, window_bounds = array<i64: 1, 128>}, {pipeline_mode = #tpu.pipeline_mode<synchronous>, transform_indices = @transform_11, window_bounds = array<i64: 1, 128>}, {pipeline_mode = #tpu.pipeline_mode<synchronous>, transform_indices = @transform_12, window_bounds = array<i64: 128, 256>}, {pipeline_mode = #tpu.pipeline_mode<synchronous>, transform_indices = @transform_13, window_bounds = array<i64: 1, 256>}, {transform_indices = @transform_14, window_bounds = array<i64: 1, 1, 256>}]} {
    %c0 = arith.constant 0 : index
    %c0_0 = arith.constant 0 : index
    %c0_1 = arith.constant 0 : index
    %0 = vector.load %arg1[%c0, %c0_0, %c0_1] : memref<1x256x32xf32, #tpu.memory_space<vmem>>, vector<1x256x32xf32>
    %1 = vector.shape_cast %0 : vector<1x256x32xf32> to vector<256x32xf32>
    %c0_2 = arith.constant 0 : index
    %c0_3 = arith.constant 0 : index
    %2 = vector.load %arg2[%c0_2, %c0_3] : memref<32x128xf32, #tpu.memory_space<vmem>>, vector<32x128xf32>
    %cst = arith.constant dense<0.000000e+00> : vector<256x128xf32>
    %3 = tpu.matmul %1, %2, %cst {dimension_numbers = #tpu.dot_dimension_numbers<[1], [0], [0], [1], [0, 0, 1, 1], [], []>} : vector<256x32xf32>, vector<32x128xf32>, vector<256x128xf32> -> vector<256x128xf32>
    %c0_4 = arith.constant 0 : index
    %c0_5 = arith.constant 0 : index
    %4 = vector.load %arg3[%c0_4, %c0_5] : memref<1x128xf32, #tpu.memory_space<vmem>>, vector<1x128xf32>
    %5 = vector.broadcast %4 : vector<1x128xf32> to vector<256x128xf32>
    %6 = arith.mulf %3, %5 : vector<256x128xf32>
    %c0_6 = arith.constant 0 : index
    %c0_7 = arith.constant 0 : index
    %7 = vector.load %arg4[%c0_6, %c0_7] : memref<1x128xf32, #tpu.memory_space<vmem>>, vector<1x128xf32>
    %8 = vector.broadcast %7 : vector<1x128xf32> to vector<256x128xf32>
    %9 = arith.addf %6, %8 : vector<256x128xf32>
    %cst_8 = arith.constant 0.000000e+00 : f32
    %10 = vector.broadcast %cst_8 : f32 to vector<256x128xf32>
    %11 = arith.maximumf %9, %10 : vector<256x128xf32>
    %12 = vector.shape_cast %11 : vector<256x128xf32> to vector<8x2x8x2x128xf32>
    %13 = vector.extract_strided_slice %12 {offsets = [0, 0, 0, 0, 0], sizes = [8, 1, 8, 2, 128], strides = [1, 1, 1, 1, 1]} : vector<8x2x8x2x128xf32> to vector<8x1x8x2x128xf32>
    %14 = vector.shape_cast %13 : vector<8x1x8x2x128xf32> to vector<8x8x2x128xf32>
    %15 = vector.extract_strided_slice %12 {offsets = [0, 1, 0, 0, 0], sizes = [8, 1, 8, 2, 128], strides = [1, 1, 1, 1, 1]} : vector<8x2x8x2x128xf32> to vector<8x1x8x2x128xf32>
    %16 = vector.shape_cast %15 : vector<8x1x8x2x128xf32> to vector<8x8x2x128xf32>
    %17 = arith.maximumf %14, %16 : vector<8x8x2x128xf32>
    %18 = vector.extract_strided_slice %17 {offsets = [0, 0, 0, 0], sizes = [8, 8, 1, 128], strides = [1, 1, 1, 1]} : vector<8x8x2x128xf32> to vector<8x8x1x128xf32>
    %19 = vector.shape_cast %18 : vector<8x8x1x128xf32> to vector<8x8x128xf32>
    %20 = vector.extract_strided_slice %17 {offsets = [0, 0, 1, 0], sizes = [8, 8, 1, 128], strides = [1, 1, 1, 1]} : vector<8x8x2x128xf32> to vector<8x8x1x128xf32>
    %21 = vector.shape_cast %20 : vector<8x8x1x128xf32> to vector<8x8x128xf32>
    %22 = arith.maximumf %19, %21 : vector<8x8x128xf32>
    %23 = vector.shape_cast %22 : vector<8x8x128xf32> to vector<64x128xf32>
    %c0_9 = arith.constant 0 : index
    %c0_10 = arith.constant 0 : index
    %24 = vector.load %arg5[%c0_9, %c0_10] : memref<100x64xf32, #tpu.memory_space<vmem>>, vector<100x64xf32>
    %cst_11 = arith.constant dense<0.000000e+00> : vector<100x128xf32>
    %25 = tpu.matmul %24, %23, %cst_11 {dimension_numbers = #tpu.dot_dimension_numbers<[1], [0], [0], [1], [0, 0, 1, 1], [], []>} : vector<100x64xf32>, vector<64x128xf32>, vector<100x128xf32> -> vector<100x128xf32>
    %26 = vector.shape_cast %25 : vector<100x128xf32> to vector<10x10x128xf32>
    %27 = vector.extract_strided_slice %26 {offsets = [0, 0, 0], sizes = [8, 8, 128], strides = [1, 1, 1]} : vector<10x10x128xf32> to vector<8x8x128xf32>
    %28 = vector.extract_strided_slice %26 {offsets = [0, 1, 0], sizes = [8, 8, 128], strides = [1, 1, 1]} : vector<10x10x128xf32> to vector<8x8x128xf32>
    %29 = vector.extract_strided_slice %26 {offsets = [0, 2, 0], sizes = [8, 8, 128], strides = [1, 1, 1]} : vector<10x10x128xf32> to vector<8x8x128xf32>
    %30 = vector.extract_strided_slice %26 {offsets = [1, 0, 0], sizes = [8, 8, 128], strides = [1, 1, 1]} : vector<10x10x128xf32> to vector<8x8x128xf32>
    %31 = vector.extract_strided_slice %26 {offsets = [1, 1, 0], sizes = [8, 8, 128], strides = [1, 1, 1]} : vector<10x10x128xf32> to vector<8x8x128xf32>
    %32 = vector.extract_strided_slice %26 {offsets = [1, 2, 0], sizes = [8, 8, 128], strides = [1, 1, 1]} : vector<10x10x128xf32> to vector<8x8x128xf32>
    %33 = vector.extract_strided_slice %26 {offsets = [2, 0, 0], sizes = [8, 8, 128], strides = [1, 1, 1]} : vector<10x10x128xf32> to vector<8x8x128xf32>
    %34 = vector.extract_strided_slice %26 {offsets = [2, 1, 0], sizes = [8, 8, 128], strides = [1, 1, 1]} : vector<10x10x128xf32> to vector<8x8x128xf32>
    %35 = vector.extract_strided_slice %26 {offsets = [2, 2, 0], sizes = [8, 8, 128], strides = [1, 1, 1]} : vector<10x10x128xf32> to vector<8x8x128xf32>
    %36 = tpu.concatenate %27, %28, %29, %30, %31, %32, %33, %34, %35 in 2 : vector<8x8x128xf32>, vector<8x8x128xf32>, vector<8x8x128xf32>, vector<8x8x128xf32>, vector<8x8x128xf32>, vector<8x8x128xf32>, vector<8x8x128xf32>, vector<8x8x128xf32>, vector<8x8x128xf32> -> vector<8x8x1152xf32>
    %37 = vector.shape_cast %36 : vector<8x8x1152xf32> to vector<64x1152xf32>
    %c0_12 = arith.constant 0 : index
    %c0_13 = arith.constant 0 : index
    %38 = vector.load %arg6[%c0_12, %c0_13] : memref<1152x128xf32, #tpu.memory_space<vmem>>, vector<1152x128xf32>
    %cst_14 = arith.constant dense<0.000000e+00> : vector<64x128xf32>
    %39 = tpu.matmul %37, %38, %cst_14 {dimension_numbers = #tpu.dot_dimension_numbers<[1], [0], [0], [1], [0, 0, 1, 1], [], []>} : vector<64x1152xf32>, vector<1152x128xf32>, vector<64x128xf32> -> vector<64x128xf32>
    %c0_15 = arith.constant 0 : index
    %c0_16 = arith.constant 0 : index
    %40 = vector.load %arg7[%c0_15, %c0_16] : memref<1x128xf32, #tpu.memory_space<vmem>>, vector<1x128xf32>
    %41 = vector.broadcast %40 : vector<1x128xf32> to vector<64x128xf32>
    %42 = arith.mulf %39, %41 : vector<64x128xf32>
    %c0_17 = arith.constant 0 : index
    %c0_18 = arith.constant 0 : index
    %43 = vector.load %arg8[%c0_17, %c0_18] : memref<1x128xf32, #tpu.memory_space<vmem>>, vector<1x128xf32>
    %44 = vector.broadcast %43 : vector<1x128xf32> to vector<64x128xf32>
    %45 = arith.addf %42, %44 : vector<64x128xf32>
    %cst_19 = arith.constant 0.000000e+00 : f32
    %46 = vector.broadcast %cst_19 : f32 to vector<64x128xf32>
    %47 = arith.maximumf %45, %46 : vector<64x128xf32>
    %48 = vector.shape_cast %47 : vector<64x128xf32> to vector<4x2x4x2x128xf32>
    %49 = vector.extract_strided_slice %48 {offsets = [0, 0, 0, 0, 0], sizes = [4, 1, 4, 2, 128], strides = [1, 1, 1, 1, 1]} : vector<4x2x4x2x128xf32> to vector<4x1x4x2x128xf32>
    %50 = vector.shape_cast %49 : vector<4x1x4x2x128xf32> to vector<4x4x2x128xf32>
    %51 = vector.extract_strided_slice %48 {offsets = [0, 1, 0, 0, 0], sizes = [4, 1, 4, 2, 128], strides = [1, 1, 1, 1, 1]} : vector<4x2x4x2x128xf32> to vector<4x1x4x2x128xf32>
    %52 = vector.shape_cast %51 : vector<4x1x4x2x128xf32> to vector<4x4x2x128xf32>
    %53 = arith.maximumf %50, %52 : vector<4x4x2x128xf32>
    %54 = vector.extract_strided_slice %53 {offsets = [0, 0, 0, 0], sizes = [4, 4, 1, 128], strides = [1, 1, 1, 1]} : vector<4x4x2x128xf32> to vector<4x4x1x128xf32>
    %55 = vector.shape_cast %54 : vector<4x4x1x128xf32> to vector<4x4x128xf32>
    %56 = vector.extract_strided_slice %53 {offsets = [0, 0, 1, 0], sizes = [4, 4, 1, 128], strides = [1, 1, 1, 1]} : vector<4x4x2x128xf32> to vector<4x4x1x128xf32>
    %57 = vector.shape_cast %56 : vector<4x4x1x128xf32> to vector<4x4x128xf32>
    %58 = arith.maximumf %55, %57 : vector<4x4x128xf32>
    %59 = vector.shape_cast %58 : vector<4x4x128xf32> to vector<16x128xf32>
    %c0_20 = arith.constant 0 : index
    %c0_21 = arith.constant 0 : index
    %60 = vector.load %arg9[%c0_20, %c0_21] : memref<36x16xf32, #tpu.memory_space<vmem>>, vector<36x16xf32>
    %cst_22 = arith.constant dense<0.000000e+00> : vector<36x128xf32>
    %61 = tpu.matmul %60, %59, %cst_22 {dimension_numbers = #tpu.dot_dimension_numbers<[1], [0], [0], [1], [0, 0, 1, 1], [], []>} : vector<36x16xf32>, vector<16x128xf32>, vector<36x128xf32> -> vector<36x128xf32>
    %62 = vector.shape_cast %61 : vector<36x128xf32> to vector<6x6x128xf32>
    %63 = vector.extract_strided_slice %62 {offsets = [0, 0, 0], sizes = [4, 4, 128], strides = [1, 1, 1]} : vector<6x6x128xf32> to vector<4x4x128xf32>
    %64 = vector.extract_strided_slice %62 {offsets = [0, 1, 0], sizes = [4, 4, 128], strides = [1, 1, 1]} : vector<6x6x128xf32> to vector<4x4x128xf32>
    %65 = vector.extract_strided_slice %62 {offsets = [0, 2, 0], sizes = [4, 4, 128], strides = [1, 1, 1]} : vector<6x6x128xf32> to vector<4x4x128xf32>
    %66 = vector.extract_strided_slice %62 {offsets = [1, 0, 0], sizes = [4, 4, 128], strides = [1, 1, 1]} : vector<6x6x128xf32> to vector<4x4x128xf32>
    %67 = vector.extract_strided_slice %62 {offsets = [1, 1, 0], sizes = [4, 4, 128], strides = [1, 1, 1]} : vector<6x6x128xf32> to vector<4x4x128xf32>
    %68 = vector.extract_strided_slice %62 {offsets = [1, 2, 0], sizes = [4, 4, 128], strides = [1, 1, 1]} : vector<6x6x128xf32> to vector<4x4x128xf32>
    %69 = vector.extract_strided_slice %62 {offsets = [2, 0, 0], sizes = [4, 4, 128], strides = [1, 1, 1]} : vector<6x6x128xf32> to vector<4x4x128xf32>
    %70 = vector.extract_strided_slice %62 {offsets = [2, 1, 0], sizes = [4, 4, 128], strides = [1, 1, 1]} : vector<6x6x128xf32> to vector<4x4x128xf32>
    %71 = vector.extract_strided_slice %62 {offsets = [2, 2, 0], sizes = [4, 4, 128], strides = [1, 1, 1]} : vector<6x6x128xf32> to vector<4x4x128xf32>
    %72 = tpu.concatenate %63, %64, %65, %66, %67, %68, %69, %70, %71 in 2 : vector<4x4x128xf32>, vector<4x4x128xf32>, vector<4x4x128xf32>, vector<4x4x128xf32>, vector<4x4x128xf32>, vector<4x4x128xf32>, vector<4x4x128xf32>, vector<4x4x128xf32>, vector<4x4x128xf32> -> vector<4x4x1152xf32>
    %73 = vector.shape_cast %72 : vector<4x4x1152xf32> to vector<16x1152xf32>
    %c0_23 = arith.constant 0 : index
    %c0_24 = arith.constant 0 : index
    %74 = vector.load %arg10[%c0_23, %c0_24] : memref<1152x128xf32, #tpu.memory_space<vmem>>, vector<1152x128xf32>
    %cst_25 = arith.constant dense<0.000000e+00> : vector<16x128xf32>
    %75 = tpu.matmul %73, %74, %cst_25 {dimension_numbers = #tpu.dot_dimension_numbers<[1], [0], [0], [1], [0, 0, 1, 1], [], []>} : vector<16x1152xf32>, vector<1152x128xf32>, vector<16x128xf32> -> vector<16x128xf32>
    %c0_26 = arith.constant 0 : index
    %c0_27 = arith.constant 0 : index
    %76 = vector.load %arg11[%c0_26, %c0_27] : memref<1x128xf32, #tpu.memory_space<vmem>>, vector<1x128xf32>
    %77 = vector.broadcast %76 : vector<1x128xf32> to vector<16x128xf32>
    %78 = arith.mulf %75, %77 : vector<16x128xf32>
    %c0_28 = arith.constant 0 : index
    %c0_29 = arith.constant 0 : index
    %79 = vector.load %arg12[%c0_28, %c0_29] : memref<1x128xf32, #tpu.memory_space<vmem>>, vector<1x128xf32>
    %80 = vector.broadcast %79 : vector<1x128xf32> to vector<16x128xf32>
    %81 = arith.addf %78, %80 : vector<16x128xf32>
    %cst_30 = arith.constant 0.000000e+00 : f32
    %82 = vector.broadcast %cst_30 : f32 to vector<16x128xf32>
    %83 = arith.maximumf %81, %82 : vector<16x128xf32>
    %cst_31 = arith.constant dense<0.000000e+00> : vector<128xf32>
    %84 = vector.multi_reduction <add>, %83, %cst_31 [0] : vector<16x128xf32> to vector<128xf32>
    %85 = vector.shape_cast %84 : vector<128xf32> to vector<1x128xf32>
    %cst_32 = arith.constant 1.600000e+01 : f32
    %86 = vector.broadcast %cst_32 : f32 to vector<1x128xf32>
    %87 = arith.divf %85, %86 : vector<1x128xf32>
    %c0_33 = arith.constant 0 : index
    %c0_34 = arith.constant 0 : index
    %88 = vector.load %arg13[%c0_33, %c0_34] : memref<128x256xf32, #tpu.memory_space<vmem>>, vector<128x256xf32>
    %cst_35 = arith.constant dense<0.000000e+00> : vector<1x256xf32>
    %89 = tpu.matmul %87, %88, %cst_35 {dimension_numbers = #tpu.dot_dimension_numbers<[1], [0], [0], [1], [0, 0, 1, 1], [], []>} : vector<1x128xf32>, vector<128x256xf32>, vector<1x256xf32> -> vector<1x256xf32>
    %c0_36 = arith.constant 0 : index
    %c0_37 = arith.constant 0 : index
    %90 = vector.load %arg14[%c0_36, %c0_37] : memref<1x256xf32, #tpu.memory_space<vmem>>, vector<1x256xf32>
    %91 = arith.addf %89, %90 : vector<1x256xf32>
    %c0_38 = arith.constant 0 : index
    %c0_39 = arith.constant 0 : index
    %c0_40 = arith.constant 0 : index
    %92 = vector.load %arg15[%c0_38, %c0_39, %c0_40] : memref<1x1x256xf32, #tpu.memory_space<vmem>>, vector<1x1x256xf32>
    %93 = vector.shape_cast %92 : vector<1x1x256xf32> to vector<1x256xf32>
    %94 = vector.shape_cast %91 : vector<1x256xf32> to vector<1x1x256xf32>
    tpu.vector_store %arg15[%c0_38, %c0_39, %c0_40], %94 {strides = array<i32>} : memref<1x1x256xf32, #tpu.memory_space<vmem>>, vector<1x1x256xf32>,
    return
  }
  func.func @transform_0(%arg0: i32) -> (i32, i32, i32) {
    %c0_i32 = arith.constant 0 : i32
    %c0_i32_0 = arith.constant 0 : i32
    %c0_i32_1 = arith.constant 0 : i32
    return %arg0, %c0_i32, %c0_i32_0 : i32, i32, i32
  }
  func.func @transform_1(%arg0: i32) -> (i32, i32) {
    %c0_i32 = arith.constant 0 : i32
    %c0_i32_0 = arith.constant 0 : i32
    %c0_i32_1 = arith.constant 0 : i32
    return %c0_i32, %c0_i32_0 : i32, i32
  }
  func.func @transform_2(%arg0: i32) -> (i32, i32) {
    %c0_i32 = arith.constant 0 : i32
    %c0_i32_0 = arith.constant 0 : i32
    %c0_i32_1 = arith.constant 0 : i32
    return %c0_i32, %c0_i32_0 : i32, i32
  }
  func.func @transform_3(%arg0: i32) -> (i32, i32) {
    %c0_i32 = arith.constant 0 : i32
    %c0_i32_0 = arith.constant 0 : i32
    %c0_i32_1 = arith.constant 0 : i32
    return %c0_i32, %c0_i32_0 : i32, i32
  }
  func.func @transform_4(%arg0: i32) -> (i32, i32) {
    %c0_i32 = arith.constant 0 : i32
    %c0_i32_0 = arith.constant 0 : i32
    %c0_i32_1 = arith.constant 0 : i32
    return %c0_i32, %c0_i32_0 : i32, i32
  }
  func.func @transform_5(%arg0: i32) -> (i32, i32) {
    %c0_i32 = arith.constant 0 : i32
    %c0_i32_0 = arith.constant 0 : i32
    %c0_i32_1 = arith.constant 0 : i32
    return %c0_i32, %c0_i32_0 : i32, i32
  }
  func.func @transform_6(%arg0: i32) -> (i32, i32) {
    %c0_i32 = arith.constant 0 : i32
    %c0_i32_0 = arith.constant 0 : i32
    %c0_i32_1 = arith.constant 0 : i32
    return %c0_i32, %c0_i32_0 : i32, i32
  }
  func.func @transform_7(%arg0: i32) -> (i32, i32) {
    %c0_i32 = arith.constant 0 : i32
    %c0_i32_0 = arith.constant 0 : i32
    %c0_i32_1 = arith.constant 0 : i32
    return %c0_i32, %c0_i32_0 : i32, i32
  }
  func.func @transform_8(%arg0: i32) -> (i32, i32) {
    %c0_i32 = arith.constant 0 : i32
    %c0_i32_0 = arith.constant 0 : i32
    %c0_i32_1 = arith.constant 0 : i32
    return %c0_i32, %c0_i32_0 : i32, i32
  }
  func.func @transform_9(%arg0: i32) -> (i32, i32) {
    %c0_i32 = arith.constant 0 : i32
    %c0_i32_0 = arith.constant 0 : i32
    %c0_i32_1 = arith.constant 0 : i32
    return %c0_i32, %c0_i32_0 : i32, i32
  }
  func.func @transform_10(%arg0: i32) -> (i32, i32) {
    %c0_i32 = arith.constant 0 : i32
    %c0_i32_0 = arith.constant 0 : i32
    %c0_i32_1 = arith.constant 0 : i32
    return %c0_i32, %c0_i32_0 : i32, i32
  }
  func.func @transform_11(%arg0: i32) -> (i32, i32) {
    %c0_i32 = arith.constant 0 : i32
    %c0_i32_0 = arith.constant 0 : i32
    %c0_i32_1 = arith.constant 0 : i32
    return %c0_i32, %c0_i32_0 : i32, i32
  }
  func.func @transform_12(%arg0: i32) -> (i32, i32) {
    %c0_i32 = arith.constant 0 : i32
    %c0_i32_0 = arith.constant 0 : i32
    %c0_i32_1 = arith.constant 0 : i32
    return %c0_i32, %c0_i32_0 : i32, i32
  }
  func.func @transform_13(%arg0: i32) -> (i32, i32) {
    %c0_i32 = arith.constant 0 : i32
    %c0_i32_0 = arith.constant 0 : i32
    %c0_i32_1 = arith.constant 0 : i32
    return %c0_i32, %c0_i32_0 : i32, i32
  }
  func.func @transform_14(%arg0: i32) -> (i32, i32, i32) {
    %c0_i32 = arith.constant 0 : i32
    %c0_i32_0 = arith.constant 0 : i32
    %c0_i32_1 = arith.constant 0 : i32
    return %arg0, %c0_i32, %c0_i32_0 : i32, i32, i32
  }
}

</mosaic_0001>

<llo_original>
// kernel: conv_backbone_forward.1
$region0: #{conv_backbone_forward.1}
  #allocation0 [shape = 'u32[]', space=smem, size = 0x4, offset = 0x4, fixed_abs, tag = 'smem constant byte address 0x4 - core index']
  #allocation1 [shape = 'u32[144,128]{1,0:T(1,128)}', space=vmem, size = 0x12000, scoped, tag = 'internal scratch']
  %s0 = inlined_call_operand.vmem [shape: f32[2,256,32], index: 0, kind: input, shape index: {}]
  %s1 = inlined_call_operand.vmem [shape: f32[32,128], index: 1, kind: input, shape index: {}]
  %s2 = inlined_call_operand.vmem [shape: f32[1,128], index: 2, kind: input, shape index: {}]
  %s3 = inlined_call_operand.vmem [shape: f32[1,128], index: 3, kind: input, shape index: {}]
  %s4 = inlined_call_operand.vmem [shape: f32[100,64], index: 4, kind: input, shape index: {}]
  %s5 = inlined_call_operand.vmem [shape: f32[1152,128], index: 5, kind: input, shape index: {}]
  %s6 = inlined_call_operand.vmem [shape: f32[1,128], index: 6, kind: input, shape index: {}]
  %s7 = inlined_call_operand.vmem [shape: f32[1,128], index: 7, kind: input, shape index: {}]
  %s8 = inlined_call_operand.vmem [shape: f32[36,16], index: 8, kind: input, shape index: {}]
  %s9 = inlined_call_operand.vmem [shape: f32[1152,128], index: 9, kind: input, shape index: {}]
  %s10 = inlined_call_operand.vmem [shape: f32[1,128], index: 10, kind: input, shape index: {}]
  %s11 = inlined_call_operand.vmem [shape: f32[1,128], index: 11, kind: input, shape index: {}]
  %s12 = inlined_call_operand.vmem [shape: f32[128,256], index: 12, kind: input, shape index: {}]
  %s13 = inlined_call_operand.vmem [shape: f32[1,256], index: 13, kind: input, shape index: {}]
  %s14 = inlined_call_operand.vmem [shape: f32[2,1,256], index: 14, kind: output, shape index: {}]
  %s15 = sld [smem:[#allocation0]]
  $region89: #{conv_backbone_forward.1} parent=0
    _
  %s17 = ssub.s32 1, %s15
  %s18 = scalar_select 0, %s17, %s15
  loop: start=0, step=1, limit=4
  $region2: #{conv_backbone_forward.1} parent=0 // loop_pre_header
    _
  $region3: #{conv_backbone_forward.1} parent=0 // loop_header
    %s20 = sphi 0, %s24
    %p21 = scmp.ge.s32.totalorder %s20, 4
    %s30 = sphi 0, %s32
    %s33 = sphi 0, %s30
    %s34 = sphi 0, %s33
    %s50 = sphi 0, %s34
    %s54 = sphi 0, %s54
    %s56 = sphi 0, %s54
    %s57 = sphi 0, %s56
    %s71 = sphi 0, %s57
    %s75 = sphi 0, %s75
    %s77 = sphi 0, %s75
    %s78 = sphi 0, %s77
    %s92 = sphi 0, %s78
    %s96 = sphi 0, %s96
    %s98 = sphi 0, %s96
    %s99 = sphi 0, %s98
    %s113 = sphi 0, %s99
    %s117 = sphi 0, %s117
    %s119 = sphi 0, %s117
    %s120 = sphi 0, %s119
    %s134 = sphi 0, %s120
    %s138 = sphi 0, %s138
    %s140 = sphi 0, %s138
    %s141 = sphi 0, %s140
    %s155 = sphi 0, %s141
    %s159 = sphi 0, %s159
    %s161 = sphi 0, %s159
    %s162 = sphi 0, %s161
    %s176 = sphi 0, %s162
    %s180 = sphi 0, %s180
    %s182 = sphi 0, %s180
    %s183 = sphi 0, %s182
    %s197 = sphi 0, %s183
    %s201 = sphi 0, %s201
    %s203 = sphi 0, %s201
    %s204 = sphi 0, %s203
    %s218 = sphi 0, %s204
    %s222 = sphi 0, %s222
    %s224 = sphi 0, %s222
    %s225 = sphi 0, %s224
    %s239 = sphi 0, %s225
    %s243 = sphi 0, %s243
    %s245 = sphi 0, %s243
    %s246 = sphi 0, %s245
    %s260 = sphi 0, %s246
    %s264 = sphi 0, %s264
    %s266 = sphi 0, %s264
    %s267 = sphi 0, %s266
    %s281 = sphi 0, %s267
    %s285 = sphi 0, %s285
    %s287 = sphi 0, %s285
    %s288 = sphi 0, %s287
    %s302 = sphi 0, %s288
    %s306 = sphi 0, %s306
    %s308 = sphi 0, %s306
    %s309 = sphi 0, %s308
    %s323 = sphi 0, %s309
    %s329 = sphi 0, %s331
    %s332 = sphi 0, %s329
    %s333 = sphi 0, %s332
    %s349 = sphi 0, %s333
  $region4: #{conv_backbone_forward.1} parent=0 // loop_header_branch
    %23 = sbr.rel (%p21) target = $region8
  $region5: #{conv_backbone_forward.1} parent=0 // loop_body
    %s25 = ssub.s32 %s20, 1
    %s26 = ssub.s32 %s20, 2
    %s27 = sadd.s32 %s20, 1
    %s28 = ssub.s32 %s20, %s27
    %p29 = scmp.eq.s32.totalorder %s28, 0
    %s31 = sadd.s32 %s30, 1
    %s32 = scalar_select %p29, %s30, %s31
    %p35 = pneg %p29
    %p36 = scmp.eq.s32.totalorder %s20, 1
    %p37 = por %p35, %p36
    %p38 = scmp.ne.s32.totalorder %s30, %s33
    %p39 = scmp.eq.s32.totalorder %s20, 0
    %p40 = por %p38, %p39
    %p41 = scmp.ne.s32.totalorder %s30, %s33
    %p42 = scmp.eq.s32.totalorder %s25, 1
    %p43 = por %p41, %p42
    %p44 = scmp.ne.s32.totalorder %s33, %s34
    %p45 = scmp.eq.s32.totalorder %s25, 0
    %p46 = por %p44, %p45
    %p47 = scmp.ne.s32.totalorder %s33, %s34
    %p48 = scmp.eq.s32.totalorder %s26, 1
    %p49 = por %p47, %p48
    %p51 = scmp.ne.s32.totalorder %s34, %s50
    %p52 = scmp.eq.s32.totalorder %s26, 0
    %p53 = por %p51, %p52
    %s55 = sadd.s32 %s54, 1
    %p58 = scmp.eq.s32.totalorder %s20, 1
    %p59 = scmp.ne.s32.totalorder %s54, %s56
    %p60 = scmp.eq.s32.totalorder %s20, 0
    %p61 = por %p59, %p60
    %p62 = scmp.ne.s32.totalorder %s54, %s56
    %p63 = scmp.eq.s32.totalorder %s25, 1
    %p64 = por %p62, %p63
    %p65 = scmp.ne.s32.totalorder %s56, %s57
    %p66 = scmp.eq.s32.totalorder %s25, 0
    %p67 = por %p65, %p66
    %p68 = scmp.ne.s32.totalorder %s56, %s57
    %p69 = scmp.eq.s32.totalorder %s26, 1
    %p70 = por %p68, %p69
    %p72 = scmp.ne.s32.totalorder %s57, %s71
    %p73 = scmp.eq.s32.totalorder %s26, 0
    %p74 = por %p72, %p73
    %s76 = sadd.s32 %s75, 1
    %p79 = scmp.eq.s32.totalorder %s20, 1
    %p80 = scmp.ne.s32.totalorder %s75, %s77
    %p81 = scmp.eq.s32.totalorder %s20, 0
    %p82 = por %p80, %p81
    %p83 = scmp.ne.s32.totalorder %s75, %s77
    %p84 = scmp.eq.s32.totalorder %s25, 1
    %p85 = por %p83, %p84
    %p86 = scmp.ne.s32.totalorder %s77, %s78
    %p87 = scmp.eq.s32.totalorder %s25, 0
    %p88 = por %p86, %p87
    %p89 = scmp.ne.s32.totalorder %s77, %s78
    %p90 = scmp.eq.s32.totalorder %s26, 1
    %p91 = por %p89, %p90
    %p93 = scmp.ne.s32.totalorder %s78, %s92
    %p94 = scmp.eq.s32.totalorder %s26, 0
    %p95 = por %p93, %p94
    %s97 = sadd.s32 %s96, 1
    %p100 = scmp.eq.s32.totalorder %s20, 1
    %p101 = scmp.ne.s32.totalorder %s96, %s98
    %p102 = scmp.eq.s32.totalorder %s20, 0
    %p103 = por %p101, %p102
    %p104 = scmp.ne.s32.totalorder %s96, %s98
    %p105 = scmp.eq.s32.totalorder %s25, 1
    %p106 = por %p104, %p105
    %p107 = scmp.ne.s32.totalorder %s98, %s99
    %p108 = scmp.eq.s32.totalorder %s25, 0
    %p109 = por %p107, %p108
    %p110 = scmp.ne.s32.totalorder %s98, %s99
    %p111 = scmp.eq.s32.totalorder %s26, 1
    %p112 = por %p110, %p111
    %p114 = scmp.ne.s32.totalorder %s99, %s113
    %p115 = scmp.eq.s32.totalorder %s26, 0
    %p116 = por %p114, %p115
    %s118 = sadd.s32 %s117, 1
    %p121 = scmp.eq.s32.totalorder %s20, 1
    %p122 = scmp.ne.s32.totalorder %s117, %s119
    %p123 = scmp.eq.s32.totalorder %s20, 0
    %p124 = por %p122, %p123
    %p125 = scmp.ne.s32.totalorder %s117, %s119
    %p126 = scmp.eq.s32.totalorder %s25, 1
    %p127 = por %p125, %p126
    %p128 = scmp.ne.s32.totalorder %s119, %s120
    %p129 = scmp.eq.s32.totalorder %s25, 0
    %p130 = por %p128, %p129
    %p131 = scmp.ne.s32.totalorder %s119, %s120
    %p132 = scmp.eq.s32.totalorder %s26, 1
    %p133 = por %p131, %p132
    %p135 = scmp.ne.s32.totalorder %s120, %s134
    %p136 = scmp.eq.s32.totalorder %s26, 0
    %p137 = por %p135, %p136
    %s139 = sadd.s32 %s138, 1
    %p142 = scmp.eq.s32.totalorder %s20, 1
    %p143 = scmp.ne.s32.totalorder %s138, %s140
    %p144 = scmp.eq.s32.totalorder %s20, 0
    %p145 = por %p143, %p144
    %p146 = scmp.ne.s32.totalorder %s138, %s140
    %p147 = scmp.eq.s32.totalorder %s25, 1
    %p148 = por %p146, %p147
    %p149 = scmp.ne.s32.totalorder %s140, %s141
    %p150 = scmp.eq.s32.totalorder %s25, 0
    %p151 = por %p149, %p150
    %p152 = scmp.ne.s32.totalorder %s140, %s141
    %p153 = scmp.eq.s32.totalorder %s26, 1
    %p154 = por %p152, %p153
    %p156 = scmp.ne.s32.totalorder %s141, %s155
    %p157 = scmp.eq.s32.totalorder %s26, 0
    %p158 = por %p156, %p157
    %s160 = sadd.s32 %s159, 1
    %p163 = scmp.eq.s32.totalorder %s20, 1
    %p164 = scmp.ne.s32.totalorder %s159, %s161
    %p165 = scmp.eq.s32.totalorder %s20, 0
    %p166 = por %p164, %p165
    %p167 = scmp.ne.s32.totalorder %s159, %s161
    %p168 = scmp.eq.s32.totalorder %s25, 1
    %p169 = por %p167, %p168
    %p170 = scmp.ne.s32.totalorder %s161, %s162
    %p171 = scmp.eq.s32.totalorder %s25, 0
    %p172 = por %p170, %p171
    %p173 = scmp.ne.s32.totalorder %s161, %s162
    %p174 = scmp.eq.s32.totalorder %s26, 1
    %p175 = por %p173, %p174
    %p177 = scmp.ne.s32.totalorder %s162, %s176
    %p178 = scmp.eq.s32.totalorder %s26, 0
    %p179 = por %p177, %p178
    %s181 = sadd.s32 %s180, 1
    %p184 = scmp.eq.s32.totalorder %s20, 1
    %p185 = scmp.ne.s32.totalorder %s180, %s182
    %p186 = scmp.eq.s32.totalorder %s20, 0
    %p187 = por %p185, %p186
    %p188 = scmp.ne.s32.totalorder %s180, %s182
    %p189 = scmp.eq.s32.totalorder %s25, 1
    %p190 = por %p188, %p189
    %p191 = scmp.ne.s32.totalorder %s182, %s183
    %p192 = scmp.eq.s32.totalorder %s25, 0
    %p193 = por %p191, %p192
    %p194 = scmp.ne.s32.totalorder %s182, %s183
    %p195 = scmp.eq.s32.totalorder %s26, 1
    %p196 = por %p194, %p195
    %p198 = scmp.ne.s32.totalorder %s183, %s197
    %p199 = scmp.eq.s32.totalorder %s26, 0
    %p200 = por %p198, %p199
    %s202 = sadd.s32 %s201, 1
    %p205 = scmp.eq.s32.totalorder %s20, 1
    %p206 = scmp.ne.s32.totalorder %s201, %s203
    %p207 = scmp.eq.s32.totalorder %s20, 0
    %p208 = por %p206, %p207
    %p209 = scmp.ne.s32.totalorder %s201, %s203
    %p210 = scmp.eq.s32.totalorder %s25, 1
    %p211 = por %p209, %p210
    %p212 = scmp.ne.s32.totalorder %s203, %s204
    %p213 = scmp.eq.s32.totalorder %s25, 0
    %p214 = por %p212, %p213
    %p215 = scmp.ne.s32.totalorder %s203, %s204
    %p216 = scmp.eq.s32.totalorder %s26, 1
    %p217 = por %p215, %p216
    %p219 = scmp.ne.s32.totalorder %s204, %s218
    %p220 = scmp.eq.s32.totalorder %s26, 0
    %p221 = por %p219, %p220
    %s223 = sadd.s32 %s222, 1
    %p226 = scmp.eq.s32.totalorder %s20, 1
    %p227 = scmp.ne.s32.totalorder %s222, %s224
    %p228 = scmp.eq.s32.totalorder %s20, 0
    %p229 = por %p227, %p228
    %p230 = scmp.ne.s32.totalorder %s222, %s224
    %p231 = scmp.eq.s32.totalorder %s25, 1
    %p232 = por %p230, %p231
    %p233 = scmp.ne.s32.totalorder %s224, %s225
    %p234 = scmp.eq.s32.totalorder %s25, 0
    %p235 = por %p233, %p234
    %p236 = scmp.ne.s32.totalorder %s224, %s225
    %p237 = scmp.eq.s32.totalorder %s26, 1
    %p238 = por %p236, %p237
    %p240 = scmp.ne.s32.totalorder %s225, %s239
    %p241 = scmp.eq.s32.totalorder %s26, 0
    %p242 = por %p240, %p241
    %s244 = sadd.s32 %s243, 1
    %p247 = scmp.eq.s32.totalorder %s20, 1
    %p248 = scmp.ne.s32.totalorder %s243, %s245
    %p249 = scmp.eq.s32.totalorder %s20, 0
    %p250 = por %p248, %p249
    %p251 = scmp.ne.s32.totalorder %s243, %s245
    %p252 = scmp.eq.s32.totalorder %s25, 1
    %p253 = por %p251, %p252
    %p254 = scmp.ne.s32.totalorder %s245, %s246
    %p255 = scmp.eq.s32.totalorder %s25, 0
    %p256 = por %p254, %p255
    %p257 = scmp.ne.s32.totalorder %s245, %s246
    %p258 = scmp.eq.s32.totalorder %s26, 1
    %p259 = por %p257, %p258
    %p261 = scmp.ne.s32.totalorder %s246, %s260
    %p262 = scmp.eq.s32.totalorder %s26, 0
    %p263 = por %p261, %p262
    %s265 = sadd.s32 %s264, 1
    %p268 = scmp.eq.s32.totalorder %s20, 1
    %p269 = scmp.ne.s32.totalorder %s264, %s266
    %p270 = scmp.eq.s32.totalorder %s20, 0
    %p271 = por %p269, %p270
    %p272 = scmp.ne.s32.totalorder %s264, %s266
    %p273 = scmp.eq.s32.totalorder %s25, 1
    %p274 = por %p272, %p273
    %p275 = scmp.ne.s32.totalorder %s266, %s267
    %p276 = scmp.eq.s32.totalorder %s25, 0
    %p277 = por %p275, %p276
    %p278 = scmp.ne.s32.totalorder %s266, %s267
    %p279 = scmp.eq.s32.totalorder %s26, 1
    %p280 = por %p278, %p279
    %p282 = scmp.ne.s32.totalorder %s267, %s281
    %p283 = scmp.eq.s32.totalorder %s26, 0
    %p284 = por %p282, %p283
    %s286 = sadd.s32 %s285, 1
    %p289 = scmp.eq.s32.totalorder %s20, 1
    %p290 = scmp.ne.s32.totalorder %s285, %s287
    %p291 = scmp.eq.s32.totalorder %s20, 0
    %p292 = por %p290, %p291
    %p293 = scmp.ne.s32.totalorder %s285, %s287
    %p294 = scmp.eq.s32.totalorder %s25, 1
    %p295 = por %p293, %p294
    %p296 = scmp.ne.s32.totalorder %s287, %s288
    %p297 = scmp.eq.s32.totalorder %s25, 0
    %p298 = por %p296, %p297
    %p299 = scmp.ne.s32.totalorder %s287, %s288
    %p300 = scmp.eq.s32.totalorder %s26, 1
    %p301 = por %p299, %p300
    %p303 = scmp.ne.s32.totalorder %s288, %s302
    %p304 = scmp.eq.s32.totalorder %s26, 0
    %p305 = por %p303, %p304
    %s307 = sadd.s32 %s306, 1
    %p310 = scmp.eq.s32.totalorder %s20, 1
    %p311 = scmp.ne.s32.totalorder %s306, %s308
    %p312 = scmp.eq.s32.totalorder %s20, 0
    %p313 = por %p311, %p312
    %p314 = scmp.ne.s32.totalorder %s306, %s308
    %p315 = scmp.eq.s32.totalorder %s25, 1
    %p316 = por %p314, %p315
    %p317 = scmp.ne.s32.totalorder %s308, %s309
    %p318 = scmp.eq.s32.totalorder %s25, 0
    %p319 = por %p317, %p318
    %p320 = scmp.ne.s32.totalorder %s308, %s309
    %p321 = scmp.eq.s32.totalorder %s26, 1
    %p322 = por %p320, %p321
    %p324 = scmp.ne.s32.totalorder %s309, %s323
    %p325 = scmp.eq.s32.totalorder %s26, 0
    %p326 = por %p324, %p325
    %s327 = ssub.s32 %s20, %s27
    %p328 = scmp.eq.s32.totalorder %s327, 0
    %s330 = sadd.s32 %s329, 1
    %s331 = scalar_select %p328, %s329, %s330
    %p334 = pneg %p328
    %p335 = scmp.eq.s32.totalorder %s20, 1
    %p336 = por %p334, %p335
    %p337 = scmp.ne.s32.totalorder %s329, %s332
    %p338 = scmp.eq.s32.totalorder %s20, 0
    %p339 = por %p337, %p338
    %p340 = scmp.ne.s32.totalorder %s329, %s332
    %p341 = scmp.eq.s32.totalorder %s25, 1
    %p342 = por %p340, %p341
    %p343 = scmp.ne.s32.totalorder %s332, %s333
    %p344 = scmp.eq.s32.totalorder %s25, 0
    %p345 = por %p343, %p344
    %p346 = scmp.ne.s32.totalorder %s332, %s333
    %p347 = scmp.eq.s32.totalorder %s26, 1
    %p348 = por %p346, %p347
    %p350 = scmp.ne.s32.totalorder %s333, %s349
    %p351 = scmp.eq.s32.totalorder %s26, 0
    %p352 = por %p350, %p351
    %p353 = scmp.le.s32.totalorder 1, %s20
    %p354 = scmp.lt.s32.totalorder %s20, 3
    %p355 = pnand %p353, %p354
    %p356 = pneg %p355
    // Predicated region
    $region9: #{conv_backbone_forward.1} parent=5 // pred_check
      _
    $region10: #{conv_backbone_forward.1} parent=5 // pred_check_branch
      %358 = sbr.rel (%p355) target = $region12
    $region11: #{conv_backbone_forward.1} parent=5 // pred_region
      %s359 = ssub.s32 %s20, 1
      // Predicated region
      $region13: #{conv_backbone_forward.1} parent=11 // pred_check
        %p360 = pneg %p67
      $region14: #{conv_backbone_forward.1} parent=11 // pred_check_branch
        %362 = sbr.rel (%p360) target = $region16
      $region15: #{conv_backbone_forward.1} parent=11 // pred_region
        _
      $region16: #{conv_backbone_forward.1} parent=11 // pred_fallthru
        _
      // Predicated region
      $region17: #{conv_backbone_forward.1} parent=11 // pred_check
        %p363 = pneg %p88
      $region18: #{conv_backbone_forward.1} parent=11 // pred_check_branch
        %365 = sbr.rel (%p363) target = $region20
      $region19: #{conv_backbone_forward.1} parent=11 // pred_region
        _
      $region20: #{conv_backbone_forward.1} parent=11 // pred_fallthru
        _
      // Predicated region
      $region21: #{conv_backbone_forward.1} parent=11 // pred_check
        %p366 = pneg %p109
      $region22: #{conv_backbone_forward.1} parent=11 // pred_check_branch
        %368 = sbr.rel (%p366) target = $region24
      $region23: #{conv_backbone_forward.1} parent=11 // pred_region
        _
      $region24: #{conv_backbone_forward.1} parent=11 // pred_fallthru
        _
      // Predicated region
      $region25: #{conv_backbone_forward.1} parent=11 // pred_check
        %p369 = pneg %p130
      $region26: #{conv_backbone_forward.1} parent=11 // pred_check_branch
        %371 = sbr.rel (%p369) target = $region28
      $region27: #{conv_backbone_forward.1} parent=11 // pred_region
        _
      $region28: #{conv_backbone_forward.1} parent=11 // pred_fallthru
        _
      // Predicated region
      $region29: #{conv_backbone_forward.1} parent=11 // pred_check
        %p372 = pneg %p151
      $region30: #{conv_backbone_forward.1} parent=11 // pred_check_branch
        %374 = sbr.rel (%p372) target = $region32
      $region31: #{conv_backbone_forward.1} parent=11 // pred_region
        _
      $region32: #{conv_backbone_forward.1} parent=11 // pred_fallthru
        _
      // Predicated region
      $region33: #{conv_backbone_forward.1} parent=11 // pred_check
        %p375 = pneg %p172
      $region34: #{conv_backbone_forward.1} parent=11 // pred_check_branch
        %377 = sbr.rel (%p375) target = $region36
      $region35: #{conv_backbone_forward.1} parent=11 // pred_region
        _
      $region36: #{conv_backbone_forward.1} parent=11 // pred_fallthru
        _
      // Predicated region
      $region37: #{conv_backbone_forward.1} parent=11 // pred_check
        %p378 = pneg %p193
      $region38: #{conv_backbone_forward.1} parent=11 // pred_check_branch
        %380 = sbr.rel (%p378) target = $region40
      $region39: #{conv_backbone_forward.1} parent=11 // pred_region
        _
      $region40: #{conv_backbone_forward.1} parent=11 // pred_fallthru
        _
      // Predicated region
      $region41: #{conv_backbone_forward.1} parent=11 // pred_check
        %p381 = pneg %p214
      $region42: #{conv_backbone_forward.1} parent=11 // pred_check_branch
        %383 = sbr.rel (%p381) target = $region44
      $region43: #{conv_backbone_forward.1} parent=11 // pred_region
        _
      $region44: #{conv_backbone_forward.1} parent=11 // pred_fallthru
        _
      // Predicated region
      $region45: #{conv_backbone_forward.1} parent=11 // pred_check
        %p384 = pneg %p235
      $region46: #{conv_backbone_forward.1} parent=11 // pred_check_branch
        %386 = sbr.rel (%p384) target = $region48
      $region47: #{conv_backbone_forward.1} parent=11 // pred_region
        _
      $region48: #{conv_backbone_forward.1} parent=11 // pred_fallthru
        _
      // Predicated region
      $region49: #{conv_backbone_forward.1} parent=11 // pred_check
        %p387 = pneg %p256
      $region50: #{conv_backbone_forward.1} parent=11 // pred_check_branch
        %389 = sbr.rel (%p387) target = $region52
      $region51: #{conv_backbone_forward.1} parent=11 // pred_region
        _
      $region52: #{conv_backbone_forward.1} parent=11 // pred_fallthru
        _
      // Predicated region
      $region53: #{conv_backbone_forward.1} parent=11 // pred_check
        %p390 = pneg %p277
      $region54: #{conv_backbone_forward.1} parent=11 // pred_check_branch
        %392 = sbr.rel (%p390) target = $region56
      $region55: #{conv_backbone_forward.1} parent=11 // pred_region
        _
      $region56: #{conv_backbone_forward.1} parent=11 // pred_fallthru
        _
      // Predicated region
      $region57: #{conv_backbone_forward.1} parent=11 // pred_check
        %p393 = pneg %p298
      $region58: #{conv_backbone_forward.1} parent=11 // pred_check_branch
        %395 = sbr.rel (%p393) target = $region60
      $region59: #{conv_backbone_forward.1} parent=11 // pred_region
        _
      $region60: #{conv_backbone_forward.1} parent=11 // pred_fallthru
        _
      // Predicated region
      $region61: #{conv_backbone_forward.1} parent=11 // pred_check
        %p396 = pneg %p319
      $region62: #{conv_backbone_forward.1} parent=11 // pred_check_branch
        %398 = sbr.rel (%p396) target = $region64
      $region63: #{conv_backbone_forward.1} parent=11 // pred_region
        _
      $region64: #{conv_backbone_forward.1} parent=11 // pred_fallthru
        _
    $region12: #{conv_backbone_forward.1} parent=5 // pred_fallthru
      _
    %p399 = scmp.lt.s32.totalorder %s20, 2
    // Predicated region
    $region65: #{conv_backbone_forward.1} parent=5 // pred_check
      %p400 = pneg %p399
    $region66: #{conv_backbone_forward.1} parent=5 // pred_check_branch
      %402 = sbr.rel (%p400) target = $region68
    $region67: #{conv_backbone_forward.1} parent=5 // pred_region
      // Predicated region
      $region69: #{conv_backbone_forward.1} parent=67 // pred_check
        %p403 = pneg %p40
      $region70: #{conv_backbone_forward.1} parent=67 // pred_check_branch
        %405 = sbr.rel (%p403) target = $region72
      $region71: #{conv_backbone_forward.1} parent=67 // pred_region
        %p406 = scmp.lt.s32.totalorder %s20, 1
        %s407 = scalar_select %p406, %s20, 1
        %s408 = smul.addr %s407, 32
        %s409 = smul.addr %s408, 8
        %s410 = scalar_lea.vmem %s0, %s409
      $region72: #{conv_backbone_forward.1} parent=67 // pred_fallthru
        _
    $region68: #{conv_backbone_forward.1} parent=5 // pred_fallthru
      _
    %p411 = scmp.le.s32.totalorder 1, %s20
    %p412 = scmp.lt.s32.totalorder %s20, 3
    %p413 = pnand %p411, %p412
    %p414 = pneg %p413
    // Predicated region
    $region73: #{conv_backbone_forward.1} parent=5 // pred_check
      _
    $region74: #{conv_backbone_forward.1} parent=5 // pred_check_branch
      %416 = sbr.rel (%p413) target = $region76
    $region75: #{conv_backbone_forward.1} parent=5 // pred_region
      %s417 = ssub.s32 %s20, 1
      %p418 = scmp.lt.s32.totalorder %s25, 1
      %s419 = scalar_select %p418, %s25, 1
      %s420 = smul.addr %s419, 32
      %s421 = smul.addr %s420, 8
      %s422 = scalar_lea.vmem %s0, %s421
      %p423 = pneg %p46
      %p424 = pneg %p43
      %p425 = pneg %p67
      %p426 = pneg %p64
      %p427 = pneg %p88
      %p428 = pneg %p85
      %p429 = pneg %p109
      %p430 = pneg %p106
      %p431 = pneg %p130
      %p432 = pneg %p127
      %p433 = pneg %p151
      %p434 = pneg %p148
      %p435 = pneg %p172
      %p436 = pneg %p169
      %p437 = pneg %p193
      %p438 = pneg %p190
      %p439 = pneg %p214
      %p440 = pneg %p211
      %p441 = pneg %p235
      %p442 = pneg %p232
      %p443 = pneg %p256
      %p444 = pneg %p253
      %p445 = pneg %p277
      %p446 = pneg %p274
      %p447 = pneg %p298
      %p448 = pneg %p295
      %p449 = pneg %p319
      %p450 = pneg %p316
      %p451 = pneg %p345
      %p452 = pneg %p342
      %p453 = scmp.lt.s32.totalorder %s25, 1
      %s454 = scalar_select %p453, %s25, 1
      %s455 = smul.addr %s454, 2
      %s456 = scalar_lea.vmem %s14, %s455
      %p457 = scmp.lt.s32.totalorder %s25, 1
      %s458 = scalar_select %p457, %s25, 1
      %s459 = smul.addr %s458, 32
      %s460 = smul.addr %s459, 8
      %s461 = scalar_lea.vmem %s0, %s460
      %p462 = scmp.lt.s32.totalorder %s25, 1
      %s463 = scalar_select %p462, %s25, 1
      %s464 = smul.addr %s463, 2
      %s465 = scalar_lea.vmem %s14, %s464
      %v466 = vld [vmem:[%s461] sm:$0xff]
      %v467 = vld [vmem:[%s461 + $0x8] sm:$0xff]
      %v468 = vld [vmem:[%s461 + $0x10] sm:$0xff]
      %v469 = vld [vmem:[%s461 + $0x18] sm:$0xff]
      %v470 = vld [vmem:[%s461 + $0x20] sm:$0xff]
      %v471 = vld [vmem:[%s461 + $0x28] sm:$0xff]
      %v472 = vld [vmem:[%s461 + $0x30] sm:$0xff]
      %v473 = vld [vmem:[%s461 + $0x38] sm:$0xff]
      %v474 = vld [vmem:[%s461 + $0x40] sm:$0xff]
      %v475 = vld [vmem:[%s461 + $0x48] sm:$0xff]
      %v476 = vld [vmem:[%s461 + $0x50] sm:$0xff]
      %v477 = vld [vmem:[%s461 + $0x58] sm:$0xff]
      %v478 = vld [vmem:[%s461 + $0x60] sm:$0xff]
      %v479 = vld [vmem:[%s461 + $0x68] sm:$0xff]
      %v480 = vld [vmem:[%s461 + $0x70] sm:$0xff]
      %v481 = vld [vmem:[%s461 + $0x78] sm:$0xff]
      %v482 = vld [vmem:[%s461 + $0x80] sm:$0xff]
      %v483 = vld [vmem:[%s461 + $0x88] sm:$0xff]
      %v484 = vld [vmem:[%s461 + $0x90] sm:$0xff]
      %v485 = vld [vmem:[%s461 + $0x98] sm:$0xff]
      %v486 = vld [vmem:[%s461 + $0xa0] sm:$0xff]
      %v487 = vld [vmem:[%s461 + $0xa8] sm:$0xff]
      %v488 = vld [vmem:[%s461 + $0xb0] sm:$0xff]
      %v489 = vld [vmem:[%s461 + $0xb8] sm:$0xff]
      %v490 = vld [vmem:[%s461 + $0xc0] sm:$0xff]
      %v491 = vld [vmem:[%s461 + $0xc8] sm:$0xff]
      %v492 = vld [vmem:[%s461 + $0xd0] sm:$0xff]
      %v493 = vld [vmem:[%s461 + $0xd8] sm:$0xff]
      %v494 = vld [vmem:[%s461 + $0xe0] sm:$0xff]
      %v495 = vld [vmem:[%s461 + $0xe8] sm:$0xff]
      %v496 = vld [vmem:[%s461 + $0xf0] sm:$0xff]
      %v497 = vld [vmem:[%s461 + $0xf8] sm:$0xff]
      %v498 = vld [vmem:[%s1] sm:$0xff]
      %v499 = vld [vmem:[%s1 + $0x8] sm:$0xff]
      %v500 = vld [vmem:[%s1 + $0x10] sm:$0xff]
      %v501 = vld [vmem:[%s1 + $0x18] sm:$0xff]
      %vm502 = vcmask 261120
      %v504 = vsel %vm502, %v466, 0
      %v507 = vsel %vm502, %v467, 0
      %v510 = vsel %vm502, %v468, 0
      %v513 = vsel %vm502, %v469, 0
      %v516 = vsel %vm502, %v470, 0
      %v519 = vsel %vm502, %v471, 0
      %v522 = vsel %vm502, %v472, 0
      %v525 = vsel %vm502, %v473, 0
      %v528 = vsel %vm502, %v474, 0
      %v531 = vsel %vm502, %v475, 0
      %v534 = vsel %vm502, %v476, 0
      %v537 = vsel %vm502, %v477, 0
      %v540 = vsel %vm502, %v478, 0
      %v543 = vsel %vm502, %v479, 0
      %v546 = vsel %vm502, %v480, 0
      %v549 = vsel %vm502, %v481, 0
      %v552 = vsel %vm502, %v482, 0
      %v555 = vsel %vm502, %v483, 0
      %v558 = vsel %vm502, %v484, 0
      %v561 = vsel %vm502, %v485, 0
      %v564 = vsel %vm502, %v486, 0
      %v567 = vsel %vm502, %v487, 0
      %v570 = vsel %vm502, %v488, 0
      %v573 = vsel %vm502, %v489, 0
      %v576 = vsel %vm502, %v490, 0
      %v579 = vsel %vm502, %v491, 0
      %v582 = vsel %vm502, %v492, 0
      %v585 = vsel %vm502, %v493, 0
      %v588 = vsel %vm502, %v494, 0
      %v591 = vsel %vm502, %v495, 0
      %v594 = vsel %vm502, %v496, 0
      %v597 = vsel %vm502, %v497, 0
      %599 = vmatprep.subr.mxu0 0.0
      %600 = vmatpush1.msra.mxu0 0.0
      %601 = vmatprep.subr.mxu0 0.0
      %602 = vmatpush1.msra.mxu0 0.0
      %603 = vmatprep.subr.mxu0 0.0
      %604 = vmatpush1.msra.mxu0 0.0
      %605 = vmatprep.subr.mxu0 0.0
      %606 = vmatpush1.msra.mxu0 0.0
      %607 = vmatprep.subr.mxu0 0.0
      %608 = vmatpush1.msra.mxu0 0.0
      %609 = vmatprep.subr.mxu0 0.0
      %610 = vmatpush1.msra.mxu0 0.0
      %611 = vmatprep.subr.mxu0 0.0
      %612 = vmatpush1.msra.mxu0 0.0
      %613 = vmatprep.subr.mxu0 0.0
      %614 = vmatpush1.msra.mxu0 0.0
      %615 = vmatprep.subr.mxu0 0.0
      %616 = vmatpush1.msra.mxu0 0.0
      %617 = vmatprep.subr.mxu0 0.0
      %618 = vmatpush1.msra.mxu0 0.0
      %619 = vmatprep.subr.mxu0 0.0
      %620 = vmatpush1.msra.mxu0 0.0
      %621 = vmatprep.subr.mxu0 0.0
      %622 = vmatpush1.msra.mxu0 0.0
      %623 = vmatprep.subr.mxu0 0.0
      %624 = vmatpush1.msra.mxu0 %v501
      %625 = vmatprep.subr.mxu0 0.0
      %626 = vmatpush1.msra.mxu0 %v500
      %627 = vmatprep.subr.mxu0 0.0
      %628 = vmatpush1.msra.mxu0 %v499
      %629 = vmatprep.subr.mxu0 0.0
      %630 = vmatpush1.msra.mxu0 %v498
      %631 = vmatprep.subr.mxu0 0.0
      %632 = vmatpush2.msra.mxu0 0.0
      %633 = vmatprep.subr.mxu0 0.0
      %634 = vmatpush2.msra.mxu0 0.0
      %635 = vmatprep.subr.mxu0 0.0
      %636 = vmatpush2.msra.mxu0 0.0
      %637 = vmatprep.subr.mxu0 0.0
      %638 = vmatpush2.msra.mxu0 0.0
      %639 = vmatprep.subr.mxu0 0.0
      %640 = vmatpush2.msra.mxu0 0.0
      %641 = vmatprep.subr.mxu0 0.0
      %642 = vmatpush2.msra.mxu0 0.0
      %643 = vmatprep.subr.mxu0 0.0
      %644 = vmatpush2.msra.mxu0 0.0
      %645 = vmatprep.subr.mxu0 0.0
      %646 = vmatpush2.msra.mxu0 0.0
      %647 = vmatprep.subr.mxu0 0.0
      %648 = vmatpush2.msra.mxu0 0.0
      %649 = vmatprep.subr.mxu0 0.0
      %650 = vmatpush2.msra.mxu0 0.0
      %651 = vmatprep.subr.mxu0 0.0
      %652 = vmatpush2.msra.mxu0 0.0
      %653 = vmatprep.subr.mxu0 0.0
      %654 = vmatpush2.msra.mxu0 0.0
      %655 = vmatprep.subr.mxu0 0.0
      %656 = vmatpush2.msra.mxu0 0.0
      %657 = vmatprep.subr.mxu0 0.0
      %658 = vmatpush2.msra.mxu0 0.0
      %659 = vmatprep.subr.mxu0 0.0
      %660 = vmatpush2.msra.mxu0 0.0
      %661 = vmatprep.subr.mxu0 0.0
      %662 = vmatpush2.msra.mxu0 0.0
      %663 = vmatprep.mubr.f32.mxu0 0.0
      %664 = vmatmul.mubr.f32.gmra.mxu0 %v504
      %v665 = vpop.f32.mrf.mxu0
      %v666 = vadd.f32 0.0, %v665
      %v667 = vpop.f32.mrf.mxu0
      %668 = vmatprep.mubr.f32.mxu0 0.0
      %669 = vmatmul.mubr.f32.gmra.mxu0 %v507
      %v670 = vpop.f32.mrf.mxu0
      %v671 = vadd.f32 0.0, %v670
      %v672 = vpop.f32.mrf.mxu0
      %673 = vmatprep.mubr.f32.mxu0 0.0
      %674 = vmatmul.mubr.f32.gmra.mxu0 %v510
      %v675 = vpop.f32.mrf.mxu0
      %v676 = vadd.f32 0.0, %v675
      %v677 = vpop.f32.mrf.mxu0
      %678 = vmatprep.mubr.f32.mxu0 0.0
      %679 = vmatmul.mubr.f32.gmra.mxu0 %v513
      %v680 = vpop.f32.mrf.mxu0
      %v681 = vadd.f32 0.0, %v680
      %v682 = vpop.f32.mrf.mxu0
      %683 = vmatprep.mubr.f32.mxu0 0.0
      %684 = vmatmul.mubr.f32.gmra.mxu0 %v516
      %v685 = vpop.f32.mrf.mxu0
      %v686 = vadd.f32 0.0, %v685
      %v687 = vpop.f32.mrf.mxu0
      %688 = vmatprep.mubr.f32.mxu0 0.0
      %689 = vmatmul.mubr.f32.gmra.mxu0 %v519
      %v690 = vpop.f32.mrf.mxu0
      %v691 = vadd.f32 0.0, %v690
      %v692 = vpop.f32.mrf.mxu0
      %693 = vmatprep.mubr.f32.mxu0 0.0
      %694 = vmatmul.mubr.f32.gmra.mxu0 %v522
      %v695 = vpop.f32.mrf.mxu0
      %v696 = vadd.f32 0.0, %v695
      %v697 = vpop.f32.mrf.mxu0
      %698 = vmatprep.mubr.f32.mxu0 0.0
      %699 = vmatmul.mubr.f32.gmra.mxu0 %v525
      %v700 = vpop.f32.mrf.mxu0
      %v701 = vadd.f32 0.0, %v700
      %v702 = vpop.f32.mrf.mxu0
      %703 = vmatprep.mubr.f32.mxu0 0.0
      %704 = vmatmul.mubr.f32.gmra.mxu0 %v528
      %v705 = vpop.f32.mrf.mxu0
      %v706 = vadd.f32 0.0, %v705
      %v707 = vpop.f32.mrf.mxu0
      %708 = vmatprep.mubr.f32.mxu0 0.0
      %709 = vmatmul.mubr.f32.gmra.mxu0 %v531
      %v710 = vpop.f32.mrf.mxu0
      %v711 = vadd.f32 0.0, %v710
      %v712 = vpop.f32.mrf.mxu0
      %713 = vmatprep.mubr.f32.mxu0 0.0
      %714 = vmatmul.mubr.f32.gmra.mxu0 %v534
      %v715 = vpop.f32.mrf.mxu0
      %v716 = vadd.f32 0.0, %v715
      %v717 = vpop.f32.mrf.mxu0
      %718 = vmatprep.mubr.f32.mxu0 0.0
      %719 = vmatmul.mubr.f32.gmra.mxu0 %v537
      %v720 = vpop.f32.mrf.mxu0
      %v721 = vadd.f32 0.0, %v720
      %v722 = vpop.f32.mrf.mxu0
      %723 = vmatprep.mubr.f32.mxu0 0.0
      %724 = vmatmul.mubr.f32.gmra.mxu0 %v540
      %v725 = vpop.f32.mrf.mxu0
      %v726 = vadd.f32 0.0, %v725
      %v727 = vpop.f32.mrf.mxu0
      %728 = vmatprep.mubr.f32.mxu0 0.0
      %729 = vmatmul.mubr.f32.gmra.mxu0 %v543
      %v730 = vpop.f32.mrf.mxu0
      %v731 = vadd.f32 0.0, %v730
      %v732 = vpop.f32.mrf.mxu0
      %733 = vmatprep.mubr.f32.mxu0 0.0
      %734 = vmatmul.mubr.f32.gmra.mxu0 %v546
      %v735 = vpop.f32.mrf.mxu0
      %v736 = vadd.f32 0.0, %v735
      %v737 = vpop.f32.mrf.mxu0
      %738 = vmatprep.mubr.f32.mxu0 0.0
      %739 = vmatmul.mubr.f32.gmra.mxu0 %v549
      %v740 = vpop.f32.mrf.mxu0
      %v741 = vadd.f32 0.0, %v740
      %v742 = vpop.f32.mrf.mxu0
      %743 = vmatprep.mubr.f32.mxu0 0.0
      %744 = vmatmul.mubr.f32.gmra.mxu0 %v552
      %v745 = vpop.f32.mrf.mxu0
      %v746 = vadd.f32 0.0, %v745
      %v747 = vpop.f32.mrf.mxu0
      %748 = vmatprep.mubr.f32.mxu0 0.0
      %749 = vmatmul.mubr.f32.gmra.mxu0 %v555
      %v750 = vpop.f32.mrf.mxu0
      %v751 = vadd.f32 0.0, %v750
      %v752 = vpop.f32.mrf.mxu0
      %753 = vmatprep.mubr.f32.mxu0 0.0
      %754 = vmatmul.mubr.f32.gmra.mxu0 %v558
      %v755 = vpop.f32.mrf.mxu0
      %v756 = vadd.f32 0.0, %v755
      %v757 = vpop.f32.mrf.mxu0
      %758 = vmatprep.mubr.f32.mxu0 0.0
      %759 = vmatmul.mubr.f32.gmra.mxu0 %v561
      %v760 = vpop.f32.mrf.mxu0
      %v761 = vadd.f32 0.0, %v760
      %v762 = vpop.f32.mrf.mxu0
      %763 = vmatprep.mubr.f32.mxu0 0.0
      %764 = vmatmul.mubr.f32.gmra.mxu0 %v564
      %v765 = vpop.f32.mrf.mxu0
      %v766 = vadd.f32 0.0, %v765
      %v767 = vpop.f32.mrf.mxu0
      %768 = vmatprep.mubr.f32.mxu0 0.0
      %769 = vmatmul.mubr.f32.gmra.mxu0 %v567
      %v770 = vpop.f32.mrf.mxu0
      %v771 = vadd.f32 0.0, %v770
      %v772 = vpop.f32.mrf.mxu0
      %773 = vmatprep.mubr.f32.mxu0 0.0
      %774 = vmatmul.mubr.f32.gmra.mxu0 %v570
      %v775 = vpop.f32.mrf.mxu0
      %v776 = vadd.f32 0.0, %v775
      %v777 = vpop.f32.mrf.mxu0
      %778 = vmatprep.mubr.f32.mxu0 0.0
      %779 = vmatmul.mubr.f32.gmra.mxu0 %v573
      %v780 = vpop.f32.mrf.mxu0
      %v781 = vadd.f32 0.0, %v780
      %v782 = vpop.f32.mrf.mxu0
      %783 = vmatprep.mubr.f32.mxu0 0.0
      %784 = vmatmul.mubr.f32.gmra.mxu0 %v576
      %v785 = vpop.f32.mrf.mxu0
      %v786 = vadd.f32 0.0, %v785
      %v787 = vpop.f32.mrf.mxu0
      %788 = vmatprep.mubr.f32.mxu0 0.0
      %789 = vmatmul.mubr.f32.gmra.mxu0 %v579
      %v790 = vpop.f32.mrf.mxu0
      %v791 = vadd.f32 0.0, %v790
      %v792 = vpop.f32.mrf.mxu0
      %793 = vmatprep.mubr.f32.mxu0 0.0
      %794 = vmatmul.mubr.f32.gmra.mxu0 %v582
      %v795 = vpop.f32.mrf.mxu0
      %v796 = vadd.f32 0.0, %v795
      %v797 = vpop.f32.mrf.mxu0
      %798 = vmatprep.mubr.f32.mxu0 0.0
      %799 = vmatmul.mubr.f32.gmra.mxu0 %v585
      %v800 = vpop.f32.mrf.mxu0
      %v801 = vadd.f32 0.0, %v800
      %v802 = vpop.f32.mrf.mxu0
      %803 = vmatprep.mubr.f32.mxu0 0.0
      %804 = vmatmul.mubr.f32.gmra.mxu0 %v588
      %v805 = vpop.f32.mrf.mxu0
      %v806 = vadd.f32 0.0, %v805
      %v807 = vpop.f32.mrf.mxu0
      %808 = vmatprep.mubr.f32.mxu0 0.0
      %809 = vmatmul.mubr.f32.gmra.mxu0 %v591
      %v810 = vpop.f32.mrf.mxu0
      %v811 = vadd.f32 0.0, %v810
      %v812 = vpop.f32.mrf.mxu0
      %813 = vmatprep.mubr.f32.mxu0 0.0
      %814 = vmatmul.mubr.f32.gmra.mxu0 %v594
      %v815 = vpop.f32.mrf.mxu0
      %v816 = vadd.f32 0.0, %v815
      %v817 = vpop.f32.mrf.mxu0
      %818 = vmatprep.mubr.f32.mxu0 0.0
      %819 = vmatmul.mubr.f32.gmra.mxu0 %v597
      %v820 = vpop.f32.mrf.mxu0
      %v821 = vadd.f32 0.0, %v820
      %v822 = vpop.f32.mrf.mxu0
      %823 = vdwg.mxu0
      %v824 = vld [vmem:[%s2] sm:$0x1]
      %v826 = vlaneseq
      %v827 = vshrl.u32 %v826, 7
      %v828 = vsub.s32 0, %v827
      %v829 = vrot.slane %v824, %v828
      %v831 = vmul.f32 %v666, %v829
      %v832 = vmul.f32 %v671, %v829
      %v833 = vmul.f32 %v676, %v829
      %v834 = vmul.f32 %v681, %v829
      %v835 = vmul.f32 %v686, %v829
      %v836 = vmul.f32 %v691, %v829
      %v837 = vmul.f32 %v696, %v829
      %v838 = vmul.f32 %v701, %v829
      %v839 = vmul.f32 %v706, %v829
      %v840 = vmul.f32 %v711, %v829
      %v841 = vmul.f32 %v716, %v829
      %v842 = vmul.f32 %v721, %v829
      %v843 = vmul.f32 %v726, %v829
      %v844 = vmul.f32 %v731, %v829
      %v845 = vmul.f32 %v736, %v829
      %v846 = vmul.f32 %v741, %v829
      %v847 = vmul.f32 %v746, %v829
      %v848 = vmul.f32 %v751, %v829
      %v849 = vmul.f32 %v756, %v829
      %v850 = vmul.f32 %v761, %v829
      %v851 = vmul.f32 %v766, %v829
      %v852 = vmul.f32 %v771, %v829
      %v853 = vmul.f32 %v776, %v829
      %v854 = vmul.f32 %v781, %v829
      %v855 = vmul.f32 %v786, %v829
      %v856 = vmul.f32 %v791, %v829
      %v857 = vmul.f32 %v796, %v829
      %v858 = vmul.f32 %v801, %v829
      %v859 = vmul.f32 %v806, %v829
      %v860 = vmul.f32 %v811, %v829
      %v861 = vmul.f32 %v816, %v829
      %v862 = vmul.f32 %v821, %v829
      %v863 = vld [vmem:[%s3] sm:$0x1]
      %v865 = vlaneseq
      %v866 = vshrl.u32 %v865, 7
      %v867 = vsub.s32 0, %v866
      %v868 = vrot.slane %v863, %v867
      %v870 = vadd.f32 %v831, %v868
      %v871 = vadd.f32 %v832, %v868
      %v872 = vadd.f32 %v833, %v868
      %v873 = vadd.f32 %v834, %v868
      %v874 = vadd.f32 %v835, %v868
      %v875 = vadd.f32 %v836, %v868
      %v876 = vadd.f32 %v837, %v868
      %v877 = vadd.f32 %v838, %v868
      %v878 = vadd.f32 %v839, %v868
      %v879 = vadd.f32 %v840, %v868
      %v880 = vadd.f32 %v841, %v868
      %v881 = vadd.f32 %v842, %v868
      %v882 = vadd.f32 %v843, %v868
      %v883 = vadd.f32 %v844, %v868
      %v884 = vadd.f32 %v845, %v868
      %v885 = vadd.f32 %v846, %v868
      %v886 = vadd.f32 %v847, %v868
      %v887 = vadd.f32 %v848, %v868
      %v888 = vadd.f32 %v849, %v868
      %v889 = vadd.f32 %v850, %v868
      %v890 = vadd.f32 %v851, %v868
      %v891 = vadd.f32 %v852, %v868
      %v892 = vadd.f32 %v853, %v868
      %v893 = vadd.f32 %v854, %v868
      %v894 = vadd.f32 %v855, %v868
      %v895 = vadd.f32 %v856, %v868
      %v896 = vadd.f32 %v857, %v868
      %v897 = vadd.f32 %v858, %v868
      %v898 = vadd.f32 %v859, %v868
      %v899 = vadd.f32 %v860, %v868
      %v900 = vadd.f32 %v861, %v868
      %v901 = vadd.f32 %v862, %v868
      %v902 = vmax.f32 %v870, 0.0
      %v903 = vmax.f32 %v871, 0.0
      %v904 = vmax.f32 %v872, 0.0
      %v905 = vmax.f32 %v873, 0.0
      %v906 = vmax.f32 %v874, 0.0
      %v907 = vmax.f32 %v875, 0.0
      %v908 = vmax.f32 %v876, 0.0
      %v909 = vmax.f32 %v877, 0.0
      %v910 = vmax.f32 %v878, 0.0
      %v911 = vmax.f32 %v879, 0.0
      %v912 = vmax.f32 %v880, 0.0
      %v913 = vmax.f32 %v881, 0.0
      %v914 = vmax.f32 %v882, 0.0
      %v915 = vmax.f32 %v883, 0.0
      %v916 = vmax.f32 %v884, 0.0
      %v917 = vmax.f32 %v885, 0.0
      %v918 = vmax.f32 %v886, 0.0
      %v919 = vmax.f32 %v887, 0.0
      %v920 = vmax.f32 %v888, 0.0
      %v921 = vmax.f32 %v889, 0.0
      %v922 = vmax.f32 %v890, 0.0
      %v923 = vmax.f32 %v891, 0.0
      %v924 = vmax.f32 %v892, 0.0
      %v925 = vmax.f32 %v893, 0.0
      %v926 = vmax.f32 %v894, 0.0
      %v927 = vmax.f32 %v895, 0.0
      %v928 = vmax.f32 %v896, 0.0
      %v929 = vmax.f32 %v897, 0.0
      %v930 = vmax.f32 %v898, 0.0
      %v931 = vmax.f32 %v899, 0.0
      %v932 = vmax.f32 %v900, 0.0
      %v933 = vmax.f32 %v901, 0.0
      %v966 = vcombine.high %v902, %v902
      %v968 = vunpack.c.l.s4 1983009808
      %v969 = vunpack.c.0.s8 %v968
      %v970 = vlaneseq
      %v971 = vshrl.u32 %v970, 7
      %v972 = vsub.s32 %v969, %v971
      %v973 = vrot.slane %v902, %v972
      %v975 = vunpack.c.l.s4 1983009808
      %v976 = vunpack.c.0.s8 %v975
      %v977 = vlaneseq
      %v978 = vshrl.u32 %v977, 7
      %v979 = vsub.s32 %v976, %v978
      %v980 = vrot.slane %v966, %v979
      %v981 = vcombine.high %v973, %v973
      %v982 = vcombine.high %v980, %v980
      %v983 = vcombine.high %v903, %v903
      %v985 = vunpack.c.l.s4 1983009808
      %v986 = vunpack.c.0.s8 %v985
      %v987 = vlaneseq
      %v988 = vshrl.u32 %v987, 7
      %v989 = vsub.s32 %v986, %v988
      %v990 = vrot.slane %v903, %v989
      %v992 = vunpack.c.l.s4 1983009808
      %v993 = vunpack.c.0.s8 %v992
      %v994 = vlaneseq
      %v995 = vshrl.u32 %v994, 7
      %v996 = vsub.s32 %v993, %v995
      %v997 = vrot.slane %v983, %v996
      %v998 = vcombine.high %v990, %v990
      %v999 = vcombine.high %v997, %v997
      %v1000 = vcombine.high %v904, %v904
      %v1002 = vunpack.c.l.s4 1983009808
      %v1003 = vunpack.c.0.s8 %v1002
      %v1004 = vlaneseq
      %v1005 = vshrl.u32 %v1004, 7
      %v1006 = vsub.s32 %v1003, %v1005
      %v1007 = vrot.slane %v904, %v1006
      %v1009 = vunpack.c.l.s4 1983009808
      %v1010 = vunpack.c.0.s8 %v1009
      %v1011 = vlaneseq
      %v1012 = vshrl.u32 %v1011, 7
      %v1013 = vsub.s32 %v1010, %v1012
      %v1014 = vrot.slane %v1000, %v1013
      %v1015 = vcombine.high %v1007, %v1007
      %v1016 = vcombine.high %v1014, %v1014
      %v1017 = vcombine.high %v905, %v905
      %v1019 = vunpack.c.l.s4 1983009808
      %v1020 = vunpack.c.0.s8 %v1019
      %v1021 = vlaneseq
      %v1022 = vshrl.u32 %v1021, 7
      %v1023 = vsub.s32 %v1020, %v1022
      %v1024 = vrot.slane %v905, %v1023
      %v1026 = vunpack.c.l.s4 1983009808
      %v1027 = vunpack.c.0.s8 %v1026
      %v1028 = vlaneseq
      %v1029 = vshrl.u32 %v1028, 7
      %v1030 = vsub.s32 %v1027, %v1029
      %v1031 = vrot.slane %v1017, %v1030
      %v1032 = vcombine.high %v1024, %v1024
      %v1033 = vcombine.high %v1031, %v1031
      %v1034 = vcombine.high %v906, %v906
      %v1036 = vunpack.c.l.s4 1983009808
      %v1037 = vunpack.c.0.s8 %v1036
      %v1038 = vlaneseq
      %v1039 = vshrl.u32 %v1038, 7
      %v1040 = vsub.s32 %v1037, %v1039
      %v1041 = vrot.slane %v906, %v1040
      %v1043 = vunpack.c.l.s4 1983009808
      %v1044 = vunpack.c.0.s8 %v1043
      %v1045 = vlaneseq
      %v1046 = vshrl.u32 %v1045, 7
      %v1047 = vsub.s32 %v1044, %v1046
      %v1048 = vrot.slane %v1034, %v1047
      %v1049 = vcombine.high %v1041, %v1041
      %v1050 = vcombine.high %v1048, %v1048
      %v1051 = vcombine.high %v907, %v907
      %v1053 = vunpack.c.l.s4 1983009808
      %v1054 = vunpack.c.0.s8 %v1053
      %v1055 = vlaneseq
      %v1056 = vshrl.u32 %v1055, 7
      %v1057 = vsub.s32 %v1054, %v1056
      %v1058 = vrot.slane %v907, %v1057
      %v1060 = vunpack.c.l.s4 1983009808
      %v1061 = vunpack.c.0.s8 %v1060
      %v1062 = vlaneseq
      %v1063 = vshrl.u32 %v1062, 7
      %v1064 = vsub.s32 %v1061, %v1063
      %v1065 = vrot.slane %v1051, %v1064
      %v1066 = vcombine.high %v1058, %v1058
      %v1067 = vcombine.high %v1065, %v1065
      %v1068 = vcombine.high %v908, %v908
      %v1070 = vunpack.c.l.s4 1983009808
      %v1071 = vunpack.c.0.s8 %v1070
      %v1072 = vlaneseq
      %v1073 = vshrl.u32 %v1072, 7
      %v1074 = vsub.s32 %v1071, %v1073
      %v1075 = vrot.slane %v908, %v1074
      %v1077 = vunpack.c.l.s4 1983009808
      %v1078 = vunpack.c.0.s8 %v1077
      %v1079 = vlaneseq
      %v1080 = vshrl.u32 %v1079, 7
      %v1081 = vsub.s32 %v1078, %v1080
      %v1082 = vrot.slane %v1068, %v1081
      %v1083 = vcombine.high %v1075, %v1075
      %v1084 = vcombine.high %v1082, %v1082
      %v1085 = vcombine.high %v909, %v909
      %v1087 = vunpack.c.l.s4 1983009808
      %v1088 = vunpack.c.0.s8 %v1087
      %v1089 = vlaneseq
      %v1090 = vshrl.u32 %v1089, 7
      %v1091 = vsub.s32 %v1088, %v1090
      %v1092 = vrot.slane %v909, %v1091
      %v1094 = vunpack.c.l.s4 1983009808
      %v1095 = vunpack.c.0.s8 %v1094
      %v1096 = vlaneseq
      %v1097 = vshrl.u32 %v1096, 7
      %v1098 = vsub.s32 %v1095, %v1097
      %v1099 = vrot.slane %v1085, %v1098
      %v1100 = vcombine.high %v1092, %v1092
      %v1101 = vcombine.high %v1099, %v1099
      %v1102 = vcombine.high %v910, %v910
      %v1104 = vunpack.c.l.s4 1983009808
      %v1105 = vunpack.c.0.s8 %v1104
      %v1106 = vlaneseq
      %v1107 = vshrl.u32 %v1106, 7
      %v1108 = vsub.s32 %v1105, %v1107
      %v1109 = vrot.slane %v910, %v1108
      %v1111 = vunpack.c.l.s4 1983009808
      %v1112 = vunpack.c.0.s8 %v1111
      %v1113 = vlaneseq
      %v1114 = vshrl.u32 %v1113, 7
      %v1115 = vsub.s32 %v1112, %v1114
      %v1116 = vrot.slane %v1102, %v1115
      %v1117 = vcombine.high %v1109, %v1109
      %v1118 = vcombine.high %v1116, %v1116
      %v1119 = vcombine.high %v911, %v911
      %v1121 = vunpack.c.l.s4 1983009808
      %v1122 = vunpack.c.0.s8 %v1121
      %v1123 = vlaneseq
      %v1124 = vshrl.u32 %v1123, 7
      %v1125 = vsub.s32 %v1122, %v1124
      %v1126 = vrot.slane %v911, %v1125
      %v1128 = vunpack.c.l.s4 1983009808
      %v1129 = vunpack.c.0.s8 %v1128
      %v1130 = vlaneseq
      %v1131 = vshrl.u32 %v1130, 7
      %v1132 = vsub.s32 %v1129, %v1131
      %v1133 = vrot.slane %v1119, %v1132
      %v1134 = vcombine.high %v1126, %v1126
      %v1135 = vcombine.high %v1133, %v1133
      %v1136 = vcombine.high %v912, %v912
      %v1138 = vunpack.c.l.s4 1983009808
      %v1139 = vunpack.c.0.s8 %v1138
      %v1140 = vlaneseq
      %v1141 = vshrl.u32 %v1140, 7
      %v1142 = vsub.s32 %v1139, %v1141
      %v1143 = vrot.slane %v912, %v1142
      %v1145 = vunpack.c.l.s4 1983009808
      %v1146 = vunpack.c.0.s8 %v1145
      %v1147 = vlaneseq
      %v1148 = vshrl.u32 %v1147, 7
      %v1149 = vsub.s32 %v1146, %v1148
      %v1150 = vrot.slane %v1136, %v1149
      %v1151 = vcombine.high %v1143, %v1143
      %v1152 = vcombine.high %v1150, %v1150
      %v1153 = vcombine.high %v913, %v913
      %v1155 = vunpack.c.l.s4 1983009808
      %v1156 = vunpack.c.0.s8 %v1155
      %v1157 = vlaneseq
      %v1158 = vshrl.u32 %v1157, 7
      %v1159 = vsub.s32 %v1156, %v1158
      %v1160 = vrot.slane %v913, %v1159
      %v1162 = vunpack.c.l.s4 1983009808
      %v1163 = vunpack.c.0.s8 %v1162
      %v1164 = vlaneseq
      %v1165 = vshrl.u32 %v1164, 7
      %v1166 = vsub.s32 %v1163, %v1165
      %v1167 = vrot.slane %v1153, %v1166
      %v1168 = vcombine.high %v1160, %v1160
      %v1169 = vcombine.high %v1167, %v1167
      %v1170 = vcombine.high %v914, %v914
      %v1172 = vunpack.c.l.s4 1983009808
      %v1173 = vunpack.c.0.s8 %v1172
      %v1174 = vlaneseq
      %v1175 = vshrl.u32 %v1174, 7
      %v1176 = vsub.s32 %v1173, %v1175
      %v1177 = vrot.slane %v914, %v1176
      %v1179 = vunpack.c.l.s4 1983009808
      %v1180 = vunpack.c.0.s8 %v1179
      %v1181 = vlaneseq
      %v1182 = vshrl.u32 %v1181, 7
      %v1183 = vsub.s32 %v1180, %v1182
      %v1184 = vrot.slane %v1170, %v1183
      %v1185 = vcombine.high %v1177, %v1177
      %v1186 = vcombine.high %v1184, %v1184
      %v1187 = vcombine.high %v915, %v915
      %v1189 = vunpack.c.l.s4 1983009808
      %v1190 = vunpack.c.0.s8 %v1189
      %v1191 = vlaneseq
      %v1192 = vshrl.u32 %v1191, 7
      %v1193 = vsub.s32 %v1190, %v1192
      %v1194 = vrot.slane %v915, %v1193
      %v1196 = vunpack.c.l.s4 1983009808
      %v1197 = vunpack.c.0.s8 %v1196
      %v1198 = vlaneseq
      %v1199 = vshrl.u32 %v1198, 7
      %v1200 = vsub.s32 %v1197, %v1199
      %v1201 = vrot.slane %v1187, %v1200
      %v1202 = vcombine.high %v1194, %v1194
      %v1203 = vcombine.high %v1201, %v1201
      %v1204 = vcombine.high %v916, %v916
      %v1206 = vunpack.c.l.s4 1983009808
      %v1207 = vunpack.c.0.s8 %v1206
      %v1208 = vlaneseq
      %v1209 = vshrl.u32 %v1208, 7
      %v1210 = vsub.s32 %v1207, %v1209
      %v1211 = vrot.slane %v916, %v1210
      %v1213 = vunpack.c.l.s4 1983009808
      %v1214 = vunpack.c.0.s8 %v1213
      %v1215 = vlaneseq
      %v1216 = vshrl.u32 %v1215, 7
      %v1217 = vsub.s32 %v1214, %v1216
      %v1218 = vrot.slane %v1204, %v1217
      %v1219 = vcombine.high %v1211, %v1211
      %v1220 = vcombine.high %v1218, %v1218
      %v1221 = vcombine.high %v917, %v917
      %v1223 = vunpack.c.l.s4 1983009808
      %v1224 = vunpack.c.0.s8 %v1223
      %v1225 = vlaneseq
      %v1226 = vshrl.u32 %v1225, 7
      %v1227 = vsub.s32 %v1224, %v1226
      %v1228 = vrot.slane %v917, %v1227
      %v1230 = vunpack.c.l.s4 1983009808
      %v1231 = vunpack.c.0.s8 %v1230
      %v1232 = vlaneseq
      %v1233 = vshrl.u32 %v1232, 7
      %v1234 = vsub.s32 %v1231, %v1233
      %v1235 = vrot.slane %v1221, %v1234
      %v1236 = vcombine.high %v1228, %v1228
      %v1237 = vcombine.high %v1235, %v1235
      %v1238 = vcombine.high %v918, %v918
      %v1240 = vunpack.c.l.s4 1983009808
      %v1241 = vunpack.c.0.s8 %v1240
      %v1242 = vlaneseq
      %v1243 = vshrl.u32 %v1242, 7
      %v1244 = vsub.s32 %v1241, %v1243
      %v1245 = vrot.slane %v918, %v1244
      %v1247 = vunpack.c.l.s4 1983009808
      %v1248 = vunpack.c.0.s8 %v1247
      %v1249 = vlaneseq
      %v1250 = vshrl.u32 %v1249, 7
      %v1251 = vsub.s32 %v1248, %v1250
      %v1252 = vrot.slane %v1238, %v1251
      %v1253 = vcombine.high %v1245, %v1245
      %v1254 = vcombine.high %v1252, %v1252
      %v1255 = vcombine.high %v919, %v919
      %v1257 = vunpack.c.l.s4 1983009808
      %v1258 = vunpack.c.0.s8 %v1257
      %v1259 = vlaneseq
      %v1260 = vshrl.u32 %v1259, 7
      %v1261 = vsub.s32 %v1258, %v1260
      %v1262 = vrot.slane %v919, %v1261
      %v1264 = vunpack.c.l.s4 1983009808
      %v1265 = vunpack.c.0.s8 %v1264
      %v1266 = vlaneseq
      %v1267 = vshrl.u32 %v1266, 7
      %v1268 = vsub.s32 %v1265, %v1267
      %v1269 = vrot.slane %v1255, %v1268
      %v1270 = vcombine.high %v1262, %v1262
      %v1271 = vcombine.high %v1269, %v1269
      %v1272 = vcombine.high %v920, %v920
      %v1274 = vunpack.c.l.s4 1983009808
      %v1275 = vunpack.c.0.s8 %v1274
      %v1276 = vlaneseq
      %v1277 = vshrl.u32 %v1276, 7
      %v1278 = vsub.s32 %v1275, %v1277
      %v1279 = vrot.slane %v920, %v1278
      %v1281 = vunpack.c.l.s4 1983009808
      %v1282 = vunpack.c.0.s8 %v1281
      %v1283 = vlaneseq
      %v1284 = vshrl.u32 %v1283, 7
      %v1285 = vsub.s32 %v1282, %v1284
      %v1286 = vrot.slane %v1272, %v1285
      %v1287 = vcombine.high %v1279, %v1279
      %v1288 = vcombine.high %v1286, %v1286
      %v1289 = vcombine.high %v921, %v921
      %v1291 = vunpack.c.l.s4 1983009808
      %v1292 = vunpack.c.0.s8 %v1291
      %v1293 = vlaneseq
      %v1294 = vshrl.u32 %v1293, 7
      %v1295 = vsub.s32 %v1292, %v1294
      %v1296 = vrot.slane %v921, %v1295
      %v1298 = vunpack.c.l.s4 1983009808
      %v1299 = vunpack.c.0.s8 %v1298
      %v1300 = vlaneseq
      %v1301 = vshrl.u32 %v1300, 7
      %v1302 = vsub.s32 %v1299, %v1301
      %v1303 = vrot.slane %v1289, %v1302
      %v1304 = vcombine.high %v1296, %v1296
      %v1305 = vcombine.high %v1303, %v1303
      %v1306 = vcombine.high %v922, %v922
      %v1308 = vunpack.c.l.s4 1983009808
      %v1309 = vunpack.c.0.s8 %v1308
      %v1310 = vlaneseq
      %v1311 = vshrl.u32 %v1310, 7
      %v1312 = vsub.s32 %v1309, %v1311
      %v1313 = vrot.slane %v922, %v1312
      %v1315 = vunpack.c.l.s4 1983009808
      %v1316 = vunpack.c.0.s8 %v1315
      %v1317 = vlaneseq
      %v1318 = vshrl.u32 %v1317, 7
      %v1319 = vsub.s32 %v1316, %v1318
      %v1320 = vrot.slane %v1306, %v1319
      %v1321 = vcombine.high %v1313, %v1313
      %v1322 = vcombine.high %v1320, %v1320
      %v1323 = vcombine.high %v923, %v923
      %v1325 = vunpack.c.l.s4 1983009808
      %v1326 = vunpack.c.0.s8 %v1325
      %v1327 = vlaneseq
      %v1328 = vshrl.u32 %v1327, 7
      %v1329 = vsub.s32 %v1326, %v1328
      %v1330 = vrot.slane %v923, %v1329
      %v1332 = vunpack.c.l.s4 1983009808
      %v1333 = vunpack.c.0.s8 %v1332
      %v1334 = vlaneseq
      %v1335 = vshrl.u32 %v1334, 7
      %v1336 = vsub.s32 %v1333, %v1335
      %v1337 = vrot.slane %v1323, %v1336
      %v1338 = vcombine.high %v1330, %v1330
      %v1339 = vcombine.high %v1337, %v1337
      %v1340 = vcombine.high %v924, %v924
      %v1342 = vunpack.c.l.s4 1983009808
      %v1343 = vunpack.c.0.s8 %v1342
      %v1344 = vlaneseq
      %v1345 = vshrl.u32 %v1344, 7
      %v1346 = vsub.s32 %v1343, %v1345
      %v1347 = vrot.slane %v924, %v1346
      %v1349 = vunpack.c.l.s4 1983009808
      %v1350 = vunpack.c.0.s8 %v1349
      %v1351 = vlaneseq
      %v1352 = vshrl.u32 %v1351, 7
      %v1353 = vsub.s32 %v1350, %v1352
      %v1354 = vrot.slane %v1340, %v1353
      %v1355 = vcombine.high %v1347, %v1347
      %v1356 = vcombine.high %v1354, %v1354
      %v1357 = vcombine.high %v925, %v925
      %v1359 = vunpack.c.l.s4 1983009808
      %v1360 = vunpack.c.0.s8 %v1359
      %v1361 = vlaneseq
      %v1362 = vshrl.u32 %v1361, 7
      %v1363 = vsub.s32 %v1360, %v1362
      %v1364 = vrot.slane %v925, %v1363
      %v1366 = vunpack.c.l.s4 1983009808
      %v1367 = vunpack.c.0.s8 %v1366
      %v1368 = vlaneseq
      %v1369 = vshrl.u32 %v1368, 7
      %v1370 = vsub.s32 %v1367, %v1369
      %v1371 = vrot.slane %v1357, %v1370
      %v1372 = vcombine.high %v1364, %v1364
      %v1373 = vcombine.high %v1371, %v1371
      %v1374 = vcombine.high %v926, %v926
      %v1376 = vunpack.c.l.s4 1983009808
      %v1377 = vunpack.c.0.s8 %v1376
      %v1378 = vlaneseq
      %v1379 = vshrl.u32 %v1378, 7
      %v1380 = vsub.s32 %v1377, %v1379
      %v1381 = vrot.slane %v926, %v1380
      %v1383 = vunpack.c.l.s4 1983009808
      %v1384 = vunpack.c.0.s8 %v1383
      %v1385 = vlaneseq
      %v1386 = vshrl.u32 %v1385, 7
      %v1387 = vsub.s32 %v1384, %v1386
      %v1388 = vrot.slane %v1374, %v1387
      %v1389 = vcombine.high %v1381, %v1381
      %v1390 = vcombine.high %v1388, %v1388
      %v1391 = vcombine.high %v927, %v927
      %v1393 = vunpack.c.l.s4 1983009808
      %v1394 = vunpack.c.0.s8 %v1393
      %v1395 = vlaneseq
      %v1396 = vshrl.u32 %v1395, 7
      %v1397 = vsub.s32 %v1394, %v1396
      %v1398 = vrot.slane %v927, %v1397
      %v1400 = vunpack.c.l.s4 1983009808
      %v1401 = vunpack.c.0.s8 %v1400
      %v1402 = vlaneseq
      %v1403 = vshrl.u32 %v1402, 7
      %v1404 = vsub.s32 %v1401, %v1403
      %v1405 = vrot.slane %v1391, %v1404
      %v1406 = vcombine.high %v1398, %v1398
      %v1407 = vcombine.high %v1405, %v1405
      %v1408 = vcombine.high %v928, %v928
      %v1410 = vunpack.c.l.s4 1983009808
      %v1411 = vunpack.c.0.s8 %v1410
      %v1412 = vlaneseq
      %v1413 = vshrl.u32 %v1412, 7
      %v1414 = vsub.s32 %v1411, %v1413
      %v1415 = vrot.slane %v928, %v1414
      %v1417 = vunpack.c.l.s4 1983009808
      %v1418 = vunpack.c.0.s8 %v1417
      %v1419 = vlaneseq
      %v1420 = vshrl.u32 %v1419, 7
      %v1421 = vsub.s32 %v1418, %v1420
      %v1422 = vrot.slane %v1408, %v1421
      %v1423 = vcombine.high %v1415, %v1415
      %v1424 = vcombine.high %v1422, %v1422
      %v1425 = vcombine.high %v929, %v929
      %v1427 = vunpack.c.l.s4 1983009808
      %v1428 = vunpack.c.0.s8 %v1427
      %v1429 = vlaneseq
      %v1430 = vshrl.u32 %v1429, 7
      %v1431 = vsub.s32 %v1428, %v1430
      %v1432 = vrot.slane %v929, %v1431
      %v1434 = vunpack.c.l.s4 1983009808
      %v1435 = vunpack.c.0.s8 %v1434
      %v1436 = vlaneseq
      %v1437 = vshrl.u32 %v1436, 7
      %v1438 = vsub.s32 %v1435, %v1437
      %v1439 = vrot.slane %v1425, %v1438
      %v1440 = vcombine.high %v1432, %v1432
      %v1441 = vcombine.high %v1439, %v1439
      %v1442 = vcombine.high %v930, %v930
      %v1444 = vunpack.c.l.s4 1983009808
      %v1445 = vunpack.c.0.s8 %v1444
      %v1446 = vlaneseq
      %v1447 = vshrl.u32 %v1446, 7
      %v1448 = vsub.s32 %v1445, %v1447
      %v1449 = vrot.slane %v930, %v1448
      %v1451 = vunpack.c.l.s4 1983009808
      %v1452 = vunpack.c.0.s8 %v1451
      %v1453 = vlaneseq
      %v1454 = vshrl.u32 %v1453, 7
      %v1455 = vsub.s32 %v1452, %v1454
      %v1456 = vrot.slane %v1442, %v1455
      %v1457 = vcombine.high %v1449, %v1449
      %v1458 = vcombine.high %v1456, %v1456
      %v1459 = vcombine.high %v931, %v931
      %v1461 = vunpack.c.l.s4 1983009808
      %v1462 = vunpack.c.0.s8 %v1461
      %v1463 = vlaneseq
      %v1464 = vshrl.u32 %v1463, 7
      %v1465 = vsub.s32 %v1462, %v1464
      %v1466 = vrot.slane %v931, %v1465
      %v1468 = vunpack.c.l.s4 1983009808
      %v1469 = vunpack.c.0.s8 %v1468
      %v1470 = vlaneseq
      %v1471 = vshrl.u32 %v1470, 7
      %v1472 = vsub.s32 %v1469, %v1471
      %v1473 = vrot.slane %v1459, %v1472
      %v1474 = vcombine.high %v1466, %v1466
      %v1475 = vcombine.high %v1473, %v1473
      %v1476 = vcombine.high %v932, %v932
      %v1478 = vunpack.c.l.s4 1983009808
      %v1479 = vunpack.c.0.s8 %v1478
      %v1480 = vlaneseq
      %v1481 = vshrl.u32 %v1480, 7
      %v1482 = vsub.s32 %v1479, %v1481
      %v1483 = vrot.slane %v932, %v1482
      %v1485 = vunpack.c.l.s4 1983009808
      %v1486 = vunpack.c.0.s8 %v1485
      %v1487 = vlaneseq
      %v1488 = vshrl.u32 %v1487, 7
      %v1489 = vsub.s32 %v1486, %v1488
      %v1490 = vrot.slane %v1476, %v1489
      %v1491 = vcombine.high %v1483, %v1483
      %v1492 = vcombine.high %v1490, %v1490
      %v1493 = vcombine.high %v933, %v933
      %v1495 = vunpack.c.l.s4 1983009808
      %v1496 = vunpack.c.0.s8 %v1495
      %v1497 = vlaneseq
      %v1498 = vshrl.u32 %v1497, 7
      %v1499 = vsub.s32 %v1496, %v1498
      %v1500 = vrot.slane %v933, %v1499
      %v1502 = vunpack.c.l.s4 1983009808
      %v1503 = vunpack.c.0.s8 %v1502
      %v1504 = vlaneseq
      %v1505 = vshrl.u32 %v1504, 7
      %v1506 = vsub.s32 %v1503, %v1505
      %v1507 = vrot.slane %v1493, %v1506
      %v1508 = vcombine.high %v1500, %v1500
      %v1509 = vcombine.high %v1507, %v1507
      %v1638 = vmax.f32 %v973, %v1007
      %v1639 = vmax.f32 %v981, %v1015
      %v1640 = vmax.f32 %v980, %v1014
      %v1641 = vmax.f32 %v982, %v1016
      %v1642 = vmax.f32 %v990, %v1024
      %v1643 = vmax.f32 %v998, %v1032
      %v1644 = vmax.f32 %v997, %v1031
      %v1645 = vmax.f32 %v999, %v1033
      %v1646 = vmax.f32 %v1041, %v1075
      %v1647 = vmax.f32 %v1049, %v1083
      %v1648 = vmax.f32 %v1048, %v1082
      %v1649 = vmax.f32 %v1050, %v1084
      %v1650 = vmax.f32 %v1058, %v1092
      %v1651 = vmax.f32 %v1066, %v1100
      %v1652 = vmax.f32 %v1065, %v1099
      %v1653 = vmax.f32 %v1067, %v1101
      %v1654 = vmax.f32 %v1109, %v1143
      %v1655 = vmax.f32 %v1117, %v1151
      %v1656 = vmax.f32 %v1116, %v1150
      %v1657 = vmax.f32 %v1118, %v1152
      %v1658 = vmax.f32 %v1126, %v1160
      %v1659 = vmax.f32 %v1134, %v1168
      %v1660 = vmax.f32 %v1133, %v1167
      %v1661 = vmax.f32 %v1135, %v1169
      %v1662 = vmax.f32 %v1177, %v1211
      %v1663 = vmax.f32 %v1185, %v1219
      %v1664 = vmax.f32 %v1184, %v1218
      %v1665 = vmax.f32 %v1186, %v1220
      %v1666 = vmax.f32 %v1194, %v1228
      %v1667 = vmax.f32 %v1202, %v1236
      %v1668 = vmax.f32 %v1201, %v1235
      %v1669 = vmax.f32 %v1203, %v1237
      %v1670 = vmax.f32 %v1245, %v1279
      %v1671 = vmax.f32 %v1253, %v1287
      %v1672 = vmax.f32 %v1252, %v1286
      %v1673 = vmax.f32 %v1254, %v1288
      %v1674 = vmax.f32 %v1262, %v1296
      %v1675 = vmax.f32 %v1270, %v1304
      %v1676 = vmax.f32 %v1269, %v1303
      %v1677 = vmax.f32 %v1271, %v1305
      %v1678 = vmax.f32 %v1313, %v1347
      %v1679 = vmax.f32 %v1321, %v1355
      %v1680 = vmax.f32 %v1320, %v1354
      %v1681 = vmax.f32 %v1322, %v1356
      %v1682 = vmax.f32 %v1330, %v1364
      %v1683 = vmax.f32 %v1338, %v1372
      %v1684 = vmax.f32 %v1337, %v1371
      %v1685 = vmax.f32 %v1339, %v1373
      %v1686 = vmax.f32 %v1381, %v1415
      %v1687 = vmax.f32 %v1389, %v1423
      %v1688 = vmax.f32 %v1388, %v1422
      %v1689 = vmax.f32 %v1390, %v1424
      %v1690 = vmax.f32 %v1398, %v1432
      %v1691 = vmax.f32 %v1406, %v1440
      %v1692 = vmax.f32 %v1405, %v1439
      %v1693 = vmax.f32 %v1407, %v1441
      %v1694 = vmax.f32 %v1449, %v1483
      %v1695 = vmax.f32 %v1457, %v1491
      %v1696 = vmax.f32 %v1456, %v1490
      %v1697 = vmax.f32 %v1458, %v1492
      %v1698 = vmax.f32 %v1466, %v1500
      %v1699 = vmax.f32 %v1474, %v1508
      %v1700 = vmax.f32 %v1473, %v1507
      %v1701 = vmax.f32 %v1475, %v1509
      %v1766 = vrot.slane %v1638, 7
      %v1767 = vrot.slane %v1766, 2
      %v1768 = vrot.slane %v1639, 7
      %v1769 = vrot.slane %v1768, 2
      %v1770 = vrot.slane %v1640, 7
      %v1771 = vrot.slane %v1770, 2
      %v1772 = vrot.slane %v1641, 7
      %v1773 = vrot.slane %v1772, 2
      %v1774 = vrot.slane %v1642, 7
      %v1775 = vrot.slane %v1774, 2
      %v1776 = vrot.slane %v1643, 7
      %v1777 = vrot.slane %v1776, 2
      %v1778 = vrot.slane %v1644, 7
      %v1779 = vrot.slane %v1778, 2
      %v1780 = vrot.slane %v1645, 7
      %v1781 = vrot.slane %v1780, 2
      %v1782 = vrot.slane %v1646, 7
      %v1783 = vrot.slane %v1782, 2
      %v1784 = vrot.slane %v1647, 7
      %v1785 = vrot.slane %v1784, 2
      %v1786 = vrot.slane %v1648, 7
      %v1787 = vrot.slane %v1786, 2
      %v1788 = vrot.slane %v1649, 7
      %v1789 = vrot.slane %v1788, 2
      %v1790 = vrot.slane %v1650, 7
      %v1791 = vrot.slane %v1790, 2
      %v1792 = vrot.slane %v1651, 7
      %v1793 = vrot.slane %v1792, 2
      %v1794 = vrot.slane %v1652, 7
      %v1795 = vrot.slane %v1794, 2
      %v1796 = vrot.slane %v1653, 7
      %v1797 = vrot.slane %v1796, 2
      %v1798 = vrot.slane %v1654, 7
      %v1799 = vrot.slane %v1798, 2
      %v1800 = vrot.slane %v1655, 7
      %v1801 = vrot.slane %v1800, 2
      %v1802 = vrot.slane %v1656, 7
      %v1803 = vrot.slane %v1802, 2
      %v1804 = vrot.slane %v1657, 7
      %v1805 = vrot.slane %v1804, 2
      %v1806 = vrot.slane %v1658, 7
      %v1807 = vrot.slane %v1806, 2
      %v1808 = vrot.slane %v1659, 7
      %v1809 = vrot.slane %v1808, 2
      %v1810 = vrot.slane %v1660, 7
      %v1811 = vrot.slane %v1810, 2
      %v1812 = vrot.slane %v1661, 7
      %v1813 = vrot.slane %v1812, 2
      %v1814 = vrot.slane %v1662, 7
      %v1815 = vrot.slane %v1814, 2
      %v1816 = vrot.slane %v1663, 7
      %v1817 = vrot.slane %v1816, 2
      %v1818 = vrot.slane %v1664, 7
      %v1819 = vrot.slane %v1818, 2
      %v1820 = vrot.slane %v1665, 7
      %v1821 = vrot.slane %v1820, 2
      %v1822 = vrot.slane %v1666, 7
      %v1823 = vrot.slane %v1822, 2
      %v1824 = vrot.slane %v1667, 7
      %v1825 = vrot.slane %v1824, 2
      %v1826 = vrot.slane %v1668, 7
      %v1827 = vrot.slane %v1826, 2
      %v1828 = vrot.slane %v1669, 7
      %v1829 = vrot.slane %v1828, 2
      %v1830 = vrot.slane %v1670, 7
      %v1831 = vrot.slane %v1830, 2
      %v1832 = vrot.slane %v1671, 7
      %v1833 = vrot.slane %v1832, 2
      %v1834 = vrot.slane %v1672, 7
      %v1835 = vrot.slane %v1834, 2
      %v1836 = vrot.slane %v1673, 7
      %v1837 = vrot.slane %v1836, 2
      %v1838 = vrot.slane %v1674, 7
      %v1839 = vrot.slane %v1838, 2
      %v1840 = vrot.slane %v1675, 7
      %v1841 = vrot.slane %v1840, 2
      %v1842 = vrot.slane %v1676, 7
      %v1843 = vrot.slane %v1842, 2
      %v1844 = vrot.slane %v1677, 7
      %v1845 = vrot.slane %v1844, 2
      %v1846 = vrot.slane %v1678, 7
      %v1847 = vrot.slane %v1846, 2
      %v1848 = vrot.slane %v1679, 7
      %v1849 = vrot.slane %v1848, 2
      %v1850 = vrot.slane %v1680, 7
      %v1851 = vrot.slane %v1850, 2
      %v1852 = vrot.slane %v1681, 7
      %v1853 = vrot.slane %v1852, 2
      %v1854 = vrot.slane %v1682, 7
      %v1855 = vrot.slane %v1854, 2
      %v1856 = vrot.slane %v1683, 7
      %v1857 = vrot.slane %v1856, 2
      %v1858 = vrot.slane %v1684, 7
      %v1859 = vrot.slane %v1858, 2
      %v1860 = vrot.slane %v1685, 7
      %v1861 = vrot.slane %v1860, 2
      %v1862 = vrot.slane %v1686, 7
      %v1863 = vrot.slane %v1862, 2
      %v1864 = vrot.slane %v1687, 7
      %v1865 = vrot.slane %v1864, 2
      %v1866 = vrot.slane %v1688, 7
      %v1867 = vrot.slane %v1866, 2
      %v1868 = vrot.slane %v1689, 7
      %v1869 = vrot.slane %v1868, 2
      %v1870 = vrot.slane %v1690, 7
      %v1871 = vrot.slane %v1870, 2
      %v1872 = vrot.slane %v1691, 7
      %v1873 = vrot.slane %v1872, 2
      %v1874 = vrot.slane %v1692, 7
      %v1875 = vrot.slane %v1874, 2
      %v1876 = vrot.slane %v1693, 7
      %v1877 = vrot.slane %v1876, 2
      %v1878 = vrot.slane %v1694, 7
      %v1879 = vrot.slane %v1878, 2
      %v1880 = vrot.slane %v1695, 7
      %v1881 = vrot.slane %v1880, 2
      %v1882 = vrot.slane %v1696, 7
      %v1883 = vrot.slane %v1882, 2
      %v1884 = vrot.slane %v1697, 7
      %v1885 = vrot.slane %v1884, 2
      %v1886 = vrot.slane %v1698, 7
      %v1887 = vrot.slane %v1886, 2
      %v1888 = vrot.slane %v1699, 7
      %v1889 = vrot.slane %v1888, 2
      %v1890 = vrot.slane %v1700, 7
      %v1891 = vrot.slane %v1890, 2
      %v1892 = vrot.slane %v1701, 7
      %v1893 = vrot.slane %v1892, 2
      %v1958 = vmax.f32 %v1638, %v1767
      %v1959 = vmax.f32 %v1639, %v1769
      %v1960 = vmax.f32 %v1640, %v1771
      %v1961 = vmax.f32 %v1641, %v1773
      %v1962 = vmax.f32 %v1642, %v1775
      %v1963 = vmax.f32 %v1643, %v1777
      %v1964 = vmax.f32 %v1644, %v1779
      %v1965 = vmax.f32 %v1645, %v1781
      %v1966 = vmax.f32 %v1646, %v1783
      %v1967 = vmax.f32 %v1647, %v1785
      %v1968 = vmax.f32 %v1648, %v1787
      %v1969 = vmax.f32 %v1649, %v1789
      %v1970 = vmax.f32 %v1650, %v1791
      %v1971 = vmax.f32 %v1651, %v1793
      %v1972 = vmax.f32 %v1652, %v1795
      %v1973 = vmax.f32 %v1653, %v1797
      %v1974 = vmax.f32 %v1654, %v1799
      %v1975 = vmax.f32 %v1655, %v1801
      %v1976 = vmax.f32 %v1656, %v1803
      %v1977 = vmax.f32 %v1657, %v1805
      %v1978 = vmax.f32 %v1658, %v1807
      %v1979 = vmax.f32 %v1659, %v1809
      %v1980 = vmax.f32 %v1660, %v1811
      %v1981 = vmax.f32 %v1661, %v1813
      %v1982 = vmax.f32 %v1662, %v1815
      %v1983 = vmax.f32 %v1663, %v1817
      %v1984 = vmax.f32 %v1664, %v1819
      %v1985 = vmax.f32 %v1665, %v1821
      %v1986 = vmax.f32 %v1666, %v1823
      %v1987 = vmax.f32 %v1667, %v1825
      %v1988 = vmax.f32 %v1668, %v1827
      %v1989 = vmax.f32 %v1669, %v1829
      %v1990 = vmax.f32 %v1670, %v1831
      %v1991 = vmax.f32 %v1671, %v1833
      %v1992 = vmax.f32 %v1672, %v1835
      %v1993 = vmax.f32 %v1673, %v1837
      %v1994 = vmax.f32 %v1674, %v1839
      %v1995 = vmax.f32 %v1675, %v1841
      %v1996 = vmax.f32 %v1676, %v1843
      %v1997 = vmax.f32 %v1677, %v1845
      %v1998 = vmax.f32 %v1678, %v1847
      %v1999 = vmax.f32 %v1679, %v1849
      %v2000 = vmax.f32 %v1680, %v1851
      %v2001 = vmax.f32 %v1681, %v1853
      %v2002 = vmax.f32 %v1682, %v1855
      %v2003 = vmax.f32 %v1683, %v1857
      %v2004 = vmax.f32 %v1684, %v1859
      %v2005 = vmax.f32 %v1685, %v1861
      %v2006 = vmax.f32 %v1686, %v1863
      %v2007 = vmax.f32 %v1687, %v1865
      %v2008 = vmax.f32 %v1688, %v1867
      %v2009 = vmax.f32 %v1689, %v1869
      %v2010 = vmax.f32 %v1690, %v1871
      %v2011 = vmax.f32 %v1691, %v1873
      %v2012 = vmax.f32 %v1692, %v1875
      %v2013 = vmax.f32 %v1693, %v1877
      %v2014 = vmax.f32 %v1694, %v1879
      %v2015 = vmax.f32 %v1695, %v1881
      %v2016 = vmax.f32 %v1696, %v1883
      %v2017 = vmax.f32 %v1697, %v1885
      %v2018 = vmax.f32 %v1698, %v1887
      %v2019 = vmax.f32 %v1699, %v1889
      %v2020 = vmax.f32 %v1700, %v1891
      %v2021 = vmax.f32 %v1701, %v1893
      %v2022 = vld [vmem:[%s4] sm:$0xff]
      %v2023 = vld [vmem:[%s4 + $0x8] sm:$0xff]
      %v2024 = vld [vmem:[%s4 + $0x10] sm:$0xff]
      %v2025 = vld [vmem:[%s4 + $0x18] sm:$0xff]
      %v2026 = vld [vmem:[%s4 + $0x20] sm:$0xff]
      %v2027 = vld [vmem:[%s4 + $0x28] sm:$0xff]
      %v2028 = vld [vmem:[%s4 + $0x30] sm:$0xff]
      %v2029 = vld [vmem:[%s4 + $0x38] sm:$0xff]
      %v2030 = vld [vmem:[%s4 + $0x40] sm:$0xff]
      %v2031 = vld [vmem:[%s4 + $0x48] sm:$0xff]
      %v2032 = vld [vmem:[%s4 + $0x50] sm:$0xff]
      %v2033 = vld [vmem:[%s4 + $0x58] sm:$0xff]
      %v2034 = vld [vmem:[%s4 + $0x60] sm:$0xf]
      %v2099 = vlaneseq
      %v2100 = vshrl.u32 %v2099, 7
      %v2101 = vsub.s32 0, %v2100
      %v2102 = vrot.slane %v1958, %v2101
      %v2103 = vlaneseq
      %v2104 = vshrl.u32 %v2103, 7
      %v2105 = vsub.s32 0, %v2104
      %v2106 = vrot.slane %v1959, %v2105
      %v2107 = vlaneseq
      %v2108 = vshrl.u32 %v2107, 7
      %v2109 = vsub.s32 0, %v2108
      %v2110 = vrot.slane %v1960, %v2109
      %v2111 = vlaneseq
      %v2112 = vshrl.u32 %v2111, 7
      %v2113 = vsub.s32 0, %v2112
      %v2114 = vrot.slane %v1961, %v2113
      %v2115 = vlaneseq
      %v2116 = vshrl.u32 %v2115, 7
      %v2117 = vsub.s32 0, %v2116
      %v2118 = vrot.slane %v1962, %v2117
      %v2119 = vlaneseq
      %v2120 = vshrl.u32 %v2119, 7
      %v2121 = vsub.s32 0, %v2120
      %v2122 = vrot.slane %v1963, %v2121
      %v2123 = vlaneseq
      %v2124 = vshrl.u32 %v2123, 7
      %v2125 = vsub.s32 0, %v2124
      %v2126 = vrot.slane %v1964, %v2125
      %v2127 = vlaneseq
      %v2128 = vshrl.u32 %v2127, 7
      %v2129 = vsub.s32 0, %v2128
      %v2130 = vrot.slane %v1965, %v2129
      %v2131 = vlaneseq
      %v2132 = vshrl.u32 %v2131, 7
      %v2133 = vsub.s32 0, %v2132
      %v2134 = vrot.slane %v1966, %v2133
      %v2135 = vlaneseq
      %v2136 = vshrl.u32 %v2135, 7
      %v2137 = vsub.s32 0, %v2136
      %v2138 = vrot.slane %v1967, %v2137
      %v2139 = vlaneseq
      %v2140 = vshrl.u32 %v2139, 7
      %v2141 = vsub.s32 0, %v2140
      %v2142 = vrot.slane %v1968, %v2141
      %v2143 = vlaneseq
      %v2144 = vshrl.u32 %v2143, 7
      %v2145 = vsub.s32 0, %v2144
      %v2146 = vrot.slane %v1969, %v2145
      %v2147 = vlaneseq
      %v2148 = vshrl.u32 %v2147, 7
      %v2149 = vsub.s32 0, %v2148
      %v2150 = vrot.slane %v1970, %v2149
      %v2151 = vlaneseq
      %v2152 = vshrl.u32 %v2151, 7
      %v2153 = vsub.s32 0, %v2152
      %v2154 = vrot.slane %v1971, %v2153
      %v2155 = vlaneseq
      %v2156 = vshrl.u32 %v2155, 7
      %v2157 = vsub.s32 0, %v2156
      %v2158 = vrot.slane %v1972, %v2157
      %v2159 = vlaneseq
      %v2160 = vshrl.u32 %v2159, 7
      %v2161 = vsub.s32 0, %v2160
      %v2162 = vrot.slane %v1973, %v2161
      %v2163 = vlaneseq
      %v2164 = vshrl.u32 %v2163, 7
      %v2165 = vsub.s32 0, %v2164
      %v2166 = vrot.slane %v1974, %v2165
      %v2167 = vlaneseq
      %v2168 = vshrl.u32 %v2167, 7
      %v2169 = vsub.s32 0, %v2168
      %v2170 = vrot.slane %v1975, %v2169
      %v2171 = vlaneseq
      %v2172 = vshrl.u32 %v2171, 7
      %v2173 = vsub.s32 0, %v2172
      %v2174 = vrot.slane %v1976, %v2173
      %v2175 = vlaneseq
      %v2176 = vshrl.u32 %v2175, 7
      %v2177 = vsub.s32 0, %v2176
      %v2178 = vrot.slane %v1977, %v2177
      %v2179 = vlaneseq
      %v2180 = vshrl.u32 %v2179, 7
      %v2181 = vsub.s32 0, %v2180
      %v2182 = vrot.slane %v1978, %v2181
      %v2183 = vlaneseq
      %v2184 = vshrl.u32 %v2183, 7
      %v2185 = vsub.s32 0, %v2184
      %v2186 = vrot.slane %v1979, %v2185
      %v2187 = vlaneseq
      %v2188 = vshrl.u32 %v2187, 7
      %v2189 = vsub.s32 0, %v2188
      %v2190 = vrot.slane %v1980, %v2189
      %v2191 = vlaneseq
      %v2192 = vshrl.u32 %v2191, 7
      %v2193 = vsub.s32 0, %v2192
      %v2194 = vrot.slane %v1981, %v2193
      %v2195 = vlaneseq
      %v2196 = vshrl.u32 %v2195, 7
      %v2197 = vsub.s32 0, %v2196
      %v2198 = vrot.slane %v1982, %v2197
      %v2199 = vlaneseq
      %v2200 = vshrl.u32 %v2199, 7
      %v2201 = vsub.s32 0, %v2200
      %v2202 = vrot.slane %v1983, %v2201
      %v2203 = vlaneseq
      %v2204 = vshrl.u32 %v2203, 7
      %v2205 = vsub.s32 0, %v2204
      %v2206 = vrot.slane %v1984, %v2205
      %v2207 = vlaneseq
      %v2208 = vshrl.u32 %v2207, 7
      %v2209 = vsub.s32 0, %v2208
      %v2210 = vrot.slane %v1985, %v2209
      %v2211 = vlaneseq
      %v2212 = vshrl.u32 %v2211, 7
      %v2213 = vsub.s32 0, %v2212
      %v2214 = vrot.slane %v1986, %v2213
      %v2215 = vlaneseq
      %v2216 = vshrl.u32 %v2215, 7
      %v2217 = vsub.s32 0, %v2216
      %v2218 = vrot.slane %v1987, %v2217
      %v2219 = vlaneseq
      %v2220 = vshrl.u32 %v2219, 7
      %v2221 = vsub.s32 0, %v2220
      %v2222 = vrot.slane %v1988, %v2221
      %v2223 = vlaneseq
      %v2224 = vshrl.u32 %v2223, 7
      %v2225 = vsub.s32 0, %v2224
      %v2226 = vrot.slane %v1989, %v2225
      %v2227 = vlaneseq
      %v2228 = vshrl.u32 %v2227, 7
      %v2229 = vsub.s32 0, %v2228
      %v2230 = vrot.slane %v1990, %v2229
      %v2231 = vlaneseq
      %v2232 = vshrl.u32 %v2231, 7
      %v2233 = vsub.s32 0, %v2232
      %v2234 = vrot.slane %v1991, %v2233
      %v2235 = vlaneseq
      %v2236 = vshrl.u32 %v2235, 7
      %v2237 = vsub.s32 0, %v2236
      %v2238 = vrot.slane %v1992, %v2237
      %v2239 = vlaneseq
      %v2240 = vshrl.u32 %v2239, 7
      %v2241 = vsub.s32 0, %v2240
      %v2242 = vrot.slane %v1993, %v2241
      %v2243 = vlaneseq
      %v2244 = vshrl.u32 %v2243, 7
      %v2245 = vsub.s32 0, %v2244
      %v2246 = vrot.slane %v1994, %v2245
      %v2247 = vlaneseq
      %v2248 = vshrl.u32 %v2247, 7
      %v2249 = vsub.s32 0, %v2248
      %v2250 = vrot.slane %v1995, %v2249
      %v2251 = vlaneseq
      %v2252 = vshrl.u32 %v2251, 7
      %v2253 = vsub.s32 0, %v2252
      %v2254 = vrot.slane %v1996, %v2253
      %v2255 = vlaneseq
      %v2256 = vshrl.u32 %v2255, 7
      %v2257 = vsub.s32 0, %v2256
      %v2258 = vrot.slane %v1997, %v2257
      %v2259 = vlaneseq
      %v2260 = vshrl.u32 %v2259, 7
      %v2261 = vsub.s32 0, %v2260
      %v2262 = vrot.slane %v1998, %v2261
      %v2263 = vlaneseq
      %v2264 = vshrl.u32 %v2263, 7
      %v2265 = vsub.s32 0, %v2264
      %v2266 = vrot.slane %v1999, %v2265
      %v2267 = vlaneseq
      %v2268 = vshrl.u32 %v2267, 7
      %v2269 = vsub.s32 0, %v2268
      %v2270 = vrot.slane %v2000, %v2269
      %v2271 = vlaneseq
      %v2272 = vshrl.u32 %v2271, 7
      %v2273 = vsub.s32 0, %v2272
      %v2274 = vrot.slane %v2001, %v2273
      %v2275 = vlaneseq
      %v2276 = vshrl.u32 %v2275, 7
      %v2277 = vsub.s32 0, %v2276
      %v2278 = vrot.slane %v2002, %v2277
      %v2279 = vlaneseq
      %v2280 = vshrl.u32 %v2279, 7
      %v2281 = vsub.s32 0, %v2280
      %v2282 = vrot.slane %v2003, %v2281
      %v2283 = vlaneseq
      %v2284 = vshrl.u32 %v2283, 7
      %v2285 = vsub.s32 0, %v2284
      %v2286 = vrot.slane %v2004, %v2285
      %v2287 = vlaneseq
      %v2288 = vshrl.u32 %v2287, 7
      %v2289 = vsub.s32 0, %v2288
      %v2290 = vrot.slane %v2005, %v2289
      %v2291 = vlaneseq
      %v2292 = vshrl.u32 %v2291, 7
      %v2293 = vsub.s32 0, %v2292
      %v2294 = vrot.slane %v2006, %v2293
      %v2295 = vlaneseq
      %v2296 = vshrl.u32 %v2295, 7
      %v2297 = vsub.s32 0, %v2296
      %v2298 = vrot.slane %v2007, %v2297
      %v2299 = vlaneseq
      %v2300 = vshrl.u32 %v2299, 7
      %v2301 = vsub.s32 0, %v2300
      %v2302 = vrot.slane %v2008, %v2301
      %v2303 = vlaneseq
      %v2304 = vshrl.u32 %v2303, 7
      %v2305 = vsub.s32 0, %v2304
      %v2306 = vrot.slane %v2009, %v2305
      %v2307 = vlaneseq
      %v2308 = vshrl.u32 %v2307, 7
      %v2309 = vsub.s32 0, %v2308
      %v2310 = vrot.slane %v2010, %v2309
      %v2311 = vlaneseq
      %v2312 = vshrl.u32 %v2311, 7
      %v2313 = vsub.s32 0, %v2312
      %v2314 = vrot.slane %v2011, %v2313
      %v2315 = vlaneseq
      %v2316 = vshrl.u32 %v2315, 7
      %v2317 = vsub.s32 0, %v2316
      %v2318 = vrot.slane %v2012, %v2317
      %v2319 = vlaneseq
      %v2320 = vshrl.u32 %v2319, 7
      %v2321 = vsub.s32 0, %v2320
      %v2322 = vrot.slane %v2013, %v2321
      %v2323 = vlaneseq
      %v2324 = vshrl.u32 %v2323, 7
      %v2325 = vsub.s32 0, %v2324
      %v2326 = vrot.slane %v2014, %v2325
      %v2327 = vlaneseq
      %v2328 = vshrl.u32 %v2327, 7
      %v2329 = vsub.s32 0, %v2328
      %v2330 = vrot.slane %v2015, %v2329
      %v2331 = vlaneseq
      %v2332 = vshrl.u32 %v2331, 7
      %v2333 = vsub.s32 0, %v2332
      %v2334 = vrot.slane %v2016, %v2333
      %v2335 = vlaneseq
      %v2336 = vshrl.u32 %v2335, 7
      %v2337 = vsub.s32 0, %v2336
      %v2338 = vrot.slane %v2017, %v2337
      %v2339 = vlaneseq
      %v2340 = vshrl.u32 %v2339, 7
      %v2341 = vsub.s32 0, %v2340
      %v2342 = vrot.slane %v2018, %v2341
      %v2343 = vlaneseq
      %v2344 = vshrl.u32 %v2343, 7
      %v2345 = vsub.s32 0, %v2344
      %v2346 = vrot.slane %v2019, %v2345
      %v2347 = vlaneseq
      %v2348 = vshrl.u32 %v2347, 7
      %v2349 = vsub.s32 0, %v2348
      %v2350 = vrot.slane %v2020, %v2349
      %v2351 = vlaneseq
      %v2352 = vshrl.u32 %v2351, 7
      %v2353 = vsub.s32 0, %v2352
      %v2354 = vrot.slane %v2021, %v2353
      %vm2355 = vcmask 1041409
      %v2356 = vsel %vm2355, %v2106, %v2102
      %vm2357 = vcmask 1042434
      %v2358 = vsel %vm2357, %v2110, %v2356
      %vm2359 = vcmask 1043459
      %v2360 = vsel %vm2359, %v2114, %v2358
      %vm2361 = vcmask 1044484
      %v2362 = vsel %vm2361, %v2118, %v2360
      %vm2363 = vcmask 1045509
      %v2364 = vsel %vm2363, %v2122, %v2362
      %vm2365 = vcmask 1046534
      %v2366 = vsel %vm2365, %v2126, %v2364
      %vm2367 = vcmask 1047559
      %v2368 = vsel %vm2367, %v2130, %v2366
      %v2369 = vsel %vm2355, %v2138, %v2134
      %v2370 = vsel %vm2357, %v2142, %v2369
      %v2371 = vsel %vm2359, %v2146, %v2370
      %v2372 = vsel %vm2361, %v2150, %v2371
      %v2373 = vsel %vm2363, %v2154, %v2372
      %v2374 = vsel %vm2365, %v2158, %v2373
      %v2375 = vsel %vm2367, %v2162, %v2374
      %v2376 = vsel %vm2355, %v2170, %v2166
      %v2377 = vsel %vm2357, %v2174, %v2376
      %v2378 = vsel %vm2359, %v2178, %v2377
      %v2379 = vsel %vm2361, %v2182, %v2378
      %v2380 = vsel %vm2363, %v2186, %v2379
      %v2381 = vsel %vm2365, %v2190, %v2380
      %v2382 = vsel %vm2367, %v2194, %v2381
      %v2383 = vsel %vm2355, %v2202, %v2198
      %v2384 = vsel %vm2357, %v2206, %v2383
      %v2385 = vsel %vm2359, %v2210, %v2384
      %v2386 = vsel %vm2361, %v2214, %v2385
      %v2387 = vsel %vm2363, %v2218, %v2386
      %v2388 = vsel %vm2365, %v2222, %v2387
      %v2389 = vsel %vm2367, %v2226, %v2388
      %v2390 = vsel %vm2355, %v2234, %v2230
      %v2391 = vsel %vm2357, %v2238, %v2390
      %v2392 = vsel %vm2359, %v2242, %v2391
      %v2393 = vsel %vm2361, %v2246, %v2392
      %v2394 = vsel %vm2363, %v2250, %v2393
      %v2395 = vsel %vm2365, %v2254, %v2394
      %v2396 = vsel %vm2367, %v2258, %v2395
      %v2397 = vsel %vm2355, %v2266, %v2262
      %v2398 = vsel %vm2357, %v2270, %v2397
      %v2399 = vsel %vm2359, %v2274, %v2398
      %v2400 = vsel %vm2361, %v2278, %v2399
      %v2401 = vsel %vm2363, %v2282, %v2400
      %v2402 = vsel %vm2365, %v2286, %v2401
      %v2403 = vsel %vm2367, %v2290, %v2402
      %v2404 = vsel %vm2355, %v2298, %v2294
      %v2405 = vsel %vm2357, %v2302, %v2404
      %v2406 = vsel %vm2359, %v2306, %v2405
      %v2407 = vsel %vm2361, %v2310, %v2406
      %v2408 = vsel %vm2363, %v2314, %v2407
      %v2409 = vsel %vm2365, %v2318, %v2408
      %v2410 = vsel %vm2367, %v2322, %v2409
      %v2411 = vsel %vm2355, %v2330, %v2326
      %v2412 = vsel %vm2357, %v2334, %v2411
      %v2413 = vsel %vm2359, %v2338, %v2412
      %v2414 = vsel %vm2361, %v2342, %v2413
      %v2415 = vsel %vm2363, %v2346, %v2414
      %v2416 = vsel %vm2365, %v2350, %v2415
      %v2417 = vsel %vm2367, %v2354, %v2416
      %vm2426 = vcmask 523264
      %v2428 = vsel %vm2426, %v2022, 0
      %v2431 = vsel %vm2426, %v2023, 0
      %v2434 = vsel %vm2426, %v2024, 0
      %v2437 = vsel %vm2426, %v2025, 0
      %v2440 = vsel %vm2426, %v2026, 0
      %v2443 = vsel %vm2426, %v2027, 0
      %v2446 = vsel %vm2426, %v2028, 0
      %v2449 = vsel %vm2426, %v2029, 0
      %v2452 = vsel %vm2426, %v2030, 0
      %v2455 = vsel %vm2426, %v2031, 0
      %v2458 = vsel %vm2426, %v2032, 0
      %v2461 = vsel %vm2426, %v2033, 0
      %v2464 = vsel %vm2426, %v2034, 0
      %2466 = vmatprep.subr.mxu0 0.0
      %2467 = vmatpush1.msra.mxu0 0.0
      %2468 = vmatprep.subr.mxu0 0.0
      %2469 = vmatpush1.msra.mxu0 0.0
      %2470 = vmatprep.subr.mxu0 0.0
      %2471 = vmatpush1.msra.mxu0 0.0
      %2472 = vmatprep.subr.mxu0 0.0
      %2473 = vmatpush1.msra.mxu0 0.0
      %2474 = vmatprep.subr.mxu0 0.0
      %2475 = vmatpush1.msra.mxu0 0.0
      %2476 = vmatprep.subr.mxu0 0.0
      %2477 = vmatpush1.msra.mxu0 0.0
      %2478 = vmatprep.subr.mxu0 0.0
      %2479 = vmatpush1.msra.mxu0 0.0
      %2480 = vmatprep.subr.mxu0 0.0
      %2481 = vmatpush1.msra.mxu0 0.0
      %2482 = vmatprep.subr.mxu0 0.0
      %2483 = vmatpush1.msra.mxu0 %v2417
      %2484 = vmatprep.subr.mxu0 0.0
      %2485 = vmatpush1.msra.mxu0 %v2410
      %2486 = vmatprep.subr.mxu0 0.0
      %2487 = vmatpush1.msra.mxu0 %v2403
      %2488 = vmatprep.subr.mxu0 0.0
      %2489 = vmatpush1.msra.mxu0 %v2396
      %2490 = vmatprep.subr.mxu0 0.0
      %2491 = vmatpush1.msra.mxu0 %v2389
      %2492 = vmatprep.subr.mxu0 0.0
      %2493 = vmatpush1.msra.mxu0 %v2382
      %2494 = vmatprep.subr.mxu0 0.0
      %2495 = vmatpush1.msra.mxu0 %v2375
      %2496 = vmatprep.subr.mxu0 0.0
      %2497 = vmatpush1.msra.mxu0 %v2368
      %2498 = vmatprep.subr.mxu0 0.0
      %2499 = vmatpush2.msra.mxu0 0.0
      %2500 = vmatprep.subr.mxu0 0.0
      %2501 = vmatpush2.msra.mxu0 0.0
      %2502 = vmatprep.subr.mxu0 0.0
      %2503 = vmatpush2.msra.mxu0 0.0
      %2504 = vmatprep.subr.mxu0 0.0
      %2505 = vmatpush2.msra.mxu0 0.0
      %2506 = vmatprep.subr.mxu0 0.0
      %2507 = vmatpush2.msra.mxu0 0.0
      %2508 = vmatprep.subr.mxu0 0.0
      %2509 = vmatpush2.msra.mxu0 0.0
      %2510 = vmatprep.subr.mxu0 0.0
      %2511 = vmatpush2.msra.mxu0 0.0
      %2512 = vmatprep.subr.mxu0 0.0
      %2513 = vmatpush2.msra.mxu0 0.0
      %2514 = vmatprep.subr.mxu0 0.0
      %2515 = vmatpush2.msra.mxu0 0.0
      %2516 = vmatprep.subr.mxu0 0.0
      %2517 = vmatpush2.msra.mxu0 0.0
      %2518 = vmatprep.subr.mxu0 0.0
      %2519 = vmatpush2.msra.mxu0 0.0
      %2520 = vmatprep.subr.mxu0 0.0
      %2521 = vmatpush2.msra.mxu0 0.0
      %2522 = vmatprep.subr.mxu0 0.0
      %2523 = vmatpush2.msra.mxu0 0.0
      %2524 = vmatprep.subr.mxu0 0.0
      %2525 = vmatpush2.msra.mxu0 0.0
      %2526 = vmatprep.subr.mxu0 0.0
      %2527 = vmatpush2.msra.mxu0 0.0
      %2528 = vmatprep.subr.mxu0 0.0
      %2529 = vmatpush2.msra.mxu0 0.0
      %2530 = vmatprep.mubr.f32.mxu0 0.0
      %2531 = vmatmul.mubr.f32.gmra.mxu0 %v2428
      %v2532 = vpop.f32.mrf.mxu0
      %v2533 = vadd.f32 0.0, %v2532
      %v2534 = vpop.f32.mrf.mxu0
      %2535 = vmatprep.mubr.f32.mxu0 0.0
      %2536 = vmatmul.mubr.f32.gmra.mxu0 %v2431
      %v2537 = vpop.f32.mrf.mxu0
      %v2538 = vadd.f32 0.0, %v2537
      %v2539 = vpop.f32.mrf.mxu0
      %2540 = vmatprep.mubr.f32.mxu0 0.0
      %2541 = vmatmul.mubr.f32.gmra.mxu0 %v2434
      %v2542 = vpop.f32.mrf.mxu0
      %v2543 = vadd.f32 0.0, %v2542
      %v2544 = vpop.f32.mrf.mxu0
      %2545 = vmatprep.mubr.f32.mxu0 0.0
      %2546 = vmatmul.mubr.f32.gmra.mxu0 %v2437
      %v2547 = vpop.f32.mrf.mxu0
      %v2548 = vadd.f32 0.0, %v2547
      %v2549 = vpop.f32.mrf.mxu0
      %2550 = vmatprep.mubr.f32.mxu0 0.0
      %2551 = vmatmul.mubr.f32.gmra.mxu0 %v2440
      %v2552 = vpop.f32.mrf.mxu0
      %v2553 = vadd.f32 0.0, %v2552
      %v2554 = vpop.f32.mrf.mxu0
      %2555 = vmatprep.mubr.f32.mxu0 0.0
      %2556 = vmatmul.mubr.f32.gmra.mxu0 %v2443
      %v2557 = vpop.f32.mrf.mxu0
      %v2558 = vadd.f32 0.0, %v2557
      %v2559 = vpop.f32.mrf.mxu0
      %2560 = vmatprep.mubr.f32.mxu0 0.0
      %2561 = vmatmul.mubr.f32.gmra.mxu0 %v2446
      %v2562 = vpop.f32.mrf.mxu0
      %v2563 = vadd.f32 0.0, %v2562
      %v2564 = vpop.f32.mrf.mxu0
      %2565 = vmatprep.mubr.f32.mxu0 0.0
      %2566 = vmatmul.mubr.f32.gmra.mxu0 %v2449
      %v2567 = vpop.f32.mrf.mxu0
      %v2568 = vadd.f32 0.0, %v2567
      %v2569 = vpop.f32.mrf.mxu0
      %2570 = vmatprep.mubr.f32.mxu0 0.0
      %2571 = vmatmul.mubr.f32.gmra.mxu0 %v2452
      %v2572 = vpop.f32.mrf.mxu0
      %v2573 = vadd.f32 0.0, %v2572
      %v2574 = vpop.f32.mrf.mxu0
      %2575 = vmatprep.mubr.f32.mxu0 0.0
      %2576 = vmatmul.mubr.f32.gmra.mxu0 %v2455
      %v2577 = vpop.f32.mrf.mxu0
      %v2578 = vadd.f32 0.0, %v2577
      %v2579 = vpop.f32.mrf.mxu0
      %2580 = vmatprep.mubr.f32.mxu0 0.0
      %2581 = vmatmul.mubr.f32.gmra.mxu0 %v2458
      %v2582 = vpop.f32.mrf.mxu0
      %v2583 = vadd.f32 0.0, %v2582
      %v2584 = vpop.f32.mrf.mxu0
      %2585 = vmatprep.mubr.f32.mxu0 0.0
      %2586 = vmatmul.mubr.f32.gmra.mxu0 %v2461
      %v2587 = vpop.f32.mrf.mxu0
      %v2588 = vadd.f32 0.0, %v2587
      %v2589 = vpop.f32.mrf.mxu0
      %2590 = vmatprep.mubr.f32.mxu0 0.0
      %2591 = vmatmul.mubr.f32.gmra.mxu0 %v2464
      %v2592 = vpop.f32.mrf.mxu0
      %v2593 = vadd.f32 0.0, %v2592
      %v2594 = vpop.f32.mrf.mxu0
      %2595 = vdwg.mxu0
      %v2609 = vcombine.high %v2533, %v2533
      %v2611 = vunpack.c.l.s4 1983009808
      %v2612 = vunpack.c.0.s8 %v2611
      %v2613 = vlaneseq
      %v2614 = vshrl.u32 %v2613, 7
      %v2615 = vsub.s32 %v2612, %v2614
      %v2616 = vrot.slane %v2533, %v2615
      %v2618 = vunpack.c.l.s4 1983009808
      %v2619 = vunpack.c.0.s8 %v2618
      %v2620 = vlaneseq
      %v2621 = vshrl.u32 %v2620, 7
      %v2622 = vsub.s32 %v2619, %v2621
      %v2623 = vrot.slane %v2609, %v2622
      %v2624 = vcombine.high %v2616, %v2616
      %v2625 = vcombine.high %v2623, %v2623
      %v2626 = vcombine.high %v2538, %v2538
      %v2628 = vunpack.c.l.s4 1983009808
      %v2629 = vunpack.c.0.s8 %v2628
      %v2630 = vlaneseq
      %v2631 = vshrl.u32 %v2630, 7
      %v2632 = vsub.s32 %v2629, %v2631
      %v2633 = vrot.slane %v2538, %v2632
      %v2635 = vunpack.c.l.s4 1983009808
      %v2636 = vunpack.c.0.s8 %v2635
      %v2637 = vlaneseq
      %v2638 = vshrl.u32 %v2637, 7
      %v2639 = vsub.s32 %v2636, %v2638
      %v2640 = vrot.slane %v2626, %v2639
      %v2641 = vcombine.high %v2633, %v2633
      %v2642 = vcombine.high %v2640, %v2640
      %v2643 = vcombine.high %v2543, %v2543
      %v2645 = vunpack.c.l.s4 1983009808
      %v2646 = vunpack.c.0.s8 %v2645
      %v2647 = vlaneseq
      %v2648 = vshrl.u32 %v2647, 7
      %v2649 = vsub.s32 %v2646, %v2648
      %v2650 = vrot.slane %v2543, %v2649
      %v2652 = vunpack.c.l.s4 1983009808
      %v2653 = vunpack.c.0.s8 %v2652
      %v2654 = vlaneseq
      %v2655 = vshrl.u32 %v2654, 7
      %v2656 = vsub.s32 %v2653, %v2655
      %v2657 = vrot.slane %v2643, %v2656
      %v2658 = vcombine.high %v2650, %v2650
      %v2659 = vcombine.high %v2657, %v2657
      %v2660 = vcombine.high %v2548, %v2548
      %v2662 = vunpack.c.l.s4 1983009808
      %v2663 = vunpack.c.0.s8 %v2662
      %v2664 = vlaneseq
      %v2665 = vshrl.u32 %v2664, 7
      %v2666 = vsub.s32 %v2663, %v2665
      %v2667 = vrot.slane %v2548, %v2666
      %v2669 = vunpack.c.l.s4 1983009808
      %v2670 = vunpack.c.0.s8 %v2669
      %v2671 = vlaneseq
      %v2672 = vshrl.u32 %v2671, 7
      %v2673 = vsub.s32 %v2670, %v2672
      %v2674 = vrot.slane %v2660, %v2673
      %v2675 = vcombine.high %v2667, %v2667
      %v2676 = vcombine.high %v2674, %v2674
      %v2677 = vcombine.high %v2553, %v2553
      %v2679 = vunpack.c.l.s4 1983009808
      %v2680 = vunpack.c.0.s8 %v2679
      %v2681 = vlaneseq
      %v2682 = vshrl.u32 %v2681, 7
      %v2683 = vsub.s32 %v2680, %v2682
      %v2684 = vrot.slane %v2553, %v2683
      %v2686 = vunpack.c.l.s4 1983009808
      %v2687 = vunpack.c.0.s8 %v2686
      %v2688 = vlaneseq
      %v2689 = vshrl.u32 %v2688, 7
      %v2690 = vsub.s32 %v2687, %v2689
      %v2691 = vrot.slane %v2677, %v2690
      %v2692 = vcombine.high %v2684, %v2684
      %v2693 = vcombine.high %v2691, %v2691
      %v2694 = vcombine.high %v2558, %v2558
      %v2696 = vunpack.c.l.s4 1983009808
      %v2697 = vunpack.c.0.s8 %v2696
      %v2698 = vlaneseq
      %v2699 = vshrl.u32 %v2698, 7
      %v2700 = vsub.s32 %v2697, %v2699
      %v2701 = vrot.slane %v2558, %v2700
      %v2703 = vunpack.c.l.s4 1983009808
      %v2704 = vunpack.c.0.s8 %v2703
      %v2705 = vlaneseq
      %v2706 = vshrl.u32 %v2705, 7
      %v2707 = vsub.s32 %v2704, %v2706
      %v2708 = vrot.slane %v2694, %v2707
      %v2709 = vcombine.high %v2701, %v2701
      %v2710 = vcombine.high %v2708, %v2708
      %v2711 = vcombine.high %v2563, %v2563
      %v2713 = vunpack.c.l.s4 1983009808
      %v2714 = vunpack.c.0.s8 %v2713
      %v2715 = vlaneseq
      %v2716 = vshrl.u32 %v2715, 7
      %v2717 = vsub.s32 %v2714, %v2716
      %v2718 = vrot.slane %v2563, %v2717
      %v2720 = vunpack.c.l.s4 1983009808
      %v2721 = vunpack.c.0.s8 %v2720
      %v2722 = vlaneseq
      %v2723 = vshrl.u32 %v2722, 7
      %v2724 = vsub.s32 %v2721, %v2723
      %v2725 = vrot.slane %v2711, %v2724
      %v2726 = vcombine.high %v2718, %v2718
      %v2727 = vcombine.high %v2725, %v2725
      %v2728 = vcombine.high %v2568, %v2568
      %v2730 = vunpack.c.l.s4 1983009808
      %v2731 = vunpack.c.0.s8 %v2730
      %v2732 = vlaneseq
      %v2733 = vshrl.u32 %v2732, 7
      %v2734 = vsub.s32 %v2731, %v2733
      %v2735 = vrot.slane %v2568, %v2734
      %v2737 = vunpack.c.l.s4 1983009808
      %v2738 = vunpack.c.0.s8 %v2737
      %v2739 = vlaneseq
      %v2740 = vshrl.u32 %v2739, 7
      %v2741 = vsub.s32 %v2738, %v2740
      %v2742 = vrot.slane %v2728, %v2741
      %v2743 = vcombine.high %v2735, %v2735
      %v2744 = vcombine.high %v2742, %v2742
      %v2745 = vcombine.high %v2573, %v2573
      %v2747 = vunpack.c.l.s4 1983009808
      %v2748 = vunpack.c.0.s8 %v2747
      %v2749 = vlaneseq
      %v2750 = vshrl.u32 %v2749, 7
      %v2751 = vsub.s32 %v2748, %v2750
      %v2752 = vrot.slane %v2573, %v2751
      %v2754 = vunpack.c.l.s4 1983009808
      %v2755 = vunpack.c.0.s8 %v2754
      %v2756 = vlaneseq
      %v2757 = vshrl.u32 %v2756, 7
      %v2758 = vsub.s32 %v2755, %v2757
      %v2759 = vrot.slane %v2745, %v2758
      %v2760 = vcombine.high %v2752, %v2752
      %v2761 = vcombine.high %v2759, %v2759
      %v2762 = vcombine.high %v2578, %v2578
      %v2764 = vunpack.c.l.s4 1983009808
      %v2765 = vunpack.c.0.s8 %v2764
      %v2766 = vlaneseq
      %v2767 = vshrl.u32 %v2766, 7
      %v2768 = vsub.s32 %v2765, %v2767
      %v2769 = vrot.slane %v2578, %v2768
      %v2771 = vunpack.c.l.s4 1983009808
      %v2772 = vunpack.c.0.s8 %v2771
      %v2773 = vlaneseq
      %v2774 = vshrl.u32 %v2773, 7
      %v2775 = vsub.s32 %v2772, %v2774
      %v2776 = vrot.slane %v2762, %v2775
      %v2777 = vcombine.high %v2769, %v2769
      %v2778 = vcombine.high %v2776, %v2776
      %v2779 = vcombine.high %v2583, %v2583
      %v2781 = vunpack.c.l.s4 1983009808
      %v2782 = vunpack.c.0.s8 %v2781
      %v2783 = vlaneseq
      %v2784 = vshrl.u32 %v2783, 7
      %v2785 = vsub.s32 %v2782, %v2784
      %v2786 = vrot.slane %v2583, %v2785
      %v2788 = vunpack.c.l.s4 1983009808
      %v2789 = vunpack.c.0.s8 %v2788
      %v2790 = vlaneseq
      %v2791 = vshrl.u32 %v2790, 7
      %v2792 = vsub.s32 %v2789, %v2791
      %v2793 = vrot.slane %v2779, %v2792
      %v2794 = vcombine.high %v2786, %v2786
      %v2795 = vcombine.high %v2793, %v2793
      %v2796 = vcombine.high %v2588, %v2588
      %v2798 = vunpack.c.l.s4 1983009808
      %v2799 = vunpack.c.0.s8 %v2798
      %v2800 = vlaneseq
      %v2801 = vshrl.u32 %v2800, 7
      %v2802 = vsub.s32 %v2799, %v2801
      %v2803 = vrot.slane %v2588, %v2802
      %v2805 = vunpack.c.l.s4 1983009808
      %v2806 = vunpack.c.0.s8 %v2805
      %v2807 = vlaneseq
      %v2808 = vshrl.u32 %v2807, 7
      %v2809 = vsub.s32 %v2806, %v2808
      %v2810 = vrot.slane %v2796, %v2809
      %v2811 = vcombine.high %v2803, %v2803
      %v2812 = vcombine.high %v2810, %v2810
      %v2814 = vunpack.c.l.s4 1983009808
      %v2815 = vunpack.c.0.s8 %v2814
      %v2816 = vlaneseq
      %v2817 = vshrl.u32 %v2816, 7
      %v2818 = vsub.s32 %v2815, %v2817
      %v2819 = vrot.slane %v2593, %v2818
      %v2820 = vcombine.high %v2819, %v2819
      %v2821 = vcombine.low %v2616, %v2624
      %v2822 = vcombine.low %v2623, %v2625
      %v2824 = vunpack.c.l.s4 1983009808
      %v2825 = vunpack.c.0.s8 %v2824
      %v2826 = vlaneseq
      %v2827 = vshrl.u32 %v2826, 7
      %v2828 = vsub.s32 %v2825, %v2827
      %v2829 = vrot.slane %v2821, %v2828
      %v2831 = vunpack.c.l.s4 1983009808
      %v2832 = vunpack.c.0.s8 %v2831
      %v2833 = vlaneseq
      %v2834 = vshrl.u32 %v2833, 7
      %v2835 = vsub.s32 %v2832, %v2834
      %v2836 = vrot.slane %v2822, %v2835
      %v2837 = vcombine.low %v2829, %v2836
      %v2838 = vcombine.low %v2641, %v2640
      %v2839 = vcombine.low %v2642, %v2650
      %v2841 = vunpack.c.l.s4 1983009808
      %v2842 = vunpack.c.0.s8 %v2841
      %v2843 = vlaneseq
      %v2844 = vshrl.u32 %v2843, 7
      %v2845 = vsub.s32 %v2842, %v2844
      %v2846 = vrot.slane %v2838, %v2845
      %v2848 = vunpack.c.l.s4 1983009808
      %v2849 = vunpack.c.0.s8 %v2848
      %v2850 = vlaneseq
      %v2851 = vshrl.u32 %v2850, 7
      %v2852 = vsub.s32 %v2849, %v2851
      %v2853 = vrot.slane %v2839, %v2852
      %v2854 = vcombine.low %v2846, %v2853
      %v2855 = vcombine.low %v2657, %v2659
      %v2856 = vcombine.low %v2667, %v2675
      %v2858 = vunpack.c.l.s4 1983009808
      %v2859 = vunpack.c.0.s8 %v2858
      %v2860 = vlaneseq
      %v2861 = vshrl.u32 %v2860, 7
      %v2862 = vsub.s32 %v2859, %v2861
      %v2863 = vrot.slane %v2855, %v2862
      %v2865 = vunpack.c.l.s4 1983009808
      %v2866 = vunpack.c.0.s8 %v2865
      %v2867 = vlaneseq
      %v2868 = vshrl.u32 %v2867, 7
      %v2869 = vsub.s32 %v2866, %v2868
      %v2870 = vrot.slane %v2856, %v2869
      %v2871 = vcombine.low %v2863, %v2870
      %v2872 = vcombine.low %v2676, %v2684
      %v2873 = vcombine.low %v2692, %v2691
      %v2875 = vunpack.c.l.s4 1983009808
      %v2876 = vunpack.c.0.s8 %v2875
      %v2877 = vlaneseq
      %v2878 = vshrl.u32 %v2877, 7
      %v2879 = vsub.s32 %v2876, %v2878
      %v2880 = vrot.slane %v2872, %v2879
      %v2882 = vunpack.c.l.s4 1983009808
      %v2883 = vunpack.c.0.s8 %v2882
      %v2884 = vlaneseq
      %v2885 = vshrl.u32 %v2884, 7
      %v2886 = vsub.s32 %v2883, %v2885
      %v2887 = vrot.slane %v2873, %v2886
      %v2888 = vcombine.low %v2880, %v2887
      %v2889 = vcombine.low %v2701, %v2709
      %v2890 = vcombine.low %v2708, %v2710
      %v2892 = vunpack.c.l.s4 1983009808
      %v2893 = vunpack.c.0.s8 %v2892
      %v2894 = vlaneseq
      %v2895 = vshrl.u32 %v2894, 7
      %v2896 = vsub.s32 %v2893, %v2895
      %v2897 = vrot.slane %v2889, %v2896
      %v2899 = vunpack.c.l.s4 1983009808
      %v2900 = vunpack.c.0.s8 %v2899
      %v2901 = vlaneseq
      %v2902 = vshrl.u32 %v2901, 7
      %v2903 = vsub.s32 %v2900, %v2902
      %v2904 = vrot.slane %v2890, %v2903
      %v2905 = vcombine.low %v2897, %v2904
      %v2906 = vcombine.low %v2726, %v2725
      %v2907 = vcombine.low %v2727, %v2735
      %v2909 = vunpack.c.l.s4 1983009808
      %v2910 = vunpack.c.0.s8 %v2909
      %v2911 = vlaneseq
      %v2912 = vshrl.u32 %v2911, 7
      %v2913 = vsub.s32 %v2910, %v2912
      %v2914 = vrot.slane %v2906, %v2913
      %v2916 = vunpack.c.l.s4 1983009808
      %v2917 = vunpack.c.0.s8 %v2916
      %v2918 = vlaneseq
      %v2919 = vshrl.u32 %v2918, 7
      %v2920 = vsub.s32 %v2917, %v2919
      %v2921 = vrot.slane %v2907, %v2920
      %v2922 = vcombine.low %v2914, %v2921
      %v2923 = vcombine.low %v2742, %v2744
      %v2924 = vcombine.low %v2752, %v2760
      %v2926 = vunpack.c.l.s4 1983009808
      %v2927 = vunpack.c.0.s8 %v2926
      %v2928 = vlaneseq
      %v2929 = vshrl.u32 %v2928, 7
      %v2930 = vsub.s32 %v2927, %v2929
      %v2931 = vrot.slane %v2923, %v2930
      %v2933 = vunpack.c.l.s4 1983009808
      %v2934 = vunpack.c.0.s8 %v2933
      %v2935 = vlaneseq
      %v2936 = vshrl.u32 %v2935, 7
      %v2937 = vsub.s32 %v2934, %v2936
      %v2938 = vrot.slane %v2924, %v2937
      %v2939 = vcombine.low %v2931, %v2938
      %v2940 = vcombine.low %v2761, %v2769
      %v2941 = vcombine.low %v2777, %v2776
      %v2943 = vunpack.c.l.s4 1983009808
      %v2944 = vunpack.c.0.s8 %v2943
      %v2945 = vlaneseq
      %v2946 = vshrl.u32 %v2945, 7
      %v2947 = vsub.s32 %v2944, %v2946
      %v2948 = vrot.slane %v2940, %v2947
      %v2950 = vunpack.c.l.s4 1983009808
      %v2951 = vunpack.c.0.s8 %v2950
      %v2952 = vlaneseq
      %v2953 = vshrl.u32 %v2952, 7
      %v2954 = vsub.s32 %v2951, %v2953
      %v2955 = vrot.slane %v2941, %v2954
      %v2956 = vcombine.low %v2948, %v2955
      %v2966 = vunpack.c.l.s4 1983009808
      %v2967 = vunpack.c.0.s8 %v2966
      %v2968 = vlaneseq
      %v2969 = vshrl.u32 %v2968, 7
      %v2970 = vsub.s32 %v2967, %v2969
      %v2971 = vrot.slane %v2633, %v2970
      %v2973 = vunpack.c.l.s4 1983009808
      %v2974 = vunpack.c.0.s8 %v2973
      %v2975 = vlaneseq
      %v2976 = vshrl.u32 %v2975, 7
      %v2977 = vsub.s32 %v2974, %v2976
      %v2978 = vrot.slane %v2658, %v2977
      %v2980 = vunpack.c.l.s4 1983009808
      %v2981 = vunpack.c.0.s8 %v2980
      %v2982 = vlaneseq
      %v2983 = vshrl.u32 %v2982, 7
      %v2984 = vsub.s32 %v2981, %v2983
      %v2985 = vrot.slane %v2674, %v2984
      %v2987 = vunpack.c.l.s4 1983009808
      %v2988 = vunpack.c.0.s8 %v2987
      %v2989 = vlaneseq
      %v2990 = vshrl.u32 %v2989, 7
      %v2991 = vsub.s32 %v2988, %v2990
      %v2992 = vrot.slane %v2693, %v2991
      %v2994 = vunpack.c.l.s4 1983009808
      %v2995 = vunpack.c.0.s8 %v2994
      %v2996 = vlaneseq
      %v2997 = vshrl.u32 %v2996, 7
      %v2998 = vsub.s32 %v2995, %v2997
      %v2999 = vrot.slane %v2718, %v2998
      %v3001 = vunpack.c.l.s4 1983009808
      %v3002 = vunpack.c.0.s8 %v3001
      %v3003 = vlaneseq
      %v3004 = vshrl.u32 %v3003, 7
      %v3005 = vsub.s32 %v3002, %v3004
      %v3006 = vrot.slane %v2743, %v3005
      %v3008 = vunpack.c.l.s4 1983009808
      %v3009 = vunpack.c.0.s8 %v3008
      %v3010 = vlaneseq
      %v3011 = vshrl.u32 %v3010, 7
      %v3012 = vsub.s32 %v3009, %v3011
      %v3013 = vrot.slane %v2759, %v3012
      %v3015 = vunpack.c.l.s4 1983009808
      %v3016 = vunpack.c.0.s8 %v3015
      %v3017 = vlaneseq
      %v3018 = vshrl.u32 %v3017, 7
      %v3019 = vsub.s32 %v3016, %v3018
      %v3020 = vrot.slane %v2778, %v3019
      %vm3021 = vcmask 1046528
      %v3022 = vrot.slane %v2837, 1
      %v3023 = vrot.slane %v2971, 1
      %v3024 = vsel %vm3021, %v3022, %v3023
      %v3025 = vrot.slane %v2854, 1
      %v3026 = vrot.slane %v2978, 1
      %v3027 = vsel %vm3021, %v3025, %v3026
      %v3028 = vrot.slane %v2871, 1
      %v3029 = vrot.slane %v2985, 1
      %v3030 = vsel %vm3021, %v3028, %v3029
      %v3031 = vrot.slane %v2888, 1
      %v3032 = vrot.slane %v2992, 1
      %v3033 = vsel %vm3021, %v3031, %v3032
      %v3034 = vrot.slane %v2905, 1
      %v3035 = vrot.slane %v2999, 1
      %v3036 = vsel %vm3021, %v3034, %v3035
      %v3037 = vrot.slane %v2922, 1
      %v3038 = vrot.slane %v3006, 1
      %v3039 = vsel %vm3021, %v3037, %v3038
      %v3040 = vrot.slane %v2939, 1
      %v3041 = vrot.slane %v3013, 1
      %v3042 = vsel %vm3021, %v3040, %v3041
      %v3043 = vrot.slane %v2956, 1
      %v3044 = vrot.slane %v3020, 1
      %v3045 = vsel %vm3021, %v3043, %v3044
      %v3054 = vcombine.low %v2624, %v2623
      %v3055 = vcombine.low %v2625, %v2633
      %v3057 = vunpack.c.l.s4 1983009808
      %v3058 = vunpack.c.0.s8 %v3057
      %v3059 = vlaneseq
      %v3060 = vshrl.u32 %v3059, 7
      %v3061 = vsub.s32 %v3058, %v3060
      %v3062 = vrot.slane %v3054, %v3061
      %v3064 = vunpack.c.l.s4 1983009808
      %v3065 = vunpack.c.0.s8 %v3064
      %v3066 = vlaneseq
      %v3067 = vshrl.u32 %v3066, 7
      %v3068 = vsub.s32 %v3065, %v3067
      %v3069 = vrot.slane %v3055, %v3068
      %v3070 = vcombine.low %v3062, %v3069
      %v3071 = vcombine.low %v2640, %v2642
      %v3072 = vcombine.low %v2650, %v2658
      %v3074 = vunpack.c.l.s4 1983009808
      %v3075 = vunpack.c.0.s8 %v3074
      %v3076 = vlaneseq
      %v3077 = vshrl.u32 %v3076, 7
      %v3078 = vsub.s32 %v3075, %v3077
      %v3079 = vrot.slane %v3071, %v3078
      %v3081 = vunpack.c.l.s4 1983009808
      %v3082 = vunpack.c.0.s8 %v3081
      %v3083 = vlaneseq
      %v3084 = vshrl.u32 %v3083, 7
      %v3085 = vsub.s32 %v3082, %v3084
      %v3086 = vrot.slane %v3072, %v3085
      %v3087 = vcombine.low %v3079, %v3086
      %v3088 = vcombine.low %v2659, %v2667
      %v3089 = vcombine.low %v2675, %v2674
      %v3091 = vunpack.c.l.s4 1983009808
      %v3092 = vunpack.c.0.s8 %v3091
      %v3093 = vlaneseq
      %v3094 = vshrl.u32 %v3093, 7
      %v3095 = vsub.s32 %v3092, %v3094
      %v3096 = vrot.slane %v3088, %v3095
      %v3098 = vunpack.c.l.s4 1983009808
      %v3099 = vunpack.c.0.s8 %v3098
      %v3100 = vlaneseq
      %v3101 = vshrl.u32 %v3100, 7
      %v3102 = vsub.s32 %v3099, %v3101
      %v3103 = vrot.slane %v3089, %v3102
      %v3104 = vcombine.low %v3096, %v3103
      %v3105 = vcombine.low %v2684, %v2692
      %v3106 = vcombine.low %v2691, %v2693
      %v3108 = vunpack.c.l.s4 1983009808
      %v3109 = vunpack.c.0.s8 %v3108
      %v3110 = vlaneseq
      %v3111 = vshrl.u32 %v3110, 7
      %v3112 = vsub.s32 %v3109, %v3111
      %v3113 = vrot.slane %v3105, %v3112
      %v3115 = vunpack.c.l.s4 1983009808
      %v3116 = vunpack.c.0.s8 %v3115
      %v3117 = vlaneseq
      %v3118 = vshrl.u32 %v3117, 7
      %v3119 = vsub.s32 %v3116, %v3118
      %v3120 = vrot.slane %v3106, %v3119
      %v3121 = vcombine.low %v3113, %v3120
      %v3122 = vcombine.low %v2709, %v2708
      %v3123 = vcombine.low %v2710, %v2718
      %v3125 = vunpack.c.l.s4 1983009808
      %v3126 = vunpack.c.0.s8 %v3125
      %v3127 = vlaneseq
      %v3128 = vshrl.u32 %v3127, 7
      %v3129 = vsub.s32 %v3126, %v3128
      %v3130 = vrot.slane %v3122, %v3129
      %v3132 = vunpack.c.l.s4 1983009808
      %v3133 = vunpack.c.0.s8 %v3132
      %v3134 = vlaneseq
      %v3135 = vshrl.u32 %v3134, 7
      %v3136 = vsub.s32 %v3133, %v3135
      %v3137 = vrot.slane %v3123, %v3136
      %v3138 = vcombine.low %v3130, %v3137
      %v3139 = vcombine.low %v2725, %v2727
      %v3140 = vcombine.low %v2735, %v2743
      %v3142 = vunpack.c.l.s4 1983009808
      %v3143 = vunpack.c.0.s8 %v3142
      %v3144 = vlaneseq
      %v3145 = vshrl.u32 %v3144, 7
      %v3146 = vsub.s32 %v3143, %v3145
      %v3147 = vrot.slane %v3139, %v3146
      %v3149 = vunpack.c.l.s4 1983009808
      %v3150 = vunpack.c.0.s8 %v3149
      %v3151 = vlaneseq
      %v3152 = vshrl.u32 %v3151, 7
      %v3153 = vsub.s32 %v3150, %v3152
      %v3154 = vrot.slane %v3140, %v3153
      %v3155 = vcombine.low %v3147, %v3154
      %v3156 = vcombine.low %v2744, %v2752
      %v3157 = vcombine.low %v2760, %v2759
      %v3159 = vunpack.c.l.s4 1983009808
      %v3160 = vunpack.c.0.s8 %v3159
      %v3161 = vlaneseq
      %v3162 = vshrl.u32 %v3161, 7
      %v3163 = vsub.s32 %v3160, %v3162
      %v3164 = vrot.slane %v3156, %v3163
      %v3166 = vunpack.c.l.s4 1983009808
      %v3167 = vunpack.c.0.s8 %v3166
      %v3168 = vlaneseq
      %v3169 = vshrl.u32 %v3168, 7
      %v3170 = vsub.s32 %v3167, %v3169
      %v3171 = vrot.slane %v3157, %v3170
      %v3172 = vcombine.low %v3164, %v3171
      %v3173 = vcombine.low %v2769, %v2777
      %v3174 = vcombine.low %v2776, %v2778
      %v3176 = vunpack.c.l.s4 1983009808
      %v3177 = vunpack.c.0.s8 %v3176
      %v3178 = vlaneseq
      %v3179 = vshrl.u32 %v3178, 7
      %v3180 = vsub.s32 %v3177, %v3179
      %v3181 = vrot.slane %v3173, %v3180
      %v3183 = vunpack.c.l.s4 1983009808
      %v3184 = vunpack.c.0.s8 %v3183
      %v3185 = vlaneseq
      %v3186 = vshrl.u32 %v3185, 7
      %v3187 = vsub.s32 %v3184, %v3186
      %v3188 = vrot.slane %v3174, %v3187
      %v3189 = vcombine.low %v3181, %v3188
      %v3198 = vcombine.low %v2786, %v2794
      %v3199 = vcombine.low %v2793, %v2795
      %v3201 = vunpack.c.l.s4 1983009808
      %v3202 = vunpack.c.0.s8 %v3201
      %v3203 = vlaneseq
      %v3204 = vshrl.u32 %v3203, 7
      %v3205 = vsub.s32 %v3202, %v3204
      %v3206 = vrot.slane %v3198, %v3205
      %v3208 = vunpack.c.l.s4 1983009808
      %v3209 = vunpack.c.0.s8 %v3208
      %v3210 = vlaneseq
      %v3211 = vshrl.u32 %v3210, 7
      %v3212 = vsub.s32 %v3209, %v3211
      %v3213 = vrot.slane %v3199, %v3212
      %v3214 = vcombine.low %v3206, %v3213
      %v3217 = vunpack.c.l.s4 1983009808
      %v3218 = vunpack.c.0.s8 %v3217
      %v3219 = vlaneseq
      %v3220 = vshrl.u32 %v3219, 7
      %v3221 = vsub.s32 %v3218, %v3220
      %v3222 = vrot.slane %v2803, %v3221
      %v3223 = vrot.slane %v3214, 1
      %v3224 = vrot.slane %v3222, 1
      %v3225 = vsel %vm3021, %v3223, %v3224
      %v3227 = vcombine.low %v2794, %v2793
      %v3228 = vcombine.low %v2795, %v2803
      %v3230 = vunpack.c.l.s4 1983009808
      %v3231 = vunpack.c.0.s8 %v3230
      %v3232 = vlaneseq
      %v3233 = vshrl.u32 %v3232, 7
      %v3234 = vsub.s32 %v3231, %v3233
      %v3235 = vrot.slane %v3227, %v3234
      %v3237 = vunpack.c.l.s4 1983009808
      %v3238 = vunpack.c.0.s8 %v3237
      %v3239 = vlaneseq
      %v3240 = vshrl.u32 %v3239, 7
      %v3241 = vsub.s32 %v3238, %v3240
      %v3242 = vrot.slane %v3228, %v3241
      %v3243 = vcombine.low %v3235, %v3242
      %v3245 = vcombine.low %v2811, %v2810
      %v3246 = vcombine.low %v2812, %v2819
      %v3248 = vunpack.c.l.s4 1983009808
      %v3249 = vunpack.c.0.s8 %v3248
      %v3250 = vlaneseq
      %v3251 = vshrl.u32 %v3250, 7
      %v3252 = vsub.s32 %v3249, %v3251
      %v3253 = vrot.slane %v3245, %v3252
      %v3255 = vunpack.c.l.s4 1983009808
      %v3256 = vunpack.c.0.s8 %v3255
      %v3257 = vlaneseq
      %v3258 = vshrl.u32 %v3257, 7
      %v3259 = vsub.s32 %v3256, %v3258
      %v3260 = vrot.slane %v3246, %v3259
      %v3261 = vcombine.low %v3253, %v3260
      %v3264 = vunpack.c.l.s4 1983009808
      %v3265 = vunpack.c.0.s8 %v3264
      %v3266 = vlaneseq
      %v3267 = vshrl.u32 %v3266, 7
      %v3268 = vsub.s32 %v3265, %v3267
      %v3269 = vrot.slane %v2820, %v3268
      %v3270 = vrot.slane %v3261, 1
      %v3271 = vrot.slane %v3269, 1
      %v3272 = vsel %vm3021, %v3270, %v3271
      %v3274 = vcombine.low %v2810, %v2812
      %v3275 = vcombine.low %v2819, %v2820
      %v3277 = vunpack.c.l.s4 1983009808
      %v3278 = vunpack.c.0.s8 %v3277
      %v3279 = vlaneseq
      %v3280 = vshrl.u32 %v3279, 7
      %v3281 = vsub.s32 %v3278, %v3280
      %v3282 = vrot.slane %v3274, %v3281
      %v3284 = vunpack.c.l.s4 1983009808
      %v3285 = vunpack.c.0.s8 %v3284
      %v3286 = vlaneseq
      %v3287 = vshrl.u32 %v3286, 7
      %v3288 = vsub.s32 %v3285, %v3287
      %v3289 = vrot.slane %v3275, %v3288
      %v3290 = vcombine.low %v3282, %v3289
      %v3292 = vld [vmem:[%s5] sm:$0xff]
      %v3293 = vld [vmem:[%s5 + $0x8] sm:$0xff]
      %v3294 = vld [vmem:[%s5 + $0x10] sm:$0xff]
      %v3295 = vld [vmem:[%s5 + $0x18] sm:$0xff]
      %v3296 = vld [vmem:[%s5 + $0x20] sm:$0xff]
      %v3297 = vld [vmem:[%s5 + $0x28] sm:$0xff]
      %v3298 = vld [vmem:[%s5 + $0x30] sm:$0xff]
      %v3299 = vld [vmem:[%s5 + $0x38] sm:$0xff]
      %v3300 = vld [vmem:[%s5 + $0x40] sm:$0xff]
      %v3301 = vld [vmem:[%s5 + $0x48] sm:$0xff]
      %v3302 = vld [vmem:[%s5 + $0x50] sm:$0xff]
      %v3303 = vld [vmem:[%s5 + $0x58] sm:$0xff]
      %v3304 = vld [vmem:[%s5 + $0x60] sm:$0xff]
      %v3305 = vld [vmem:[%s5 + $0x68] sm:$0xff]
      %v3306 = vld [vmem:[%s5 + $0x70] sm:$0xff]
      %v3307 = vld [vmem:[%s5 + $0x78] sm:$0xff]
      %v3308 = vld [vmem:[%s5 + $0x80] sm:$0xff]
      %v3309 = vld [vmem:[%s5 + $0x88] sm:$0xff]
      %v3310 = vld [vmem:[%s5 + $0x90] sm:$0xff]
      %v3311 = vld [vmem:[%s5 + $0x98] sm:$0xff]
      %v3312 = vld [vmem:[%s5 + $0xa0] sm:$0xff]
      %v3313 = vld [vmem:[%s5 + $0xa8] sm:$0xff]
      %v3314 = vld [vmem:[%s5 + $0xb0] sm:$0xff]
      %v3315 = vld [vmem:[%s5 + $0xb8] sm:$0xff]
      %v3316 = vld [vmem:[%s5 + $0xc0] sm:$0xff]
      %v3317 = vld [vmem:[%s5 + $0xc8] sm:$0xff]
      %v3318 = vld [vmem:[%s5 + $0xd0] sm:$0xff]
      %v3319 = vld [vmem:[%s5 + $0xd8] sm:$0xff]
      %v3320 = vld [vmem:[%s5 + $0xe0] sm:$0xff]
      %v3321 = vld [vmem:[%s5 + $0xe8] sm:$0xff]
      %v3322 = vld [vmem:[%s5 + $0xf0] sm:$0xff]
      %v3323 = vld [vmem:[%s5 + $0xf8] sm:$0xff]
      %v3324 = vld [vmem:[%s5 + $0x100] sm:$0xff]
      %v3325 = vld [vmem:[%s5 + $0x108] sm:$0xff]
      %v3326 = vld [vmem:[%s5 + $0x110] sm:$0xff]
      %v3327 = vld [vmem:[%s5 + $0x118] sm:$0xff]
      %v3328 = vld [vmem:[%s5 + $0x120] sm:$0xff]
      %v3329 = vld [vmem:[%s5 + $0x128] sm:$0xff]
      %v3330 = vld [vmem:[%s5 + $0x130] sm:$0xff]
      %v3331 = vld [vmem:[%s5 + $0x138] sm:$0xff]
      %v3332 = vld [vmem:[%s5 + $0x140] sm:$0xff]
      %v3333 = vld [vmem:[%s5 + $0x148] sm:$0xff]
      %v3334 = vld [vmem:[%s5 + $0x150] sm:$0xff]
      %v3335 = vld [vmem:[%s5 + $0x158] sm:$0xff]
      %v3336 = vld [vmem:[%s5 + $0x160] sm:$0xff]
      %v3337 = vld [vmem:[%s5 + $0x168] sm:$0xff]
      %v3338 = vld [vmem:[%s5 + $0x170] sm:$0xff]
      %v3339 = vld [vmem:[%s5 + $0x178] sm:$0xff]
      %v3340 = vld [vmem:[%s5 + $0x180] sm:$0xff]
      %v3341 = vld [vmem:[%s5 + $0x188] sm:$0xff]
      %v3342 = vld [vmem:[%s5 + $0x190] sm:$0xff]
      %v3343 = vld [vmem:[%s5 + $0x198] sm:$0xff]
      %v3344 = vld [vmem:[%s5 + $0x1a0] sm:$0xff]
      %v3345 = vld [vmem:[%s5 + $0x1a8] sm:$0xff]
      %v3346 = vld [vmem:[%s5 + $0x1b0] sm:$0xff]
      %v3347 = vld [vmem:[%s5 + $0x1b8] sm:$0xff]
      %v3348 = vld [vmem:[%s5 + $0x1c0] sm:$0xff]
      %v3349 = vld [vmem:[%s5 + $0x1c8] sm:$0xff]
      %v3350 = vld [vmem:[%s5 + $0x1d0] sm:$0xff]
      %v3351 = vld [vmem:[%s5 + $0x1d8] sm:$0xff]
      %v3352 = vld [vmem:[%s5 + $0x1e0] sm:$0xff]
      %v3353 = vld [vmem:[%s5 + $0x1e8] sm:$0xff]
      %v3354 = vld [vmem:[%s5 + $0x1f0] sm:$0xff]
      %v3355 = vld [vmem:[%s5 + $0x1f8] sm:$0xff]
      %v3356 = vld [vmem:[%s5 + $0x200] sm:$0xff]
      %v3357 = vld [vmem:[%s5 + $0x208] sm:$0xff]
      %v3358 = vld [vmem:[%s5 + $0x210] sm:$0xff]
      %v3359 = vld [vmem:[%s5 + $0x218] sm:$0xff]
      %v3360 = vld [vmem:[%s5 + $0x220] sm:$0xff]
      %v3361 = vld [vmem:[%s5 + $0x228] sm:$0xff]
      %v3362 = vld [vmem:[%s5 + $0x230] sm:$0xff]
      %v3363 = vld [vmem:[%s5 + $0x238] sm:$0xff]
      %v3364 = vld [vmem:[%s5 + $0x240] sm:$0xff]
      %v3365 = vld [vmem:[%s5 + $0x248] sm:$0xff]
      %v3366 = vld [vmem:[%s5 + $0x250] sm:$0xff]
      %v3367 = vld [vmem:[%s5 + $0x258] sm:$0xff]
      %v3368 = vld [vmem:[%s5 + $0x260] sm:$0xff]
      %v3369 = vld [vmem:[%s5 + $0x268] sm:$0xff]
      %v3370 = vld [vmem:[%s5 + $0x270] sm:$0xff]
      %v3371 = vld [vmem:[%s5 + $0x278] sm:$0xff]
      %v3372 = vld [vmem:[%s5 + $0x280] sm:$0xff]
      %v3373 = vld [vmem:[%s5 + $0x288] sm:$0xff]
      %v3374 = vld [vmem:[%s5 + $0x290] sm:$0xff]
      %v3375 = vld [vmem:[%s5 + $0x298] sm:$0xff]
      %v3376 = vld [vmem:[%s5 + $0x2a0] sm:$0xff]
      %v3377 = vld [vmem:[%s5 + $0x2a8] sm:$0xff]
      %v3378 = vld [vmem:[%s5 + $0x2b0] sm:$0xff]
      %v3379 = vld [vmem:[%s5 + $0x2b8] sm:$0xff]
      %v3380 = vld [vmem:[%s5 + $0x2c0] sm:$0xff]
      %v3381 = vld [vmem:[%s5 + $0x2c8] sm:$0xff]
      %v3382 = vld [vmem:[%s5 + $0x2d0] sm:$0xff]
      %v3383 = vld [vmem:[%s5 + $0x2d8] sm:$0xff]
      %v3384 = vld [vmem:[%s5 + $0x2e0] sm:$0xff]
      %v3385 = vld [vmem:[%s5 + $0x2e8] sm:$0xff]
      %v3386 = vld [vmem:[%s5 + $0x2f0] sm:$0xff]
      %v3387 = vld [vmem:[%s5 + $0x2f8] sm:$0xff]
      %v3388 = vld [vmem:[%s5 + $0x300] sm:$0xff]
      %v3389 = vld [vmem:[%s5 + $0x308] sm:$0xff]
      %v3390 = vld [vmem:[%s5 + $0x310] sm:$0xff]
      %v3391 = vld [vmem:[%s5 + $0x318] sm:$0xff]
      %v3392 = vld [vmem:[%s5 + $0x320] sm:$0xff]
      %v3393 = vld [vmem:[%s5 + $0x328] sm:$0xff]
      %v3394 = vld [vmem:[%s5 + $0x330] sm:$0xff]
      %v3395 = vld [vmem:[%s5 + $0x338] sm:$0xff]
      %v3396 = vld [vmem:[%s5 + $0x340] sm:$0xff]
      %v3397 = vld [vmem:[%s5 + $0x348] sm:$0xff]
      %v3398 = vld [vmem:[%s5 + $0x350] sm:$0xff]
      %v3399 = vld [vmem:[%s5 + $0x358] sm:$0xff]
      %v3400 = vld [vmem:[%s5 + $0x360] sm:$0xff]
      %v3401 = vld [vmem:[%s5 + $0x368] sm:$0xff]
      %v3402 = vld [vmem:[%s5 + $0x370] sm:$0xff]
      %v3403 = vld [vmem:[%s5 + $0x378] sm:$0xff]
      %v3404 = vld [vmem:[%s5 + $0x380] sm:$0xff]
      %v3405 = vld [vmem:[%s5 + $0x388] sm:$0xff]
      %v3406 = vld [vmem:[%s5 + $0x390] sm:$0xff]
      %v3407 = vld [vmem:[%s5 + $0x398] sm:$0xff]
      %v3408 = vld [vmem:[%s5 + $0x3a0] sm:$0xff]
      %v3409 = vld [vmem:[%s5 + $0x3a8] sm:$0xff]
      %v3410 = vld [vmem:[%s5 + $0x3b0] sm:$0xff]
      %v3411 = vld [vmem:[%s5 + $0x3b8] sm:$0xff]
      %v3412 = vld [vmem:[%s5 + $0x3c0] sm:$0xff]
      %v3413 = vld [vmem:[%s5 + $0x3c8] sm:$0xff]
      %v3414 = vld [vmem:[%s5 + $0x3d0] sm:$0xff]
      %v3415 = vld [vmem:[%s5 + $0x3d8] sm:$0xff]
      %v3416 = vld [vmem:[%s5 + $0x3e0] sm:$0xff]
      %v3417 = vld [vmem:[%s5 + $0x3e8] sm:$0xff]
      %v3418 = vld [vmem:[%s5 + $0x3f0] sm:$0xff]
      %v3419 = vld [vmem:[%s5 + $0x3f8] sm:$0xff]
      %v3420 = vld [vmem:[%s5 + $0x400] sm:$0xff]
      %v3421 = vld [vmem:[%s5 + $0x408] sm:$0xff]
      %v3422 = vld [vmem:[%s5 + $0x410] sm:$0xff]
      %v3423 = vld [vmem:[%s5 + $0x418] sm:$0xff]
      %v3424 = vld [vmem:[%s5 + $0x420] sm:$0xff]
      %v3425 = vld [vmem:[%s5 + $0x428] sm:$0xff]
      %v3426 = vld [vmem:[%s5 + $0x430] sm:$0xff]
      %v3427 = vld [vmem:[%s5 + $0x438] sm:$0xff]
      %v3428 = vld [vmem:[%s5 + $0x440] sm:$0xff]
      %v3429 = vld [vmem:[%s5 + $0x448] sm:$0xff]
      %v3430 = vld [vmem:[%s5 + $0x450] sm:$0xff]
      %v3431 = vld [vmem:[%s5 + $0x458] sm:$0xff]
      %v3432 = vld [vmem:[%s5 + $0x460] sm:$0xff]
      %v3433 = vld [vmem:[%s5 + $0x468] sm:$0xff]
      %v3434 = vld [vmem:[%s5 + $0x470] sm:$0xff]
      %v3435 = vld [vmem:[%s5 + $0x478] sm:$0xff]
      %3436 = vmatprep.subr.mxu0 0.0
      %3437 = vmatpush1.msra.mxu0 %v3307
      %3438 = vmatprep.subr.mxu0 0.0
      %3439 = vmatpush1.msra.mxu0 %v3306
      %3440 = vmatprep.subr.mxu0 0.0
      %3441 = vmatpush1.msra.mxu0 %v3305
      %3442 = vmatprep.subr.mxu0 0.0
      %3443 = vmatpush1.msra.mxu0 %v3304
      %3444 = vmatprep.subr.mxu0 0.0
      %3445 = vmatpush1.msra.mxu0 %v3303
      %3446 = vmatprep.subr.mxu0 0.0
      %3447 = vmatpush1.msra.mxu0 %v3302
      %3448 = vmatprep.subr.mxu0 0.0
      %3449 = vmatpush1.msra.mxu0 %v3301
      %3450 = vmatprep.subr.mxu0 0.0
      %3451 = vmatpush1.msra.mxu0 %v3300
      %3452 = vmatprep.subr.mxu0 0.0
      %3453 = vmatpush1.msra.mxu0 %v3299
      %3454 = vmatprep.subr.mxu0 0.0
      %3455 = vmatpush1.msra.mxu0 %v3298
      %3456 = vmatprep.subr.mxu0 0.0
      %3457 = vmatpush1.msra.mxu0 %v3297
      %3458 = vmatprep.subr.mxu0 0.0
      %3459 = vmatpush1.msra.mxu0 %v3296
      %3460 = vmatprep.subr.mxu0 0.0
      %3461 = vmatpush1.msra.mxu0 %v3295
      %3462 = vmatprep.subr.mxu0 0.0
      %3463 = vmatpush1.msra.mxu0 %v3294
      %3464 = vmatprep.subr.mxu0 0.0
      %3465 = vmatpush1.msra.mxu0 %v3293
      %3466 = vmatprep.subr.mxu0 0.0
      %3467 = vmatpush1.msra.mxu0 %v3292
      %3468 = vmatprep.subr.mxu0 0.0
      %3469 = vmatpush2.msra.mxu0 %v3323
      %3470 = vmatprep.subr.mxu0 0.0
      %3471 = vmatpush2.msra.mxu0 %v3322
      %3472 = vmatprep.subr.mxu0 0.0
      %3473 = vmatpush2.msra.mxu0 %v3321
      %3474 = vmatprep.subr.mxu0 0.0
      %3475 = vmatpush2.msra.mxu0 %v3320
      %3476 = vmatprep.subr.mxu0 0.0
      %3477 = vmatpush2.msra.mxu0 %v3319
      %3478 = vmatprep.subr.mxu0 0.0
      %3479 = vmatpush2.msra.mxu0 %v3318
      %3480 = vmatprep.subr.mxu0 0.0
      %3481 = vmatpush2.msra.mxu0 %v3317
      %3482 = vmatprep.subr.mxu0 0.0
      %3483 = vmatpush2.msra.mxu0 %v3316
      %3484 = vmatprep.subr.mxu0 0.0
      %3485 = vmatpush2.msra.mxu0 %v3315
      %3486 = vmatprep.subr.mxu0 0.0
      %3487 = vmatpush2.msra.mxu0 %v3314
      %3488 = vmatprep.subr.mxu0 0.0
      %3489 = vmatpush2.msra.mxu0 %v3313
      %3490 = vmatprep.subr.mxu0 0.0
      %3491 = vmatpush2.msra.mxu0 %v3312
      %3492 = vmatprep.subr.mxu0 0.0
      %3493 = vmatpush2.msra.mxu0 %v3311
      %3494 = vmatprep.subr.mxu0 0.0
      %3495 = vmatpush2.msra.mxu0 %v3310
      %3496 = vmatprep.subr.mxu0 0.0
      %3497 = vmatpush2.msra.mxu0 %v3309
      %3498 = vmatprep.subr.mxu0 0.0
      %3499 = vmatpush2.msra.mxu0 %v3308
      %3500 = vmatprep.mubr.f32.mxu0 %v3024
      %3501 = vmatmul.mubr.f32.gmra.mxu0 %v2837
      %v3502 = vpop.f32.mrf.mxu0
      %v3503 = vadd.f32 0.0, %v3502
      %v3504 = vpop.f32.mrf.mxu0
      %3505 = vmatprep.mubr.f32.mxu0 %v3027
      %3506 = vmatmul.mubr.f32.gmra.mxu0 %v2854
      %v3507 = vpop.f32.mrf.mxu0
      %v3508 = vadd.f32 0.0, %v3507
      %v3509 = vpop.f32.mrf.mxu0
      %3510 = vmatprep.mubr.f32.mxu0 %v3030
      %3511 = vmatmul.mubr.f32.gmra.mxu0 %v2871
      %v3512 = vpop.f32.mrf.mxu0
      %v3513 = vadd.f32 0.0, %v3512
      %v3514 = vpop.f32.mrf.mxu0
      %3515 = vmatprep.mubr.f32.mxu0 %v3033
      %3516 = vmatmul.mubr.f32.gmra.mxu0 %v2888
      %v3517 = vpop.f32.mrf.mxu0
      %v3518 = vadd.f32 0.0, %v3517
      %v3519 = vpop.f32.mrf.mxu0
      %3520 = vmatprep.mubr.f32.mxu0 %v3036
      %3521 = vmatmul.mubr.f32.gmra.mxu0 %v2905
      %v3522 = vpop.f32.mrf.mxu0
      %v3523 = vadd.f32 0.0, %v3522
      %v3524 = vpop.f32.mrf.mxu0
      %3525 = vmatprep.mubr.f32.mxu0 %v3039
      %3526 = vmatmul.mubr.f32.gmra.mxu0 %v2922
      %v3527 = vpop.f32.mrf.mxu0
      %v3528 = vadd.f32 0.0, %v3527
      %v3529 = vpop.f32.mrf.mxu0
      %3530 = vmatprep.mubr.f32.mxu0 %v3042
      %3531 = vmatmul.mubr.f32.gmra.mxu0 %v2939
      %v3532 = vpop.f32.mrf.mxu0
      %v3533 = vadd.f32 0.0, %v3532
      %v3534 = vpop.f32.mrf.mxu0
      %3535 = vmatprep.mubr.f32.mxu0 %v3045
      %3536 = vmatmul.mubr.f32.gmra.mxu0 %v2956
      %v3537 = vpop.f32.mrf.mxu0
      %v3538 = vadd.f32 0.0, %v3537
      %v3539 = vpop.f32.mrf.mxu0
      %3540 = vdwg.mxu0
      %3541 = vmatprep.subr.mxu0 0.0
      %3542 = vmatpush1.msra.mxu0 %v3339
      %3543 = vmatprep.subr.mxu0 0.0
      %3544 = vmatpush1.msra.mxu0 %v3338
      %3545 = vmatprep.subr.mxu0 0.0
      %3546 = vmatpush1.msra.mxu0 %v3337
      %3547 = vmatprep.subr.mxu0 0.0
      %3548 = vmatpush1.msra.mxu0 %v3336
      %3549 = vmatprep.subr.mxu0 0.0
      %3550 = vmatpush1.msra.mxu0 %v3335
      %3551 = vmatprep.subr.mxu0 0.0
      %3552 = vmatpush1.msra.mxu0 %v3334
      %3553 = vmatprep.subr.mxu0 0.0
      %3554 = vmatpush1.msra.mxu0 %v3333
      %3555 = vmatprep.subr.mxu0 0.0
      %3556 = vmatpush1.msra.mxu0 %v3332
      %3557 = vmatprep.subr.mxu0 0.0
      %3558 = vmatpush1.msra.mxu0 %v3331
      %3559 = vmatprep.subr.mxu0 0.0
      %3560 = vmatpush1.msra.mxu0 %v3330
      %3561 = vmatprep.subr.mxu0 0.0
      %3562 = vmatpush1.msra.mxu0 %v3329
      %3563 = vmatprep.subr.mxu0 0.0
      %3564 = vmatpush1.msra.mxu0 %v3328
      %3565 = vmatprep.subr.mxu0 0.0
      %3566 = vmatpush1.msra.mxu0 %v3327
      %3567 = vmatprep.subr.mxu0 0.0
      %3568 = vmatpush1.msra.mxu0 %v3326
      %3569 = vmatprep.subr.mxu0 0.0
      %3570 = vmatpush1.msra.mxu0 %v3325
      %3571 = vmatprep.subr.mxu0 0.0
      %3572 = vmatpush1.msra.mxu0 %v3324
      %3573 = vmatprep.subr.mxu0 0.0
      %3574 = vmatpush2.msra.mxu0 %v3355
      %3575 = vmatprep.subr.mxu0 0.0
      %3576 = vmatpush2.msra.mxu0 %v3354
      %3577 = vmatprep.subr.mxu0 0.0
      %3578 = vmatpush2.msra.mxu0 %v3353
      %3579 = vmatprep.subr.mxu0 0.0
      %3580 = vmatpush2.msra.mxu0 %v3352
      %3581 = vmatprep.subr.mxu0 0.0
      %3582 = vmatpush2.msra.mxu0 %v3351
      %3583 = vmatprep.subr.mxu0 0.0
      %3584 = vmatpush2.msra.mxu0 %v3350
      %3585 = vmatprep.subr.mxu0 0.0
      %3586 = vmatpush2.msra.mxu0 %v3349
      %3587 = vmatprep.subr.mxu0 0.0
      %3588 = vmatpush2.msra.mxu0 %v3348
      %3589 = vmatprep.subr.mxu0 0.0
      %3590 = vmatpush2.msra.mxu0 %v3347
      %3591 = vmatprep.subr.mxu0 0.0
      %3592 = vmatpush2.msra.mxu0 %v3346
      %3593 = vmatprep.subr.mxu0 0.0
      %3594 = vmatpush2.msra.mxu0 %v3345
      %3595 = vmatprep.subr.mxu0 0.0
      %3596 = vmatpush2.msra.mxu0 %v3344
      %3597 = vmatprep.subr.mxu0 0.0
      %3598 = vmatpush2.msra.mxu0 %v3343
      %3599 = vmatprep.subr.mxu0 0.0
      %3600 = vmatpush2.msra.mxu0 %v3342
      %3601 = vmatprep.subr.mxu0 0.0
      %3602 = vmatpush2.msra.mxu0 %v3341
      %3603 = vmatprep.subr.mxu0 0.0
      %3604 = vmatpush2.msra.mxu0 %v3340
      %3605 = vmatprep.mubr.f32.mxu0 %v2854
      %3606 = vmatmul.mubr.f32.gmra.mxu0 %v3070
      %v3607 = vpop.f32.mrf.mxu0
      %v3608 = vadd.f32 %v3503, %v3607
      %v3609 = vpop.f32.mrf.mxu0
      %3610 = vmatprep.mubr.f32.mxu0 %v2871
      %3611 = vmatmul.mubr.f32.gmra.mxu0 %v3087
      %v3612 = vpop.f32.mrf.mxu0
      %v3613 = vadd.f32 %v3508, %v3612
      %v3614 = vpop.f32.mrf.mxu0
      %3615 = vmatprep.mubr.f32.mxu0 %v2888
      %3616 = vmatmul.mubr.f32.gmra.mxu0 %v3104
      %v3617 = vpop.f32.mrf.mxu0
      %v3618 = vadd.f32 %v3513, %v3617
      %v3619 = vpop.f32.mrf.mxu0
      %3620 = vmatprep.mubr.f32.mxu0 %v2905
      %3621 = vmatmul.mubr.f32.gmra.mxu0 %v3121
      %v3622 = vpop.f32.mrf.mxu0
      %v3623 = vadd.f32 %v3518, %v3622
      %v3624 = vpop.f32.mrf.mxu0
      %3625 = vmatprep.mubr.f32.mxu0 %v2922
      %3626 = vmatmul.mubr.f32.gmra.mxu0 %v3138
      %v3627 = vpop.f32.mrf.mxu0
      %v3628 = vadd.f32 %v3523, %v3627
      %v3629 = vpop.f32.mrf.mxu0
      %3630 = vmatprep.mubr.f32.mxu0 %v2939
      %3631 = vmatmul.mubr.f32.gmra.mxu0 %v3155
      %v3632 = vpop.f32.mrf.mxu0
      %v3633 = vadd.f32 %v3528, %v3632
      %v3634 = vpop.f32.mrf.mxu0
      %3635 = vmatprep.mubr.f32.mxu0 %v2956
      %3636 = vmatmul.mubr.f32.gmra.mxu0 %v3172
      %v3637 = vpop.f32.mrf.mxu0
      %v3638 = vadd.f32 %v3533, %v3637
      %v3639 = vpop.f32.mrf.mxu0
      %3640 = vmatprep.mubr.f32.mxu0 %v3214
      %3641 = vmatmul.mubr.f32.gmra.mxu0 %v3189
      %v3642 = vpop.f32.mrf.mxu0
      %v3643 = vadd.f32 %v3538, %v3642
      %v3644 = vpop.f32.mrf.mxu0
      %3645 = vdwg.mxu0
      %3646 = vmatprep.subr.mxu0 0.0
      %3647 = vmatpush1.msra.mxu0 %v3371
      %3648 = vmatprep.subr.mxu0 0.0
      %3649 = vmatpush1.msra.mxu0 %v3370
      %3650 = vmatprep.subr.mxu0 0.0
      %3651 = vmatpush1.msra.mxu0 %v3369
      %3652 = vmatprep.subr.mxu0 0.0
      %3653 = vmatpush1.msra.mxu0 %v3368
      %3654 = vmatprep.subr.mxu0 0.0
      %3655 = vmatpush1.msra.mxu0 %v3367
      %3656 = vmatprep.subr.mxu0 0.0
      %3657 = vmatpush1.msra.mxu0 %v3366
      %3658 = vmatprep.subr.mxu0 0.0
      %3659 = vmatpush1.msra.mxu0 %v3365
      %3660 = vmatprep.subr.mxu0 0.0
      %3661 = vmatpush1.msra.mxu0 %v3364
      %3662 = vmatprep.subr.mxu0 0.0
      %3663 = vmatpush1.msra.mxu0 %v3363
      %3664 = vmatprep.subr.mxu0 0.0
      %3665 = vmatpush1.msra.mxu0 %v3362
      %3666 = vmatprep.subr.mxu0 0.0
      %3667 = vmatpush1.msra.mxu0 %v3361
      %3668 = vmatprep.subr.mxu0 0.0
      %3669 = vmatpush1.msra.mxu0 %v3360
      %3670 = vmatprep.subr.mxu0 0.0
      %3671 = vmatpush1.msra.mxu0 %v3359
      %3672 = vmatprep.subr.mxu0 0.0
      %3673 = vmatpush1.msra.mxu0 %v3358
      %3674 = vmatprep.subr.mxu0 0.0
      %3675 = vmatpush1.msra.mxu0 %v3357
      %3676 = vmatprep.subr.mxu0 0.0
      %3677 = vmatpush1.msra.mxu0 %v3356
      %3678 = vmatprep.subr.mxu0 0.0
      %3679 = vmatpush2.msra.mxu0 %v3387
      %3680 = vmatprep.subr.mxu0 0.0
      %3681 = vmatpush2.msra.mxu0 %v3386
      %3682 = vmatprep.subr.mxu0 0.0
      %3683 = vmatpush2.msra.mxu0 %v3385
      %3684 = vmatprep.subr.mxu0 0.0
      %3685 = vmatpush2.msra.mxu0 %v3384
      %3686 = vmatprep.subr.mxu0 0.0
      %3687 = vmatpush2.msra.mxu0 %v3383
      %3688 = vmatprep.subr.mxu0 0.0
      %3689 = vmatpush2.msra.mxu0 %v3382
      %3690 = vmatprep.subr.mxu0 0.0
      %3691 = vmatpush2.msra.mxu0 %v3381
      %3692 = vmatprep.subr.mxu0 0.0
      %3693 = vmatpush2.msra.mxu0 %v3380
      %3694 = vmatprep.subr.mxu0 0.0
      %3695 = vmatpush2.msra.mxu0 %v3379
      %3696 = vmatprep.subr.mxu0 0.0
      %3697 = vmatpush2.msra.mxu0 %v3378
      %3698 = vmatprep.subr.mxu0 0.0
      %3699 = vmatpush2.msra.mxu0 %v3377
      %3700 = vmatprep.subr.mxu0 0.0
      %3701 = vmatpush2.msra.mxu0 %v3376
      %3702 = vmatprep.subr.mxu0 0.0
      %3703 = vmatpush2.msra.mxu0 %v3375
      %3704 = vmatprep.subr.mxu0 0.0
      %3705 = vmatpush2.msra.mxu0 %v3374
      %3706 = vmatprep.subr.mxu0 0.0
      %3707 = vmatpush2.msra.mxu0 %v3373
      %3708 = vmatprep.subr.mxu0 0.0
      %3709 = vmatpush2.msra.mxu0 %v3372
      %3710 = vmatprep.mubr.f32.mxu0 %v3087
      %3711 = vmatmul.mubr.f32.gmra.mxu0 %v3027
      %v3712 = vpop.f32.mrf.mxu0
      %v3713 = vadd.f32 %v3608, %v3712
      %v3714 = vpop.f32.mrf.mxu0
      %3715 = vmatprep.mubr.f32.mxu0 %v3104
      %3716 = vmatmul.mubr.f32.gmra.mxu0 %v3030
      %v3717 = vpop.f32.mrf.mxu0
      %v3718 = vadd.f32 %v3613, %v3717
      %v3719 = vpop.f32.mrf.mxu0
      %3720 = vmatprep.mubr.f32.mxu0 %v3121
      %3721 = vmatmul.mubr.f32.gmra.mxu0 %v3033
      %v3722 = vpop.f32.mrf.mxu0
      %v3723 = vadd.f32 %v3618, %v3722
      %v3724 = vpop.f32.mrf.mxu0
      %3725 = vmatprep.mubr.f32.mxu0 %v3138
      %3726 = vmatmul.mubr.f32.gmra.mxu0 %v3036
      %v3727 = vpop.f32.mrf.mxu0
      %v3728 = vadd.f32 %v3623, %v3727
      %v3729 = vpop.f32.mrf.mxu0
      %3730 = vmatprep.mubr.f32.mxu0 %v3155
      %3731 = vmatmul.mubr.f32.gmra.mxu0 %v3039
      %v3732 = vpop.f32.mrf.mxu0
      %v3733 = vadd.f32 %v3628, %v3732
      %v3734 = vpop.f32.mrf.mxu0
      %3735 = vmatprep.mubr.f32.mxu0 %v3172
      %3736 = vmatmul.mubr.f32.gmra.mxu0 %v3042
      %v3737 = vpop.f32.mrf.mxu0
      %v3738 = vadd.f32 %v3633, %v3737
      %v3739 = vpop.f32.mrf.mxu0
      %3740 = vmatprep.mubr.f32.mxu0 %v3189
      %3741 = vmatmul.mubr.f32.gmra.mxu0 %v3045
      %v3742 = vpop.f32.mrf.mxu0
      %v3743 = vadd.f32 %v3638, %v3742
      %v3744 = vpop.f32.mrf.mxu0
      %3745 = vmatprep.mubr.f32.mxu0 %v3243
      %3746 = vmatmul.mubr.f32.gmra.mxu0 %v3225
      %v3747 = vpop.f32.mrf.mxu0
      %v3748 = vadd.f32 %v3643, %v3747
      %v3749 = vpop.f32.mrf.mxu0
      %3750 = vdwg.mxu0
      %3751 = vmatprep.subr.mxu0 0.0
      %3752 = vmatpush1.msra.mxu0 %v3403
      %3753 = vmatprep.subr.mxu0 0.0
      %3754 = vmatpush1.msra.mxu0 %v3402
      %3755 = vmatprep.subr.mxu0 0.0
      %3756 = vmatpush1.msra.mxu0 %v3401
      %3757 = vmatprep.subr.mxu0 0.0
      %3758 = vmatpush1.msra.mxu0 %v3400
      %3759 = vmatprep.subr.mxu0 0.0
      %3760 = vmatpush1.msra.mxu0 %v3399
      %3761 = vmatprep.subr.mxu0 0.0
      %3762 = vmatpush1.msra.mxu0 %v3398
      %3763 = vmatprep.subr.mxu0 0.0
      %3764 = vmatpush1.msra.mxu0 %v3397
      %3765 = vmatprep.subr.mxu0 0.0
      %3766 = vmatpush1.msra.mxu0 %v3396
      %3767 = vmatprep.subr.mxu0 0.0
      %3768 = vmatpush1.msra.mxu0 %v3395
      %3769 = vmatprep.subr.mxu0 0.0
      %3770 = vmatpush1.msra.mxu0 %v3394
      %3771 = vmatprep.subr.mxu0 0.0
      %3772 = vmatpush1.msra.mxu0 %v3393
      %3773 = vmatprep.subr.mxu0 0.0
      %3774 = vmatpush1.msra.mxu0 %v3392
      %3775 = vmatprep.subr.mxu0 0.0
      %3776 = vmatpush1.msra.mxu0 %v3391
      %3777 = vmatprep.subr.mxu0 0.0
      %3778 = vmatpush1.msra.mxu0 %v3390
      %3779 = vmatprep.subr.mxu0 0.0
      %3780 = vmatpush1.msra.mxu0 %v3389
      %3781 = vmatprep.subr.mxu0 0.0
      %3782 = vmatpush1.msra.mxu0 %v3388
      %3783 = vmatprep.subr.mxu0 0.0
      %3784 = vmatpush2.msra.mxu0 %v3419
      %3785 = vmatprep.subr.mxu0 0.0
      %3786 = vmatpush2.msra.mxu0 %v3418
      %3787 = vmatprep.subr.mxu0 0.0
      %3788 = vmatpush2.msra.mxu0 %v3417
      %3789 = vmatprep.subr.mxu0 0.0
      %3790 = vmatpush2.msra.mxu0 %v3416
      %3791 = vmatprep.subr.mxu0 0.0
      %3792 = vmatpush2.msra.mxu0 %v3415
      %3793 = vmatprep.subr.mxu0 0.0
      %3794 = vmatpush2.msra.mxu0 %v3414
      %3795 = vmatprep.subr.mxu0 0.0
      %3796 = vmatpush2.msra.mxu0 %v3413
      %3797 = vmatprep.subr.mxu0 0.0
      %3798 = vmatpush2.msra.mxu0 %v3412
      %3799 = vmatprep.subr.mxu0 0.0
      %3800 = vmatpush2.msra.mxu0 %v3411
      %3801 = vmatprep.subr.mxu0 0.0
      %3802 = vmatpush2.msra.mxu0 %v3410
      %3803 = vmatprep.subr.mxu0 0.0
      %3804 = vmatpush2.msra.mxu0 %v3409
      %3805 = vmatprep.subr.mxu0 0.0
      %3806 = vmatpush2.msra.mxu0 %v3408
      %3807 = vmatprep.subr.mxu0 0.0
      %3808 = vmatpush2.msra.mxu0 %v3407
      %3809 = vmatprep.subr.mxu0 0.0
      %3810 = vmatpush2.msra.mxu0 %v3406
      %3811 = vmatprep.subr.mxu0 0.0
      %3812 = vmatpush2.msra.mxu0 %v3405
      %3813 = vmatprep.subr.mxu0 0.0
      %3814 = vmatpush2.msra.mxu0 %v3404
      %3815 = vmatprep.mubr.f32.mxu0 %v3030
      %3816 = vmatmul.mubr.f32.gmra.mxu0 %v2871
      %v3817 = vpop.f32.mrf.mxu0
      %v3818 = vadd.f32 %v3713, %v3817
      %v3819 = vpop.f32.mrf.mxu0
      %3820 = vmatprep.mubr.f32.mxu0 %v3033
      %3821 = vmatmul.mubr.f32.gmra.mxu0 %v2888
      %v3822 = vpop.f32.mrf.mxu0
      %v3823 = vadd.f32 %v3718, %v3822
      %v3824 = vpop.f32.mrf.mxu0
      %3825 = vmatprep.mubr.f32.mxu0 %v3036
      %3826 = vmatmul.mubr.f32.gmra.mxu0 %v2905
      %v3827 = vpop.f32.mrf.mxu0
      %v3828 = vadd.f32 %v3723, %v3827
      %v3829 = vpop.f32.mrf.mxu0
      %3830 = vmatprep.mubr.f32.mxu0 %v3039
      %3831 = vmatmul.mubr.f32.gmra.mxu0 %v2922
      %v3832 = vpop.f32.mrf.mxu0
      %v3833 = vadd.f32 %v3728, %v3832
      %v3834 = vpop.f32.mrf.mxu0
      %3835 = vmatprep.mubr.f32.mxu0 %v3042
      %3836 = vmatmul.mubr.f32.gmra.mxu0 %v2939
      %v3837 = vpop.f32.mrf.mxu0
      %v3838 = vadd.f32 %v3733, %v3837
      %v3839 = vpop.f32.mrf.mxu0
      %3840 = vmatprep.mubr.f32.mxu0 %v3045
      %3841 = vmatmul.mubr.f32.gmra.mxu0 %v2956
      %v3842 = vpop.f32.mrf.mxu0
      %v3843 = vadd.f32 %v3738, %v3842
      %v3844 = vpop.f32.mrf.mxu0
      %3845 = vmatprep.mubr.f32.mxu0 %v3225
      %3846 = vmatmul.mubr.f32.gmra.mxu0 %v3214
      %v3847 = vpop.f32.mrf.mxu0
      %v3848 = vadd.f32 %v3743, %v3847
      %v3849 = vpop.f32.mrf.mxu0
      %3850 = vmatprep.mubr.f32.mxu0 %v3272
      %3851 = vmatmul.mubr.f32.gmra.mxu0 %v3261
      %v3852 = vpop.f32.mrf.mxu0
      %v3853 = vadd.f32 %v3748, %v3852
      %v3854 = vpop.f32.mrf.mxu0
      %3855 = vdwg.mxu0
      %3856 = vmatprep.subr.mxu0 0.0
      %3857 = vmatpush1.msra.mxu0 %v3435
      %3858 = vmatprep.subr.mxu0 0.0
      %3859 = vmatpush1.msra.mxu0 %v3434
      %3860 = vmatprep.subr.mxu0 0.0
      %3861 = vmatpush1.msra.mxu0 %v3433
      %3862 = vmatprep.subr.mxu0 0.0
      %3863 = vmatpush1.msra.mxu0 %v3432
      %3864 = vmatprep.subr.mxu0 0.0
      %3865 = vmatpush1.msra.mxu0 %v3431
      %3866 = vmatprep.subr.mxu0 0.0
      %3867 = vmatpush1.msra.mxu0 %v3430
      %3868 = vmatprep.subr.mxu0 0.0
      %3869 = vmatpush1.msra.mxu0 %v3429
      %3870 = vmatprep.subr.mxu0 0.0
      %3871 = vmatpush1.msra.mxu0 %v3428
      %3872 = vmatprep.subr.mxu0 0.0
      %3873 = vmatpush1.msra.mxu0 %v3427
      %3874 = vmatprep.subr.mxu0 0.0
      %3875 = vmatpush1.msra.mxu0 %v3426
      %3876 = vmatprep.subr.mxu0 0.0
      %3877 = vmatpush1.msra.mxu0 %v3425
      %3878 = vmatprep.subr.mxu0 0.0
      %3879 = vmatpush1.msra.mxu0 %v3424
      %3880 = vmatprep.subr.mxu0 0.0
      %3881 = vmatpush1.msra.mxu0 %v3423
      %3882 = vmatprep.subr.mxu0 0.0
      %3883 = vmatpush1.msra.mxu0 %v3422
      %3884 = vmatprep.subr.mxu0 0.0
      %3885 = vmatpush1.msra.mxu0 %v3421
      %3886 = vmatprep.subr.mxu0 0.0
      %3887 = vmatpush1.msra.mxu0 %v3420
      %3888 = vmatprep.subr.mxu0 0.0
      %3889 = vmatpush2.msra.mxu0 0.0
      %3890 = vmatprep.subr.mxu0 0.0
      %3891 = vmatpush2.msra.mxu0 0.0
      %3892 = vmatprep.subr.mxu0 0.0
      %3893 = vmatpush2.msra.mxu0 0.0
      %3894 = vmatprep.subr.mxu0 0.0
      %3895 = vmatpush2.msra.mxu0 0.0
      %3896 = vmatprep.subr.mxu0 0.0
      %3897 = vmatpush2.msra.mxu0 0.0
      %3898 = vmatprep.subr.mxu0 0.0
      %3899 = vmatpush2.msra.mxu0 0.0
      %3900 = vmatprep.subr.mxu0 0.0
      %3901 = vmatpush2.msra.mxu0 0.0
      %3902 = vmatprep.subr.mxu0 0.0
      %3903 = vmatpush2.msra.mxu0 0.0
      %3904 = vmatprep.subr.mxu0 0.0
      %3905 = vmatpush2.msra.mxu0 0.0
      %3906 = vmatprep.subr.mxu0 0.0
      %3907 = vmatpush2.msra.mxu0 0.0
      %3908 = vmatprep.subr.mxu0 0.0
      %3909 = vmatpush2.msra.mxu0 0.0
      %3910 = vmatprep.subr.mxu0 0.0
      %3911 = vmatpush2.msra.mxu0 0.0
      %3912 = vmatprep.subr.mxu0 0.0
      %3913 = vmatpush2.msra.mxu0 0.0
      %3914 = vmatprep.subr.mxu0 0.0
      %3915 = vmatpush2.msra.mxu0 0.0
      %3916 = vmatprep.subr.mxu0 0.0
      %3917 = vmatpush2.msra.mxu0 0.0
      %3918 = vmatprep.subr.mxu0 0.0
      %3919 = vmatpush2.msra.mxu0 0.0
      %3920 = vmatprep.mubr.f32.mxu0 0.0
      %3921 = vmatmul.mubr.f32.gmra.mxu0 %v3104
      %v3922 = vpop.f32.mrf.mxu0
      %v3923 = vadd.f32 %v3818, %v3922
      %v3924 = vpop.f32.mrf.mxu0
      %3925 = vmatprep.mubr.f32.mxu0 0.0
      %3926 = vmatmul.mubr.f32.gmra.mxu0 %v3121
      %v3927 = vpop.f32.mrf.mxu0
      %v3928 = vadd.f32 %v3823, %v3927
      %v3929 = vpop.f32.mrf.mxu0
      %3930 = vmatprep.mubr.f32.mxu0 0.0
      %3931 = vmatmul.mubr.f32.gmra.mxu0 %v3138
      %v3932 = vpop.f32.mrf.mxu0
      %v3933 = vadd.f32 %v3828, %v3932
      %v3934 = vpop.f32.mrf.mxu0
      %3935 = vmatprep.mubr.f32.mxu0 0.0
      %3936 = vmatmul.mubr.f32.gmra.mxu0 %v3155
      %v3937 = vpop.f32.mrf.mxu0
      %v3938 = vadd.f32 %v3833, %v3937
      %v3939 = vpop.f32.mrf.mxu0
      %3940 = vmatprep.mubr.f32.mxu0 0.0
      %3941 = vmatmul.mubr.f32.gmra.mxu0 %v3172
      %v3942 = vpop.f32.mrf.mxu0
      %v3943 = vadd.f32 %v3838, %v3942
      %v3944 = vpop.f32.mrf.mxu0
      %3945 = vmatprep.mubr.f32.mxu0 0.0
      %3946 = vmatmul.mubr.f32.gmra.mxu0 %v3189
      %v3947 = vpop.f32.mrf.mxu0
      %v3948 = vadd.f32 %v3843, %v3947
      %v3949 = vpop.f32.mrf.mxu0
      %3950 = vmatprep.mubr.f32.mxu0 0.0
      %3951 = vmatmul.mubr.f32.gmra.mxu0 %v3243
      %v3952 = vpop.f32.mrf.mxu0
      %v3953 = vadd.f32 %v3848, %v3952
      %v3954 = vpop.f32.mrf.mxu0
      %3955 = vmatprep.mubr.f32.mxu0 0.0
      %3956 = vmatmul.mubr.f32.gmra.mxu0 %v3290
      %v3957 = vpop.f32.mrf.mxu0
      %v3958 = vadd.f32 %v3853, %v3957
      %v3959 = vpop.f32.mrf.mxu0
      %3960 = vdwg.mxu0
      %v3961 = vld [vmem:[%s6] sm:$0x1]
      %v3963 = vlaneseq
      %v3964 = vshrl.u32 %v3963, 7
      %v3965 = vsub.s32 0, %v3964
      %v3966 = vrot.slane %v3961, %v3965
      %v3968 = vmul.f32 %v3923, %v3966
      %v3969 = vmul.f32 %v3928, %v3966
      %v3970 = vmul.f32 %v3933, %v3966
      %v3971 = vmul.f32 %v3938, %v3966
      %v3972 = vmul.f32 %v3943, %v3966
      %v3973 = vmul.f32 %v3948, %v3966
      %v3974 = vmul.f32 %v3953, %v3966
      %v3975 = vmul.f32 %v3958, %v3966
      %v3976 = vld [vmem:[%s7] sm:$0x1]
      %v3978 = vlaneseq
      %v3979 = vshrl.u32 %v3978, 7
      %v3980 = vsub.s32 0, %v3979
      %v3981 = vrot.slane %v3976, %v3980
      %v3983 = vadd.f32 %v3968, %v3981
      %v3984 = vadd.f32 %v3969, %v3981
      %v3985 = vadd.f32 %v3970, %v3981
      %v3986 = vadd.f32 %v3971, %v3981
      %v3987 = vadd.f32 %v3972, %v3981
      %v3988 = vadd.f32 %v3973, %v3981
      %v3989 = vadd.f32 %v3974, %v3981
      %v3990 = vadd.f32 %v3975, %v3981
      %v3991 = vmax.f32 %v3983, 0.0
      %v3992 = vmax.f32 %v3984, 0.0
      %v3993 = vmax.f32 %v3985, 0.0
      %v3994 = vmax.f32 %v3986, 0.0
      %v3995 = vmax.f32 %v3987, 0.0
      %v3996 = vmax.f32 %v3988, 0.0
      %v3997 = vmax.f32 %v3989, 0.0
      %v3998 = vmax.f32 %v3990, 0.0
      %v4007 = vcombine.high %v3991, %v3991
      %v4009 = vunpack.c.l.s4 1983009808
      %v4010 = vunpack.c.0.s8 %v4009
      %v4011 = vlaneseq
      %v4012 = vshrl.u32 %v4011, 7
      %v4013 = vsub.s32 %v4010, %v4012
      %v4014 = vrot.slane %v3991, %v4013
      %v4016 = vunpack.c.l.s4 1983009808
      %v4017 = vunpack.c.0.s8 %v4016
      %v4018 = vlaneseq
      %v4019 = vshrl.u32 %v4018, 7
      %v4020 = vsub.s32 %v4017, %v4019
      %v4021 = vrot.slane %v4007, %v4020
      %v4022 = vcombine.high %v4014, %v4014
      %v4023 = vcombine.high %v4021, %v4021
      %v4024 = vcombine.high %v3992, %v3992
      %v4026 = vunpack.c.l.s4 1983009808
      %v4027 = vunpack.c.0.s8 %v4026
      %v4028 = vlaneseq
      %v4029 = vshrl.u32 %v4028, 7
      %v4030 = vsub.s32 %v4027, %v4029
      %v4031 = vrot.slane %v3992, %v4030
      %v4033 = vunpack.c.l.s4 1983009808
      %v4034 = vunpack.c.0.s8 %v4033
      %v4035 = vlaneseq
      %v4036 = vshrl.u32 %v4035, 7
      %v4037 = vsub.s32 %v4034, %v4036
      %v4038 = vrot.slane %v4024, %v4037
      %v4039 = vcombine.high %v4031, %v4031
      %v4040 = vcombine.high %v4038, %v4038
      %v4041 = vcombine.high %v3993, %v3993
      %v4043 = vunpack.c.l.s4 1983009808
      %v4044 = vunpack.c.0.s8 %v4043
      %v4045 = vlaneseq
      %v4046 = vshrl.u32 %v4045, 7
      %v4047 = vsub.s32 %v4044, %v4046
      %v4048 = vrot.slane %v3993, %v4047
      %v4050 = vunpack.c.l.s4 1983009808
      %v4051 = vunpack.c.0.s8 %v4050
      %v4052 = vlaneseq
      %v4053 = vshrl.u32 %v4052, 7
      %v4054 = vsub.s32 %v4051, %v4053
      %v4055 = vrot.slane %v4041, %v4054
      %v4056 = vcombine.high %v4048, %v4048
      %v4057 = vcombine.high %v4055, %v4055
      %v4058 = vcombine.high %v3994, %v3994
      %v4060 = vunpack.c.l.s4 1983009808
      %v4061 = vunpack.c.0.s8 %v4060
      %v4062 = vlaneseq
      %v4063 = vshrl.u32 %v4062, 7
      %v4064 = vsub.s32 %v4061, %v4063
      %v4065 = vrot.slane %v3994, %v4064
      %v4067 = vunpack.c.l.s4 1983009808
      %v4068 = vunpack.c.0.s8 %v4067
      %v4069 = vlaneseq
      %v4070 = vshrl.u32 %v4069, 7
      %v4071 = vsub.s32 %v4068, %v4070
      %v4072 = vrot.slane %v4058, %v4071
      %v4073 = vcombine.high %v4065, %v4065
      %v4074 = vcombine.high %v4072, %v4072
      %v4075 = vcombine.high %v3995, %v3995
      %v4077 = vunpack.c.l.s4 1983009808
      %v4078 = vunpack.c.0.s8 %v4077
      %v4079 = vlaneseq
      %v4080 = vshrl.u32 %v4079, 7
      %v4081 = vsub.s32 %v4078, %v4080
      %v4082 = vrot.slane %v3995, %v4081
      %v4084 = vunpack.c.l.s4 1983009808
      %v4085 = vunpack.c.0.s8 %v4084
      %v4086 = vlaneseq
      %v4087 = vshrl.u32 %v4086, 7
      %v4088 = vsub.s32 %v4085, %v4087
      %v4089 = vrot.slane %v4075, %v4088
      %v4090 = vcombine.high %v4082, %v4082
      %v4091 = vcombine.high %v4089, %v4089
      %v4092 = vcombine.high %v3996, %v3996
      %v4094 = vunpack.c.l.s4 1983009808
      %v4095 = vunpack.c.0.s8 %v4094
      %v4096 = vlaneseq
      %v4097 = vshrl.u32 %v4096, 7
      %v4098 = vsub.s32 %v4095, %v4097
      %v4099 = vrot.slane %v3996, %v4098
      %v4101 = vunpack.c.l.s4 1983009808
      %v4102 = vunpack.c.0.s8 %v4101
      %v4103 = vlaneseq
      %v4104 = vshrl.u32 %v4103, 7
      %v4105 = vsub.s32 %v4102, %v4104
      %v4106 = vrot.slane %v4092, %v4105
      %v4107 = vcombine.high %v4099, %v4099
      %v4108 = vcombine.high %v4106, %v4106
      %v4109 = vcombine.high %v3997, %v3997
      %v4111 = vunpack.c.l.s4 1983009808
      %v4112 = vunpack.c.0.s8 %v4111
      %v4113 = vlaneseq
      %v4114 = vshrl.u32 %v4113, 7
      %v4115 = vsub.s32 %v4112, %v4114
      %v4116 = vrot.slane %v3997, %v4115
      %v4118 = vunpack.c.l.s4 1983009808
      %v4119 = vunpack.c.0.s8 %v4118
      %v4120 = vlaneseq
      %v4121 = vshrl.u32 %v4120, 7
      %v4122 = vsub.s32 %v4119, %v4121
      %v4123 = vrot.slane %v4109, %v4122
      %v4124 = vcombine.high %v4116, %v4116
      %v4125 = vcombine.high %v4123, %v4123
      %v4126 = vcombine.high %v3998, %v3998
      %v4128 = vunpack.c.l.s4 1983009808
      %v4129 = vunpack.c.0.s8 %v4128
      %v4130 = vlaneseq
      %v4131 = vshrl.u32 %v4130, 7
      %v4132 = vsub.s32 %v4129, %v4131
      %v4133 = vrot.slane %v3998, %v4132
      %v4135 = vunpack.c.l.s4 1983009808
      %v4136 = vunpack.c.0.s8 %v4135
      %v4137 = vlaneseq
      %v4138 = vshrl.u32 %v4137, 7
      %v4139 = vsub.s32 %v4136, %v4138
      %v4140 = vrot.slane %v4126, %v4139
      %v4141 = vcombine.high %v4133, %v4133
      %v4142 = vcombine.high %v4140, %v4140
      %v4175 = vmax.f32 %v4014, %v4031
      %v4176 = vmax.f32 %v4022, %v4039
      %v4177 = vmax.f32 %v4021, %v4038
      %v4178 = vmax.f32 %v4023, %v4040
      %v4179 = vmax.f32 %v4048, %v4065
      %v4180 = vmax.f32 %v4056, %v4073
      %v4181 = vmax.f32 %v4055, %v4072
      %v4182 = vmax.f32 %v4057, %v4074
      %v4183 = vmax.f32 %v4082, %v4099
      %v4184 = vmax.f32 %v4090, %v4107
      %v4185 = vmax.f32 %v4089, %v4106
      %v4186 = vmax.f32 %v4091, %v4108
      %v4187 = vmax.f32 %v4116, %v4133
      %v4188 = vmax.f32 %v4124, %v4141
      %v4189 = vmax.f32 %v4123, %v4140
      %v4190 = vmax.f32 %v4125, %v4142
      %v4207 = vrot.slane %v4175, 7
      %v4208 = vrot.slane %v4207, 2
      %v4209 = vrot.slane %v4176, 7
      %v4210 = vrot.slane %v4209, 2
      %v4211 = vrot.slane %v4177, 7
      %v4212 = vrot.slane %v4211, 2
      %v4213 = vrot.slane %v4178, 7
      %v4214 = vrot.slane %v4213, 2
      %v4215 = vrot.slane %v4179, 7
      %v4216 = vrot.slane %v4215, 2
      %v4217 = vrot.slane %v4180, 7
      %v4218 = vrot.slane %v4217, 2
      %v4219 = vrot.slane %v4181, 7
      %v4220 = vrot.slane %v4219, 2
      %v4221 = vrot.slane %v4182, 7
      %v4222 = vrot.slane %v4221, 2
      %v4223 = vrot.slane %v4183, 7
      %v4224 = vrot.slane %v4223, 2
      %v4225 = vrot.slane %v4184, 7
      %v4226 = vrot.slane %v4225, 2
      %v4227 = vrot.slane %v4185, 7
      %v4228 = vrot.slane %v4227, 2
      %v4229 = vrot.slane %v4186, 7
      %v4230 = vrot.slane %v4229, 2
      %v4231 = vrot.slane %v4187, 7
      %v4232 = vrot.slane %v4231, 2
      %v4233 = vrot.slane %v4188, 7
      %v4234 = vrot.slane %v4233, 2
      %v4235 = vrot.slane %v4189, 7
      %v4236 = vrot.slane %v4235, 2
      %v4237 = vrot.slane %v4190, 7
      %v4238 = vrot.slane %v4237, 2
      %v4255 = vmax.f32 %v4175, %v4208
      %v4256 = vmax.f32 %v4176, %v4210
      %v4257 = vmax.f32 %v4177, %v4212
      %v4258 = vmax.f32 %v4178, %v4214
      %v4259 = vmax.f32 %v4179, %v4216
      %v4260 = vmax.f32 %v4180, %v4218
      %v4261 = vmax.f32 %v4181, %v4220
      %v4262 = vmax.f32 %v4182, %v4222
      %v4263 = vmax.f32 %v4183, %v4224
      %v4264 = vmax.f32 %v4184, %v4226
      %v4265 = vmax.f32 %v4185, %v4228
      %v4266 = vmax.f32 %v4186, %v4230
      %v4267 = vmax.f32 %v4187, %v4232
      %v4268 = vmax.f32 %v4188, %v4234
      %v4269 = vmax.f32 %v4189, %v4236
      %v4270 = vmax.f32 %v4190, %v4238
      %v4271 = vld [vmem:[%s8] sm:$0xff]
      %v4272 = vld [vmem:[%s8 + $0x8] sm:$0xff]
      %v4273 = vld [vmem:[%s8 + $0x10] sm:$0xff]
      %v4274 = vld [vmem:[%s8 + $0x18] sm:$0xff]
      %v4275 = vld [vmem:[%s8 + $0x20] sm:$0xf]
      %v4292 = vlaneseq
      %v4293 = vshrl.u32 %v4292, 7
      %v4294 = vsub.s32 0, %v4293
      %v4295 = vrot.slane %v4255, %v4294
      %v4296 = vlaneseq
      %v4297 = vshrl.u32 %v4296, 7
      %v4298 = vsub.s32 0, %v4297
      %v4299 = vrot.slane %v4256, %v4298
      %v4300 = vlaneseq
      %v4301 = vshrl.u32 %v4300, 7
      %v4302 = vsub.s32 0, %v4301
      %v4303 = vrot.slane %v4257, %v4302
      %v4304 = vlaneseq
      %v4305 = vshrl.u32 %v4304, 7
      %v4306 = vsub.s32 0, %v4305
      %v4307 = vrot.slane %v4258, %v4306
      %v4308 = vlaneseq
      %v4309 = vshrl.u32 %v4308, 7
      %v4310 = vsub.s32 0, %v4309
      %v4311 = vrot.slane %v4259, %v4310
      %v4312 = vlaneseq
      %v4313 = vshrl.u32 %v4312, 7
      %v4314 = vsub.s32 0, %v4313
      %v4315 = vrot.slane %v4260, %v4314
      %v4316 = vlaneseq
      %v4317 = vshrl.u32 %v4316, 7
      %v4318 = vsub.s32 0, %v4317
      %v4319 = vrot.slane %v4261, %v4318
      %v4320 = vlaneseq
      %v4321 = vshrl.u32 %v4320, 7
      %v4322 = vsub.s32 0, %v4321
      %v4323 = vrot.slane %v4262, %v4322
      %v4324 = vlaneseq
      %v4325 = vshrl.u32 %v4324, 7
      %v4326 = vsub.s32 0, %v4325
      %v4327 = vrot.slane %v4263, %v4326
      %v4328 = vlaneseq
      %v4329 = vshrl.u32 %v4328, 7
      %v4330 = vsub.s32 0, %v4329
      %v4331 = vrot.slane %v4264, %v4330
      %v4332 = vlaneseq
      %v4333 = vshrl.u32 %v4332, 7
      %v4334 = vsub.s32 0, %v4333
      %v4335 = vrot.slane %v4265, %v4334
      %v4336 = vlaneseq
      %v4337 = vshrl.u32 %v4336, 7
      %v4338 = vsub.s32 0, %v4337
      %v4339 = vrot.slane %v4266, %v4338
      %v4340 = vlaneseq
      %v4341 = vshrl.u32 %v4340, 7
      %v4342 = vsub.s32 0, %v4341
      %v4343 = vrot.slane %v4267, %v4342
      %v4344 = vlaneseq
      %v4345 = vshrl.u32 %v4344, 7
      %v4346 = vsub.s32 0, %v4345
      %v4347 = vrot.slane %v4268, %v4346
      %v4348 = vlaneseq
      %v4349 = vshrl.u32 %v4348, 7
      %v4350 = vsub.s32 0, %v4349
      %v4351 = vrot.slane %v4269, %v4350
      %v4352 = vlaneseq
      %v4353 = vshrl.u32 %v4352, 7
      %v4354 = vsub.s32 0, %v4353
      %v4355 = vrot.slane %v4270, %v4354
      %v4356 = vsel %vm2355, %v4299, %v4295
      %v4357 = vsel %vm2357, %v4303, %v4356
      %v4358 = vsel %vm2359, %v4307, %v4357
      %v4359 = vsel %vm2361, %v4311, %v4358
      %v4360 = vsel %vm2363, %v4315, %v4359
      %v4361 = vsel %vm2365, %v4319, %v4360
      %v4362 = vsel %vm2367, %v4323, %v4361
      %v4363 = vsel %vm2355, %v4331, %v4327
      %v4364 = vsel %vm2357, %v4335, %v4363
      %v4365 = vsel %vm2359, %v4339, %v4364
      %v4366 = vsel %vm2361, %v4343, %v4365
      %v4367 = vsel %vm2363, %v4347, %v4366
      %v4368 = vsel %vm2365, %v4351, %v4367
      %v4369 = vsel %vm2367, %v4355, %v4368
      %vm4372 = vcmask 130048
      %v4374 = vsel %vm4372, %v4271, 0
      %v4377 = vsel %vm4372, %v4272, 0
      %v4380 = vsel %vm4372, %v4273, 0
      %v4383 = vsel %vm4372, %v4274, 0
      %v4386 = vsel %vm4372, %v4275, 0
      %4388 = vmatprep.subr.mxu0 0.0
      %4389 = vmatpush1.msra.mxu0 0.0
      %4390 = vmatprep.subr.mxu0 0.0
      %4391 = vmatpush1.msra.mxu0 0.0
      %4392 = vmatprep.subr.mxu0 0.0
      %4393 = vmatpush1.msra.mxu0 0.0
      %4394 = vmatprep.subr.mxu0 0.0
      %4395 = vmatpush1.msra.mxu0 0.0
      %4396 = vmatprep.subr.mxu0 0.0
      %4397 = vmatpush1.msra.mxu0 0.0
      %4398 = vmatprep.subr.mxu0 0.0
      %4399 = vmatpush1.msra.mxu0 0.0
      %4400 = vmatprep.subr.mxu0 0.0
      %4401 = vmatpush1.msra.mxu0 0.0
      %4402 = vmatprep.subr.mxu0 0.0
      %4403 = vmatpush1.msra.mxu0 0.0
      %4404 = vmatprep.subr.mxu0 0.0
      %4405 = vmatpush1.msra.mxu0 0.0
      %4406 = vmatprep.subr.mxu0 0.0
      %4407 = vmatpush1.msra.mxu0 0.0
      %4408 = vmatprep.subr.mxu0 0.0
      %4409 = vmatpush1.msra.mxu0 0.0
      %4410 = vmatprep.subr.mxu0 0.0
      %4411 = vmatpush1.msra.mxu0 0.0
      %4412 = vmatprep.subr.mxu0 0.0
      %4413 = vmatpush1.msra.mxu0 0.0
      %4414 = vmatprep.subr.mxu0 0.0
      %4415 = vmatpush1.msra.mxu0 0.0
      %4416 = vmatprep.subr.mxu0 0.0
      %4417 = vmatpush1.msra.mxu0 %v4369
      %4418 = vmatprep.subr.mxu0 0.0
      %4419 = vmatpush1.msra.mxu0 %v4362
      %4420 = vmatprep.subr.mxu0 0.0
      %4421 = vmatpush2.msra.mxu0 0.0
      %4422 = vmatprep.subr.mxu0 0.0
      %4423 = vmatpush2.msra.mxu0 0.0
      %4424 = vmatprep.subr.mxu0 0.0
      %4425 = vmatpush2.msra.mxu0 0.0
      %4426 = vmatprep.subr.mxu0 0.0
      %4427 = vmatpush2.msra.mxu0 0.0
      %4428 = vmatprep.subr.mxu0 0.0
      %4429 = vmatpush2.msra.mxu0 0.0
      %4430 = vmatprep.subr.mxu0 0.0
      %4431 = vmatpush2.msra.mxu0 0.0
      %4432 = vmatprep.subr.mxu0 0.0
      %4433 = vmatpush2.msra.mxu0 0.0
      %4434 = vmatprep.subr.mxu0 0.0
      %4435 = vmatpush2.msra.mxu0 0.0
      %4436 = vmatprep.subr.mxu0 0.0
      %4437 = vmatpush2.msra.mxu0 0.0
      %4438 = vmatprep.subr.mxu0 0.0
      %4439 = vmatpush2.msra.mxu0 0.0
      %4440 = vmatprep.subr.mxu0 0.0
      %4441 = vmatpush2.msra.mxu0 0.0
      %4442 = vmatprep.subr.mxu0 0.0
      %4443 = vmatpush2.msra.mxu0 0.0
      %4444 = vmatprep.subr.mxu0 0.0
      %4445 = vmatpush2.msra.mxu0 0.0
      %4446 = vmatprep.subr.mxu0 0.0
      %4447 = vmatpush2.msra.mxu0 0.0
      %4448 = vmatprep.subr.mxu0 0.0
      %4449 = vmatpush2.msra.mxu0 0.0
      %4450 = vmatprep.subr.mxu0 0.0
      %4451 = vmatpush2.msra.mxu0 0.0
      %4452 = vmatprep.mubr.f32.mxu0 0.0
      %4453 = vmatmul.mubr.f32.gmra.mxu0 %v4374
      %v4454 = vpop.f32.mrf.mxu0
      %v4455 = vadd.f32 0.0, %v4454
      %v4456 = vpop.f32.mrf.mxu0
      %4457 = vmatprep.mubr.f32.mxu0 0.0
      %4458 = vmatmul.mubr.f32.gmra.mxu0 %v4377
      %v4459 = vpop.f32.mrf.mxu0
      %v4460 = vadd.f32 0.0, %v4459
      %v4461 = vpop.f32.mrf.mxu0
      %4462 = vmatprep.mubr.f32.mxu0 0.0
      %4463 = vmatmul.mubr.f32.gmra.mxu0 %v4380
      %v4464 = vpop.f32.mrf.mxu0
      %v4465 = vadd.f32 0.0, %v4464
      %v4466 = vpop.f32.mrf.mxu0
      %4467 = vmatprep.mubr.f32.mxu0 0.0
      %4468 = vmatmul.mubr.f32.gmra.mxu0 %v4383
      %v4469 = vpop.f32.mrf.mxu0
      %v4470 = vadd.f32 0.0, %v4469
      %v4471 = vpop.f32.mrf.mxu0
      %4472 = vmatprep.mubr.f32.mxu0 0.0
      %4473 = vmatmul.mubr.f32.gmra.mxu0 %v4386
      %v4474 = vpop.f32.mrf.mxu0
      %v4475 = vadd.f32 0.0, %v4474
      %v4476 = vpop.f32.mrf.mxu0
      %4477 = vdwg.mxu0
      %v4483 = vcombine.high %v4455, %v4455
      %v4485 = vunpack.c.l.s4 1983009808
      %v4486 = vunpack.c.0.s8 %v4485
      %v4487 = vlaneseq
      %v4488 = vshrl.u32 %v4487, 7
      %v4489 = vsub.s32 %v4486, %v4488
      %v4490 = vrot.slane %v4455, %v4489
      %v4492 = vunpack.c.l.s4 1983009808
      %v4493 = vunpack.c.0.s8 %v4492
      %v4494 = vlaneseq
      %v4495 = vshrl.u32 %v4494, 7
      %v4496 = vsub.s32 %v4493, %v4495
      %v4497 = vrot.slane %v4483, %v4496
      %v4498 = vcombine.high %v4490, %v4490
      %v4499 = vcombine.high %v4497, %v4497
      %v4500 = vcombine.high %v4460, %v4460
      %v4502 = vunpack.c.l.s4 1983009808
      %v4503 = vunpack.c.0.s8 %v4502
      %v4504 = vlaneseq
      %v4505 = vshrl.u32 %v4504, 7
      %v4506 = vsub.s32 %v4503, %v4505
      %v4507 = vrot.slane %v4460, %v4506
      %v4509 = vunpack.c.l.s4 1983009808
      %v4510 = vunpack.c.0.s8 %v4509
      %v4511 = vlaneseq
      %v4512 = vshrl.u32 %v4511, 7
      %v4513 = vsub.s32 %v4510, %v4512
      %v4514 = vrot.slane %v4500, %v4513
      %v4515 = vcombine.high %v4507, %v4507
      %v4516 = vcombine.high %v4514, %v4514
      %v4517 = vcombine.high %v4465, %v4465
      %v4519 = vunpack.c.l.s4 1983009808
      %v4520 = vunpack.c.0.s8 %v4519
      %v4521 = vlaneseq
      %v4522 = vshrl.u32 %v4521, 7
      %v4523 = vsub.s32 %v4520, %v4522
      %v4524 = vrot.slane %v4465, %v4523
      %v4526 = vunpack.c.l.s4 1983009808
      %v4527 = vunpack.c.0.s8 %v4526
      %v4528 = vlaneseq
      %v4529 = vshrl.u32 %v4528, 7
      %v4530 = vsub.s32 %v4527, %v4529
      %v4531 = vrot.slane %v4517, %v4530
      %v4532 = vcombine.high %v4524, %v4524
      %v4533 = vcombine.high %v4531, %v4531
      %v4534 = vcombine.high %v4470, %v4470
      %v4536 = vunpack.c.l.s4 1983009808
      %v4537 = vunpack.c.0.s8 %v4536
      %v4538 = vlaneseq
      %v4539 = vshrl.u32 %v4538, 7
      %v4540 = vsub.s32 %v4537, %v4539
      %v4541 = vrot.slane %v4470, %v4540
      %v4543 = vunpack.c.l.s4 1983009808
      %v4544 = vunpack.c.0.s8 %v4543
      %v4545 = vlaneseq
      %v4546 = vshrl.u32 %v4545, 7
      %v4547 = vsub.s32 %v4544, %v4546
      %v4548 = vrot.slane %v4534, %v4547
      %v4549 = vcombine.high %v4541, %v4541
      %v4550 = vcombine.high %v4548, %v4548
      %v4552 = vunpack.c.l.s4 1983009808
      %v4553 = vunpack.c.0.s8 %v4552
      %v4554 = vlaneseq
      %v4555 = vshrl.u32 %v4554, 7
      %v4556 = vsub.s32 %v4553, %v4555
      %v4557 = vrot.slane %v4475, %v4556
      %v4558 = vcombine.high %v4557, %v4557
      %v4559 = vcombine.low %v4490, %v4498
      %v4561 = vunpack.c.l.s4 1983009808
      %v4562 = vunpack.c.0.s8 %v4561
      %v4563 = vlaneseq
      %v4564 = vshrl.u32 %v4563, 7
      %v4565 = vsub.s32 %v4562, %v4564
      %v4566 = vrot.slane %v4559, %v4565
      %v4567 = vcombine.low %v4499, %v4507
      %v4569 = vunpack.c.l.s4 1983009808
      %v4570 = vunpack.c.0.s8 %v4569
      %v4571 = vlaneseq
      %v4572 = vshrl.u32 %v4571, 7
      %v4573 = vsub.s32 %v4570, %v4572
      %v4574 = vrot.slane %v4567, %v4573
      %v4575 = vcombine.low %v4514, %v4516
      %v4577 = vunpack.c.l.s4 1983009808
      %v4578 = vunpack.c.0.s8 %v4577
      %v4579 = vlaneseq
      %v4580 = vshrl.u32 %v4579, 7
      %v4581 = vsub.s32 %v4578, %v4580
      %v4582 = vrot.slane %v4575, %v4581
      %v4583 = vcombine.low %v4532, %v4531
      %v4585 = vunpack.c.l.s4 1983009808
      %v4586 = vunpack.c.0.s8 %v4585
      %v4587 = vlaneseq
      %v4588 = vshrl.u32 %v4587, 7
      %v4589 = vsub.s32 %v4586, %v4588
      %v4590 = vrot.slane %v4583, %v4589
      %v4592 = vunpack.c.l.s4 1983009808
      %v4593 = vunpack.c.0.s8 %v4592
      %v4594 = vlaneseq
      %v4595 = vshrl.u32 %v4594, 7
      %v4596 = vsub.s32 %v4593, %v4595
      %v4597 = vrot.slane %v4497, %v4596
      %v4598 = vcombine.low %v4566, %v4597
      %v4600 = vunpack.c.l.s4 1983009808
      %v4601 = vunpack.c.0.s8 %v4600
      %v4602 = vlaneseq
      %v4603 = vshrl.u32 %v4602, 7
      %v4604 = vsub.s32 %v4601, %v4603
      %v4605 = vrot.slane %v4515, %v4604
      %v4606 = vcombine.low %v4574, %v4605
      %v4608 = vunpack.c.l.s4 1983009808
      %v4609 = vunpack.c.0.s8 %v4608
      %v4610 = vlaneseq
      %v4611 = vshrl.u32 %v4610, 7
      %v4612 = vsub.s32 %v4609, %v4611
      %v4613 = vrot.slane %v4524, %v4612
      %v4614 = vcombine.low %v4582, %v4613
      %v4616 = vunpack.c.l.s4 1983009808
      %v4617 = vunpack.c.0.s8 %v4616
      %v4618 = vlaneseq
      %v4619 = vshrl.u32 %v4618, 7
      %v4620 = vsub.s32 %v4617, %v4619
      %v4621 = vrot.slane %v4533, %v4620
      %v4622 = vcombine.low %v4590, %v4621
      %v4623 = vrot.slane %v4598, 1
      %v4624 = vrot.slane %v4606, 1
      %v4625 = vrot.slane %v4614, 1
      %v4626 = vrot.slane %v4622, 1
      %v4627 = vcombine.low %v4498, %v4497
      %v4629 = vunpack.c.l.s4 1983009808
      %v4630 = vunpack.c.0.s8 %v4629
      %v4631 = vlaneseq
      %v4632 = vshrl.u32 %v4631, 7
      %v4633 = vsub.s32 %v4630, %v4632
      %v4634 = vrot.slane %v4627, %v4633
      %v4635 = vcombine.low %v4507, %v4515
      %v4637 = vunpack.c.l.s4 1983009808
      %v4638 = vunpack.c.0.s8 %v4637
      %v4639 = vlaneseq
      %v4640 = vshrl.u32 %v4639, 7
      %v4641 = vsub.s32 %v4638, %v4640
      %v4642 = vrot.slane %v4635, %v4641
      %v4643 = vcombine.low %v4516, %v4524
      %v4645 = vunpack.c.l.s4 1983009808
      %v4646 = vunpack.c.0.s8 %v4645
      %v4647 = vlaneseq
      %v4648 = vshrl.u32 %v4647, 7
      %v4649 = vsub.s32 %v4646, %v4648
      %v4650 = vrot.slane %v4643, %v4649
      %v4651 = vcombine.low %v4531, %v4533
      %v4653 = vunpack.c.l.s4 1983009808
      %v4654 = vunpack.c.0.s8 %v4653
      %v4655 = vlaneseq
      %v4656 = vshrl.u32 %v4655, 7
      %v4657 = vsub.s32 %v4654, %v4656
      %v4658 = vrot.slane %v4651, %v4657
      %v4659 = vcombine.low %v4541, %v4549
      %v4661 = vunpack.c.l.s4 1983009808
      %v4662 = vunpack.c.0.s8 %v4661
      %v4663 = vlaneseq
      %v4664 = vshrl.u32 %v4663, 7
      %v4665 = vsub.s32 %v4662, %v4664
      %v4666 = vrot.slane %v4659, %v4665
      %v4668 = vunpack.c.l.s4 1983009808
      %v4669 = vunpack.c.0.s8 %v4668
      %v4670 = vlaneseq
      %v4671 = vshrl.u32 %v4670, 7
      %v4672 = vsub.s32 %v4669, %v4671
      %v4673 = vrot.slane %v4548, %v4672
      %v4674 = vcombine.low %v4666, %v4673
      %v4675 = vrot.slane %v4674, 1
      %v4676 = vcombine.low %v4549, %v4548
      %v4678 = vunpack.c.l.s4 1983009808
      %v4679 = vunpack.c.0.s8 %v4678
      %v4680 = vlaneseq
      %v4681 = vshrl.u32 %v4680, 7
      %v4682 = vsub.s32 %v4679, %v4681
      %v4683 = vrot.slane %v4676, %v4682
      %v4684 = vcombine.low %v4550, %v4557
      %v4686 = vunpack.c.l.s4 1983009808
      %v4687 = vunpack.c.0.s8 %v4686
      %v4688 = vlaneseq
      %v4689 = vshrl.u32 %v4688, 7
      %v4690 = vsub.s32 %v4687, %v4689
      %v4691 = vrot.slane %v4684, %v4690
      %v4693 = vunpack.c.l.s4 1983009808
      %v4694 = vunpack.c.0.s8 %v4693
      %v4695 = vlaneseq
      %v4696 = vshrl.u32 %v4695, 7
      %v4697 = vsub.s32 %v4694, %v4696
      %v4698 = vrot.slane %v4558, %v4697
      %v4699 = vcombine.low %v4691, %v4698
      %v4700 = vrot.slane %v4699, 1
      %v4701 = vcombine.low %v4557, %v4558
      %v4703 = vunpack.c.l.s4 1983009808
      %v4704 = vunpack.c.0.s8 %v4703
      %v4705 = vlaneseq
      %v4706 = vshrl.u32 %v4705, 7
      %v4707 = vsub.s32 %v4704, %v4706
      %v4708 = vrot.slane %v4701, %v4707
      %v4709 = vcombine.low %v4566, %v4623
      %v4710 = vcombine.low %v4634, %v4574
      %v4711 = vcombine.low %v4624, %v4642
      %v4712 = vcombine.low %v4582, %v4625
      %v4713 = vcombine.low %v4574, %v4624
      %v4714 = vcombine.low %v4642, %v4582
      %v4715 = vcombine.low %v4625, %v4650
      %v4716 = vcombine.low %v4590, %v4626
      %v4717 = vcombine.low %v4650, %v4590
      %v4718 = vcombine.low %v4626, %v4658
      %v4719 = vcombine.low %v4666, %v4675
      %v4720 = vcombine.low %v4658, %v4666
      %v4721 = vcombine.low %v4675, %v4683
      %v4722 = vcombine.low %v4691, %v4700
      %v4723 = vld [vmem:[%s9] sm:$0xff]
      %v4724 = vld [vmem:[%s9 + $0x8] sm:$0xff]
      %v4725 = vld [vmem:[%s9 + $0x10] sm:$0xff]
      %v4726 = vld [vmem:[%s9 + $0x18] sm:$0xff]
      %v4727 = vld [vmem:[%s9 + $0x20] sm:$0xff]
      %v4728 = vld [vmem:[%s9 + $0x28] sm:$0xff]
      %v4729 = vld [vmem:[%s9 + $0x30] sm:$0xff]
      %v4730 = vld [vmem:[%s9 + $0x38] sm:$0xff]
      %v4731 = vld [vmem:[%s9 + $0x40] sm:$0xff]
      %v4732 = vld [vmem:[%s9 + $0x48] sm:$0xff]
      %v4733 = vld [vmem:[%s9 + $0x50] sm:$0xff]
      %v4734 = vld [vmem:[%s9 + $0x58] sm:$0xff]
      %v4735 = vld [vmem:[%s9 + $0x60] sm:$0xff]
      %v4736 = vld [vmem:[%s9 + $0x68] sm:$0xff]
      %v4737 = vld [vmem:[%s9 + $0x70] sm:$0xff]
      %v4738 = vld [vmem:[%s9 + $0x78] sm:$0xff]
      %v4739 = vld [vmem:[%s9 + $0x80] sm:$0xff]
      %v4740 = vld [vmem:[%s9 + $0x88] sm:$0xff]
      %v4741 = vld [vmem:[%s9 + $0x90] sm:$0xff]
      %v4742 = vld [vmem:[%s9 + $0x98] sm:$0xff]
      %v4743 = vld [vmem:[%s9 + $0xa0] sm:$0xff]
      %v4744 = vld [vmem:[%s9 + $0xa8] sm:$0xff]
      %v4745 = vld [vmem:[%s9 + $0xb0] sm:$0xff]
      %v4746 = vld [vmem:[%s9 + $0xb8] sm:$0xff]
      %v4747 = vld [vmem:[%s9 + $0xc0] sm:$0xff]
      %v4748 = vld [vmem:[%s9 + $0xc8] sm:$0xff]
      %v4749 = vld [vmem:[%s9 + $0xd0] sm:$0xff]
      %v4750 = vld [vmem:[%s9 + $0xd8] sm:$0xff]
      %v4751 = vld [vmem:[%s9 + $0xe0] sm:$0xff]
      %v4752 = vld [vmem:[%s9 + $0xe8] sm:$0xff]
      %v4753 = vld [vmem:[%s9 + $0xf0] sm:$0xff]
      %v4754 = vld [vmem:[%s9 + $0xf8] sm:$0xff]
      %v4755 = vld [vmem:[%s9 + $0x100] sm:$0xff]
      %v4756 = vld [vmem:[%s9 + $0x108] sm:$0xff]
      %v4757 = vld [vmem:[%s9 + $0x110] sm:$0xff]
      %v4758 = vld [vmem:[%s9 + $0x118] sm:$0xff]
      %v4759 = vld [vmem:[%s9 + $0x120] sm:$0xff]
      %v4760 = vld [vmem:[%s9 + $0x128] sm:$0xff]
      %v4761 = vld [vmem:[%s9 + $0x130] sm:$0xff]
      %v4762 = vld [vmem:[%s9 + $0x138] sm:$0xff]
      %v4763 = vld [vmem:[%s9 + $0x140] sm:$0xff]
      %v4764 = vld [vmem:[%s9 + $0x148] sm:$0xff]
      %v4765 = vld [vmem:[%s9 + $0x150] sm:$0xff]
      %v4766 = vld [vmem:[%s9 + $0x158] sm:$0xff]
      %v4767 = vld [vmem:[%s9 + $0x160] sm:$0xff]
      %v4768 = vld [vmem:[%s9 + $0x168] sm:$0xff]
      %v4769 = vld [vmem:[%s9 + $0x170] sm:$0xff]
      %v4770 = vld [vmem:[%s9 + $0x178] sm:$0xff]
      %v4771 = vld [vmem:[%s9 + $0x180] sm:$0xff]
      %v4772 = vld [vmem:[%s9 + $0x188] sm:$0xff]
      %v4773 = vld [vmem:[%s9 + $0x190] sm:$0xff]
      %v4774 = vld [vmem:[%s9 + $0x198] sm:$0xff]
      %v4775 = vld [vmem:[%s9 + $0x1a0] sm:$0xff]
      %v4776 = vld [vmem:[%s9 + $0x1a8] sm:$0xff]
      %v4777 = vld [vmem:[%s9 + $0x1b0] sm:$0xff]
      %v4778 = vld [vmem:[%s9 + $0x1b8] sm:$0xff]
      %v4779 = vld [vmem:[%s9 + $0x1c0] sm:$0xff]
      %v4780 = vld [vmem:[%s9 + $0x1c8] sm:$0xff]
      %v4781 = vld [vmem:[%s9 + $0x1d0] sm:$0xff]
      %v4782 = vld [vmem:[%s9 + $0x1d8] sm:$0xff]
      %v4783 = vld [vmem:[%s9 + $0x1e0] sm:$0xff]
      %v4784 = vld [vmem:[%s9 + $0x1e8] sm:$0xff]
      %v4785 = vld [vmem:[%s9 + $0x1f0] sm:$0xff]
      %v4786 = vld [vmem:[%s9 + $0x1f8] sm:$0xff]
      %v4787 = vld [vmem:[%s9 + $0x200] sm:$0xff]
      %v4788 = vld [vmem:[%s9 + $0x208] sm:$0xff]
      %v4789 = vld [vmem:[%s9 + $0x210] sm:$0xff]
      %v4790 = vld [vmem:[%s9 + $0x218] sm:$0xff]
      %v4791 = vld [vmem:[%s9 + $0x220] sm:$0xff]
      %v4792 = vld [vmem:[%s9 + $0x228] sm:$0xff]
      %v4793 = vld [vmem:[%s9 + $0x230] sm:$0xff]
      %v4794 = vld [vmem:[%s9 + $0x238] sm:$0xff]
      %v4795 = vld [vmem:[%s9 + $0x240] sm:$0xff]
      %v4796 = vld [vmem:[%s9 + $0x248] sm:$0xff]
      %v4797 = vld [vmem:[%s9 + $0x250] sm:$0xff]
      %v4798 = vld [vmem:[%s9 + $0x258] sm:$0xff]
      %v4799 = vld [vmem:[%s9 + $0x260] sm:$0xff]
      %v4800 = vld [vmem:[%s9 + $0x268] sm:$0xff]
      %v4801 = vld [vmem:[%s9 + $0x270] sm:$0xff]
      %v4802 = vld [vmem:[%s9 + $0x278] sm:$0xff]
      %v4803 = vld [vmem:[%s9 + $0x280] sm:$0xff]
      %v4804 = vld [vmem:[%s9 + $0x288] sm:$0xff]
      %v4805 = vld [vmem:[%s9 + $0x290] sm:$0xff]
      %v4806 = vld [vmem:[%s9 + $0x298] sm:$0xff]
      %v4807 = vld [vmem:[%s9 + $0x2a0] sm:$0xff]
      %v4808 = vld [vmem:[%s9 + $0x2a8] sm:$0xff]
      %v4809 = vld [vmem:[%s9 + $0x2b0] sm:$0xff]
      %v4810 = vld [vmem:[%s9 + $0x2b8] sm:$0xff]
      %v4811 = vld [vmem:[%s9 + $0x2c0] sm:$0xff]
      %v4812 = vld [vmem:[%s9 + $0x2c8] sm:$0xff]
      %v4813 = vld [vmem:[%s9 + $0x2d0] sm:$0xff]
      %v4814 = vld [vmem:[%s9 + $0x2d8] sm:$0xff]
      %v4815 = vld [vmem:[%s9 + $0x2e0] sm:$0xff]
      %v4816 = vld [vmem:[%s9 + $0x2e8] sm:$0xff]
      %v4817 = vld [vmem:[%s9 + $0x2f0] sm:$0xff]
      %v4818 = vld [vmem:[%s9 + $0x2f8] sm:$0xff]
      %v4819 = vld [vmem:[%s9 + $0x300] sm:$0xff]
      %v4820 = vld [vmem:[%s9 + $0x308] sm:$0xff]
      %v4821 = vld [vmem:[%s9 + $0x310] sm:$0xff]
      %v4822 = vld [vmem:[%s9 + $0x318] sm:$0xff]
      %v4823 = vld [vmem:[%s9 + $0x320] sm:$0xff]
      %v4824 = vld [vmem:[%s9 + $0x328] sm:$0xff]
      %v4825 = vld [vmem:[%s9 + $0x330] sm:$0xff]
      %v4826 = vld [vmem:[%s9 + $0x338] sm:$0xff]
      %v4827 = vld [vmem:[%s9 + $0x340] sm:$0xff]
      %v4828 = vld [vmem:[%s9 + $0x348] sm:$0xff]
      %v4829 = vld [vmem:[%s9 + $0x350] sm:$0xff]
      %v4830 = vld [vmem:[%s9 + $0x358] sm:$0xff]
      %v4831 = vld [vmem:[%s9 + $0x360] sm:$0xff]
      %v4832 = vld [vmem:[%s9 + $0x368] sm:$0xff]
      %v4833 = vld [vmem:[%s9 + $0x370] sm:$0xff]
      %v4834 = vld [vmem:[%s9 + $0x378] sm:$0xff]
      %v4835 = vld [vmem:[%s9 + $0x380] sm:$0xff]
      %v4836 = vld [vmem:[%s9 + $0x388] sm:$0xff]
      %v4837 = vld [vmem:[%s9 + $0x390] sm:$0xff]
      %v4838 = vld [vmem:[%s9 + $0x398] sm:$0xff]
      %v4839 = vld [vmem:[%s9 + $0x3a0] sm:$0xff]
      %v4840 = vld [vmem:[%s9 + $0x3a8] sm:$0xff]
      %v4841 = vld [vmem:[%s9 + $0x3b0] sm:$0xff]
      %v4842 = vld [vmem:[%s9 + $0x3b8] sm:$0xff]
      %v4843 = vld [vmem:[%s9 + $0x3c0] sm:$0xff]
      %v4844 = vld [vmem:[%s9 + $0x3c8] sm:$0xff]
      %v4845 = vld [vmem:[%s9 + $0x3d0] sm:$0xff]
      %v4846 = vld [vmem:[%s9 + $0x3d8] sm:$0xff]
      %v4847 = vld [vmem:[%s9 + $0x3e0] sm:$0xff]
      %v4848 = vld [vmem:[%s9 + $0x3e8] sm:$0xff]
      %v4849 = vld [vmem:[%s9 + $0x3f0] sm:$0xff]
      %v4850 = vld [vmem:[%s9 + $0x3f8] sm:$0xff]
      %v4851 = vld [vmem:[%s9 + $0x400] sm:$0xff]
      %v4852 = vld [vmem:[%s9 + $0x408] sm:$0xff]
      %v4853 = vld [vmem:[%s9 + $0x410] sm:$0xff]
      %v4854 = vld [vmem:[%s9 + $0x418] sm:$0xff]
      %v4855 = vld [vmem:[%s9 + $0x420] sm:$0xff]
      %v4856 = vld [vmem:[%s9 + $0x428] sm:$0xff]
      %v4857 = vld [vmem:[%s9 + $0x430] sm:$0xff]
      %v4858 = vld [vmem:[%s9 + $0x438] sm:$0xff]
      %v4859 = vld [vmem:[%s9 + $0x440] sm:$0xff]
      %v4860 = vld [vmem:[%s9 + $0x448] sm:$0xff]
      %v4861 = vld [vmem:[%s9 + $0x450] sm:$0xff]
      %v4862 = vld [vmem:[%s9 + $0x458] sm:$0xff]
      %v4863 = vld [vmem:[%s9 + $0x460] sm:$0xff]
      %v4864 = vld [vmem:[%s9 + $0x468] sm:$0xff]
      %v4865 = vld [vmem:[%s9 + $0x470] sm:$0xff]
      %v4866 = vld [vmem:[%s9 + $0x478] sm:$0xff]
      %v4867 = vcombine.low %v4709, %v4713
      %v4868 = vcombine.high %v4709, %v4713
      %v4869 = vcombine.low %v4710, %v4714
      %v4870 = vcombine.high %v4710, %v4714
      %v4871 = vcombine.low %v4711, %v4715
      %v4872 = vcombine.high %v4711, %v4715
      %v4873 = vcombine.low %v4712, %v4716
      %v4874 = vcombine.high %v4712, %v4716
      %v4875 = vcombine.low %v4650, %v4658
      %v4876 = vcombine.low %v4717, %v4720
      %v4877 = vcombine.high %v4717, %v4720
      %v4878 = vcombine.low %v4718, %v4721
      %v4879 = vcombine.high %v4718, %v4721
      %v4880 = vcombine.low %v4719, %v4722
      %v4881 = vcombine.high %v4719, %v4722
      %v4882 = vcombine.low %v4683, %v4708
      %4899 = vmatprep.subr.mxu0 0.0
      %4900 = vmatpush1.msra.mxu0 %v4738
      %4901 = vmatprep.subr.mxu0 0.0
      %4902 = vmatpush1.msra.mxu0 %v4737
      %4903 = vmatprep.subr.mxu0 0.0
      %4904 = vmatpush1.msra.mxu0 %v4736
      %4905 = vmatprep.subr.mxu0 0.0
      %4906 = vmatpush1.msra.mxu0 %v4735
      %4907 = vmatprep.subr.mxu0 0.0
      %4908 = vmatpush1.msra.mxu0 %v4734
      %4909 = vmatprep.subr.mxu0 0.0
      %4910 = vmatpush1.msra.mxu0 %v4733
      %4911 = vmatprep.subr.mxu0 0.0
      %4912 = vmatpush1.msra.mxu0 %v4732
      %4913 = vmatprep.subr.mxu0 0.0
      %4914 = vmatpush1.msra.mxu0 %v4731
      %4915 = vmatprep.subr.mxu0 0.0
      %4916 = vmatpush1.msra.mxu0 %v4730
      %4917 = vmatprep.subr.mxu0 0.0
      %4918 = vmatpush1.msra.mxu0 %v4729
      %4919 = vmatprep.subr.mxu0 0.0
      %4920 = vmatpush1.msra.mxu0 %v4728
      %4921 = vmatprep.subr.mxu0 0.0
      %4922 = vmatpush1.msra.mxu0 %v4727
      %4923 = vmatprep.subr.mxu0 0.0
      %4924 = vmatpush1.msra.mxu0 %v4726
      %4925 = vmatprep.subr.mxu0 0.0
      %4926 = vmatpush1.msra.mxu0 %v4725
      %4927 = vmatprep.subr.mxu0 0.0
      %4928 = vmatpush1.msra.mxu0 %v4724
      %4929 = vmatprep.subr.mxu0 0.0
      %4930 = vmatpush1.msra.mxu0 %v4723
      %4931 = vmatprep.subr.mxu0 0.0
      %4932 = vmatpush2.msra.mxu0 %v4754
      %4933 = vmatprep.subr.mxu0 0.0
      %4934 = vmatpush2.msra.mxu0 %v4753
      %4935 = vmatprep.subr.mxu0 0.0
      %4936 = vmatpush2.msra.mxu0 %v4752
      %4937 = vmatprep.subr.mxu0 0.0
      %4938 = vmatpush2.msra.mxu0 %v4751
      %4939 = vmatprep.subr.mxu0 0.0
      %4940 = vmatpush2.msra.mxu0 %v4750
      %4941 = vmatprep.subr.mxu0 0.0
      %4942 = vmatpush2.msra.mxu0 %v4749
      %4943 = vmatprep.subr.mxu0 0.0
      %4944 = vmatpush2.msra.mxu0 %v4748
      %4945 = vmatprep.subr.mxu0 0.0
      %4946 = vmatpush2.msra.mxu0 %v4747
      %4947 = vmatprep.subr.mxu0 0.0
      %4948 = vmatpush2.msra.mxu0 %v4746
      %4949 = vmatprep.subr.mxu0 0.0
      %4950 = vmatpush2.msra.mxu0 %v4745
      %4951 = vmatprep.subr.mxu0 0.0
      %4952 = vmatpush2.msra.mxu0 %v4744
      %4953 = vmatprep.subr.mxu0 0.0
      %4954 = vmatpush2.msra.mxu0 %v4743
      %4955 = vmatprep.subr.mxu0 0.0
      %4956 = vmatpush2.msra.mxu0 %v4742
      %4957 = vmatprep.subr.mxu0 0.0
      %4958 = vmatpush2.msra.mxu0 %v4741
      %4959 = vmatprep.subr.mxu0 0.0
      %4960 = vmatpush2.msra.mxu0 %v4740
      %4961 = vmatprep.subr.mxu0 0.0
      %4962 = vmatpush2.msra.mxu0 %v4739
      %4963 = vmatprep.mubr.f32.mxu0 %v4868
      %4964 = vmatmul.mubr.f32.gmra.mxu0 %v4867
      %v4965 = vpop.f32.mrf.mxu0
      %v4966 = vadd.f32 0.0, %v4965
      %v4967 = vpop.f32.mrf.mxu0
      %4968 = vmatprep.mubr.f32.mxu0 %v4874
      %4969 = vmatmul.mubr.f32.gmra.mxu0 %v4873
      %v4970 = vpop.f32.mrf.mxu0
      %v4971 = vadd.f32 0.0, %v4970
      %v4972 = vpop.f32.mrf.mxu0
      %4973 = vdwg.mxu0
      %4974 = vmatprep.subr.mxu0 0.0
      %4975 = vmatpush1.msra.mxu0 %v4770
      %4976 = vmatprep.subr.mxu0 0.0
      %4977 = vmatpush1.msra.mxu0 %v4769
      %4978 = vmatprep.subr.mxu0 0.0
      %4979 = vmatpush1.msra.mxu0 %v4768
      %4980 = vmatprep.subr.mxu0 0.0
      %4981 = vmatpush1.msra.mxu0 %v4767
      %4982 = vmatprep.subr.mxu0 0.0
      %4983 = vmatpush1.msra.mxu0 %v4766
      %4984 = vmatprep.subr.mxu0 0.0
      %4985 = vmatpush1.msra.mxu0 %v4765
      %4986 = vmatprep.subr.mxu0 0.0
      %4987 = vmatpush1.msra.mxu0 %v4764
      %4988 = vmatprep.subr.mxu0 0.0
      %4989 = vmatpush1.msra.mxu0 %v4763
      %4990 = vmatprep.subr.mxu0 0.0
      %4991 = vmatpush1.msra.mxu0 %v4762
      %4992 = vmatprep.subr.mxu0 0.0
      %4993 = vmatpush1.msra.mxu0 %v4761
      %4994 = vmatprep.subr.mxu0 0.0
      %4995 = vmatpush1.msra.mxu0 %v4760
      %4996 = vmatprep.subr.mxu0 0.0
      %4997 = vmatpush1.msra.mxu0 %v4759
      %4998 = vmatprep.subr.mxu0 0.0
      %4999 = vmatpush1.msra.mxu0 %v4758
      %5000 = vmatprep.subr.mxu0 0.0
      %5001 = vmatpush1.msra.mxu0 %v4757
      %5002 = vmatprep.subr.mxu0 0.0
      %5003 = vmatpush1.msra.mxu0 %v4756
      %5004 = vmatprep.subr.mxu0 0.0
      %5005 = vmatpush1.msra.mxu0 %v4755
      %5006 = vmatprep.subr.mxu0 0.0
      %5007 = vmatpush2.msra.mxu0 %v4786
      %5008 = vmatprep.subr.mxu0 0.0
      %5009 = vmatpush2.msra.mxu0 %v4785
      %5010 = vmatprep.subr.mxu0 0.0
      %5011 = vmatpush2.msra.mxu0 %v4784
      %5012 = vmatprep.subr.mxu0 0.0
      %5013 = vmatpush2.msra.mxu0 %v4783
      %5014 = vmatprep.subr.mxu0 0.0
      %5015 = vmatpush2.msra.mxu0 %v4782
      %5016 = vmatprep.subr.mxu0 0.0
      %5017 = vmatpush2.msra.mxu0 %v4781
      %5018 = vmatprep.subr.mxu0 0.0
      %5019 = vmatpush2.msra.mxu0 %v4780
      %5020 = vmatprep.subr.mxu0 0.0
      %5021 = vmatpush2.msra.mxu0 %v4779
      %5022 = vmatprep.subr.mxu0 0.0
      %5023 = vmatpush2.msra.mxu0 %v4778
      %5024 = vmatprep.subr.mxu0 0.0
      %5025 = vmatpush2.msra.mxu0 %v4777
      %5026 = vmatprep.subr.mxu0 0.0
      %5027 = vmatpush2.msra.mxu0 %v4776
      %5028 = vmatprep.subr.mxu0 0.0
      %5029 = vmatpush2.msra.mxu0 %v4775
      %5030 = vmatprep.subr.mxu0 0.0
      %5031 = vmatpush2.msra.mxu0 %v4774
      %5032 = vmatprep.subr.mxu0 0.0
      %5033 = vmatpush2.msra.mxu0 %v4773
      %5034 = vmatprep.subr.mxu0 0.0
      %5035 = vmatpush2.msra.mxu0 %v4772
      %5036 = vmatprep.subr.mxu0 0.0
      %5037 = vmatpush2.msra.mxu0 %v4771
      %5038 = vmatprep.mubr.f32.mxu0 %v4870
      %5039 = vmatmul.mubr.f32.gmra.mxu0 %v4869
      %v5040 = vpop.f32.mrf.mxu0
      %v5041 = vadd.f32 %v4966, %v5040
      %v5042 = vpop.f32.mrf.mxu0
      %5043 = vmatprep.mubr.f32.mxu0 %v4877
      %5044 = vmatmul.mubr.f32.gmra.mxu0 %v4876
      %v5045 = vpop.f32.mrf.mxu0
      %v5046 = vadd.f32 %v4971, %v5045
      %v5047 = vpop.f32.mrf.mxu0
      %5048 = vdwg.mxu0
      %5049 = vmatprep.subr.mxu0 0.0
      %5050 = vmatpush1.msra.mxu0 %v4802
      %5051 = vmatprep.subr.mxu0 0.0
      %5052 = vmatpush1.msra.mxu0 %v4801
      %5053 = vmatprep.subr.mxu0 0.0
      %5054 = vmatpush1.msra.mxu0 %v4800
      %5055 = vmatprep.subr.mxu0 0.0
      %5056 = vmatpush1.msra.mxu0 %v4799
      %5057 = vmatprep.subr.mxu0 0.0
      %5058 = vmatpush1.msra.mxu0 %v4798
      %5059 = vmatprep.subr.mxu0 0.0
      %5060 = vmatpush1.msra.mxu0 %v4797
      %5061 = vmatprep.subr.mxu0 0.0
      %5062 = vmatpush1.msra.mxu0 %v4796
      %5063 = vmatprep.subr.mxu0 0.0
      %5064 = vmatpush1.msra.mxu0 %v4795
      %5065 = vmatprep.subr.mxu0 0.0
      %5066 = vmatpush1.msra.mxu0 %v4794
      %5067 = vmatprep.subr.mxu0 0.0
      %5068 = vmatpush1.msra.mxu0 %v4793
      %5069 = vmatprep.subr.mxu0 0.0
      %5070 = vmatpush1.msra.mxu0 %v4792
      %5071 = vmatprep.subr.mxu0 0.0
      %5072 = vmatpush1.msra.mxu0 %v4791
      %5073 = vmatprep.subr.mxu0 0.0
      %5074 = vmatpush1.msra.mxu0 %v4790
      %5075 = vmatprep.subr.mxu0 0.0
      %5076 = vmatpush1.msra.mxu0 %v4789
      %5077 = vmatprep.subr.mxu0 0.0
      %5078 = vmatpush1.msra.mxu0 %v4788
      %5079 = vmatprep.subr.mxu0 0.0
      %5080 = vmatpush1.msra.mxu0 %v4787
      %5081 = vmatprep.subr.mxu0 0.0
      %5082 = vmatpush2.msra.mxu0 %v4818
      %5083 = vmatprep.subr.mxu0 0.0
      %5084 = vmatpush2.msra.mxu0 %v4817
      %5085 = vmatprep.subr.mxu0 0.0
      %5086 = vmatpush2.msra.mxu0 %v4816
      %5087 = vmatprep.subr.mxu0 0.0
      %5088 = vmatpush2.msra.mxu0 %v4815
      %5089 = vmatprep.subr.mxu0 0.0
      %5090 = vmatpush2.msra.mxu0 %v4814
      %5091 = vmatprep.subr.mxu0 0.0
      %5092 = vmatpush2.msra.mxu0 %v4813
      %5093 = vmatprep.subr.mxu0 0.0
      %5094 = vmatpush2.msra.mxu0 %v4812
      %5095 = vmatprep.subr.mxu0 0.0
      %5096 = vmatpush2.msra.mxu0 %v4811
      %5097 = vmatprep.subr.mxu0 0.0
      %5098 = vmatpush2.msra.mxu0 %v4810
      %5099 = vmatprep.subr.mxu0 0.0
      %5100 = vmatpush2.msra.mxu0 %v4809
      %5101 = vmatprep.subr.mxu0 0.0
      %5102 = vmatpush2.msra.mxu0 %v4808
      %5103 = vmatprep.subr.mxu0 0.0
      %5104 = vmatpush2.msra.mxu0 %v4807
      %5105 = vmatprep.subr.mxu0 0.0
      %5106 = vmatpush2.msra.mxu0 %v4806
      %5107 = vmatprep.subr.mxu0 0.0
      %5108 = vmatpush2.msra.mxu0 %v4805
      %5109 = vmatprep.subr.mxu0 0.0
      %5110 = vmatpush2.msra.mxu0 %v4804
      %5111 = vmatprep.subr.mxu0 0.0
      %5112 = vmatpush2.msra.mxu0 %v4803
      %5113 = vmatprep.mubr.f32.mxu0 %v4872
      %5114 = vmatmul.mubr.f32.gmra.mxu0 %v4871
      %v5115 = vpop.f32.mrf.mxu0
      %v5116 = vadd.f32 %v5041, %v5115
      %v5117 = vpop.f32.mrf.mxu0
      %5118 = vmatprep.mubr.f32.mxu0 %v4879
      %5119 = vmatmul.mubr.f32.gmra.mxu0 %v4878
      %v5120 = vpop.f32.mrf.mxu0
      %v5121 = vadd.f32 %v5046, %v5120
      %v5122 = vpop.f32.mrf.mxu0
      %5123 = vdwg.mxu0
      %5124 = vmatprep.subr.mxu0 0.0
      %5125 = vmatpush1.msra.mxu0 %v4834
      %5126 = vmatprep.subr.mxu0 0.0
      %5127 = vmatpush1.msra.mxu0 %v4833
      %5128 = vmatprep.subr.mxu0 0.0
      %5129 = vmatpush1.msra.mxu0 %v4832
      %5130 = vmatprep.subr.mxu0 0.0
      %5131 = vmatpush1.msra.mxu0 %v4831
      %5132 = vmatprep.subr.mxu0 0.0
      %5133 = vmatpush1.msra.mxu0 %v4830
      %5134 = vmatprep.subr.mxu0 0.0
      %5135 = vmatpush1.msra.mxu0 %v4829
      %5136 = vmatprep.subr.mxu0 0.0
      %5137 = vmatpush1.msra.mxu0 %v4828
      %5138 = vmatprep.subr.mxu0 0.0
      %5139 = vmatpush1.msra.mxu0 %v4827
      %5140 = vmatprep.subr.mxu0 0.0
      %5141 = vmatpush1.msra.mxu0 %v4826
      %5142 = vmatprep.subr.mxu0 0.0
      %5143 = vmatpush1.msra.mxu0 %v4825
      %5144 = vmatprep.subr.mxu0 0.0
      %5145 = vmatpush1.msra.mxu0 %v4824
      %5146 = vmatprep.subr.mxu0 0.0
      %5147 = vmatpush1.msra.mxu0 %v4823
      %5148 = vmatprep.subr.mxu0 0.0
      %5149 = vmatpush1.msra.mxu0 %v4822
      %5150 = vmatprep.subr.mxu0 0.0
      %5151 = vmatpush1.msra.mxu0 %v4821
      %5152 = vmatprep.subr.mxu0 0.0
      %5153 = vmatpush1.msra.mxu0 %v4820
      %5154 = vmatprep.subr.mxu0 0.0
      %5155 = vmatpush1.msra.mxu0 %v4819
      %5156 = vmatprep.subr.mxu0 0.0
      %5157 = vmatpush2.msra.mxu0 %v4850
      %5158 = vmatprep.subr.mxu0 0.0
      %5159 = vmatpush2.msra.mxu0 %v4849
      %5160 = vmatprep.subr.mxu0 0.0
      %5161 = vmatpush2.msra.mxu0 %v4848
      %5162 = vmatprep.subr.mxu0 0.0
      %5163 = vmatpush2.msra.mxu0 %v4847
      %5164 = vmatprep.subr.mxu0 0.0
      %5165 = vmatpush2.msra.mxu0 %v4846
      %5166 = vmatprep.subr.mxu0 0.0
      %5167 = vmatpush2.msra.mxu0 %v4845
      %5168 = vmatprep.subr.mxu0 0.0
      %5169 = vmatpush2.msra.mxu0 %v4844
      %5170 = vmatprep.subr.mxu0 0.0
      %5171 = vmatpush2.msra.mxu0 %v4843
      %5172 = vmatprep.subr.mxu0 0.0
      %5173 = vmatpush2.msra.mxu0 %v4842
      %5174 = vmatprep.subr.mxu0 0.0
      %5175 = vmatpush2.msra.mxu0 %v4841
      %5176 = vmatprep.subr.mxu0 0.0
      %5177 = vmatpush2.msra.mxu0 %v4840
      %5178 = vmatprep.subr.mxu0 0.0
      %5179 = vmatpush2.msra.mxu0 %v4839
      %5180 = vmatprep.subr.mxu0 0.0
      %5181 = vmatpush2.msra.mxu0 %v4838
      %5182 = vmatprep.subr.mxu0 0.0
      %5183 = vmatpush2.msra.mxu0 %v4837
      %5184 = vmatprep.subr.mxu0 0.0
      %5185 = vmatpush2.msra.mxu0 %v4836
      %5186 = vmatprep.subr.mxu0 0.0
      %5187 = vmatpush2.msra.mxu0 %v4835
      %5188 = vmatprep.mubr.f32.mxu0 %v4874
      %5189 = vmatmul.mubr.f32.gmra.mxu0 %v4873
      %v5190 = vpop.f32.mrf.mxu0
      %v5191 = vadd.f32 %v5116, %v5190
      %v5192 = vpop.f32.mrf.mxu0
      %5193 = vmatprep.mubr.f32.mxu0 %v4881
      %5194 = vmatmul.mubr.f32.gmra.mxu0 %v4880
      %v5195 = vpop.f32.mrf.mxu0
      %v5196 = vadd.f32 %v5121, %v5195
      %v5197 = vpop.f32.mrf.mxu0
      %5198 = vdwg.mxu0
      %5199 = vmatprep.subr.mxu0 0.0
      %5200 = vmatpush1.msra.mxu0 %v4866
      %5201 = vmatprep.subr.mxu0 0.0
      %5202 = vmatpush1.msra.mxu0 %v4865
      %5203 = vmatprep.subr.mxu0 0.0
      %5204 = vmatpush1.msra.mxu0 %v4864
      %5205 = vmatprep.subr.mxu0 0.0
      %5206 = vmatpush1.msra.mxu0 %v4863
      %5207 = vmatprep.subr.mxu0 0.0
      %5208 = vmatpush1.msra.mxu0 %v4862
      %5209 = vmatprep.subr.mxu0 0.0
      %5210 = vmatpush1.msra.mxu0 %v4861
      %5211 = vmatprep.subr.mxu0 0.0
      %5212 = vmatpush1.msra.mxu0 %v4860
      %5213 = vmatprep.subr.mxu0 0.0
      %5214 = vmatpush1.msra.mxu0 %v4859
      %5215 = vmatprep.subr.mxu0 0.0
      %5216 = vmatpush1.msra.mxu0 %v4858
      %5217 = vmatprep.subr.mxu0 0.0
      %5218 = vmatpush1.msra.mxu0 %v4857
      %5219 = vmatprep.subr.mxu0 0.0
      %5220 = vmatpush1.msra.mxu0 %v4856
      %5221 = vmatprep.subr.mxu0 0.0
      %5222 = vmatpush1.msra.mxu0 %v4855
      %5223 = vmatprep.subr.mxu0 0.0
      %5224 = vmatpush1.msra.mxu0 %v4854
      %5225 = vmatprep.subr.mxu0 0.0
      %5226 = vmatpush1.msra.mxu0 %v4853
      %5227 = vmatprep.subr.mxu0 0.0
      %5228 = vmatpush1.msra.mxu0 %v4852
      %5229 = vmatprep.subr.mxu0 0.0
      %5230 = vmatpush1.msra.mxu0 %v4851
      %5231 = vmatprep.subr.mxu0 0.0
      %5232 = vmatpush2.msra.mxu0 0.0
      %5233 = vmatprep.subr.mxu0 0.0
      %5234 = vmatpush2.msra.mxu0 0.0
      %5235 = vmatprep.subr.mxu0 0.0
      %5236 = vmatpush2.msra.mxu0 0.0
      %5237 = vmatprep.subr.mxu0 0.0
      %5238 = vmatpush2.msra.mxu0 0.0
      %5239 = vmatprep.subr.mxu0 0.0
      %5240 = vmatpush2.msra.mxu0 0.0
      %5241 = vmatprep.subr.mxu0 0.0
      %5242 = vmatpush2.msra.mxu0 0.0
      %5243 = vmatprep.subr.mxu0 0.0
      %5244 = vmatpush2.msra.mxu0 0.0
      %5245 = vmatprep.subr.mxu0 0.0
      %5246 = vmatpush2.msra.mxu0 0.0
      %5247 = vmatprep.subr.mxu0 0.0
      %5248 = vmatpush2.msra.mxu0 0.0
      %5249 = vmatprep.subr.mxu0 0.0
      %5250 = vmatpush2.msra.mxu0 0.0
      %5251 = vmatprep.subr.mxu0 0.0
      %5252 = vmatpush2.msra.mxu0 0.0
      %5253 = vmatprep.subr.mxu0 0.0
      %5254 = vmatpush2.msra.mxu0 0.0
      %5255 = vmatprep.subr.mxu0 0.0
      %5256 = vmatpush2.msra.mxu0 0.0
      %5257 = vmatprep.subr.mxu0 0.0
      %5258 = vmatpush2.msra.mxu0 0.0
      %5259 = vmatprep.subr.mxu0 0.0
      %5260 = vmatpush2.msra.mxu0 0.0
      %5261 = vmatprep.subr.mxu0 0.0
      %5262 = vmatpush2.msra.mxu0 0.0
      %5263 = vmatprep.mubr.f32.mxu0 0.0
      %5264 = vmatmul.mubr.f32.gmra.mxu0 %v4875
      %v5265 = vpop.f32.mrf.mxu0
      %v5266 = vadd.f32 %v5191, %v5265
      %v5267 = vpop.f32.mrf.mxu0
      %5268 = vmatprep.mubr.f32.mxu0 0.0
      %5269 = vmatmul.mubr.f32.gmra.mxu0 %v4882
      %v5270 = vpop.f32.mrf.mxu0
      %v5271 = vadd.f32 %v5196, %v5270
      %v5272 = vpop.f32.mrf.mxu0
      %5273 = vdwg.mxu0
      %v5274 = vld [vmem:[%s10] sm:$0x1]
      %v5276 = vlaneseq
      %v5277 = vshrl.u32 %v5276, 7
      %v5278 = vsub.s32 0, %v5277
      %v5279 = vrot.slane %v5274, %v5278
      %v5281 = vmul.f32 %v5266, %v5279
      %v5282 = vmul.f32 %v5271, %v5279
      %v5283 = vld [vmem:[%s11] sm:$0x1]
      %v5285 = vlaneseq
      %v5286 = vshrl.u32 %v5285, 7
      %v5287 = vsub.s32 0, %v5286
      %v5288 = vrot.slane %v5283, %v5287
      %v5290 = vadd.f32 %v5281, %v5288
      %v5291 = vadd.f32 %v5282, %v5288
      %v5292 = vmax.f32 %v5290, 0.0
      %v5293 = vmax.f32 %v5291, 0.0
      %v5294 = vadd.f32 %v5292, %v5293
      %v5295 = vrot.slane %v5294, 4
      %v5296 = vadd.f32 %v5294, %v5295
      %v5297 = vrot.slane %v5296, 2
      %v5298 = vadd.f32 %v5296, %v5297
      %v5299 = vrot.slane %v5298, 1
      %v5300 = vadd.f32 %v5298, %v5299
      %v5301 = vrcp.pop 16.0
      %v5302 = vmul.f32 %v5300, %v5301
      %v5303 = vld [vmem:[%s12] sm:$0xff]
      %v5304 = vld [vmem:[%s12 + $0x8] sm:$0xff]
      %v5305 = vld [vmem:[%s12 + $0x10] sm:$0xff]
      %v5306 = vld [vmem:[%s12 + $0x18] sm:$0xff]
      %v5307 = vld [vmem:[%s12 + $0x20] sm:$0xff]
      %v5308 = vld [vmem:[%s12 + $0x28] sm:$0xff]
      %v5309 = vld [vmem:[%s12 + $0x30] sm:$0xff]
      %v5310 = vld [vmem:[%s12 + $0x38] sm:$0xff]
      %v5311 = vld [vmem:[%s12 + $0x40] sm:$0xff]
      %v5312 = vld [vmem:[%s12 + $0x48] sm:$0xff]
      %v5313 = vld [vmem:[%s12 + $0x50] sm:$0xff]
      %v5314 = vld [vmem:[%s12 + $0x58] sm:$0xff]
      %v5315 = vld [vmem:[%s12 + $0x60] sm:$0xff]
      %v5316 = vld [vmem:[%s12 + $0x68] sm:$0xff]
      %v5317 = vld [vmem:[%s12 + $0x70] sm:$0xff]
      %v5318 = vld [vmem:[%s12 + $0x78] sm:$0xff]
      %v5319 = vld [vmem:[%s12 + $0x80] sm:$0xff]
      %v5320 = vld [vmem:[%s12 + $0x88] sm:$0xff]
      %v5321 = vld [vmem:[%s12 + $0x90] sm:$0xff]
      %v5322 = vld [vmem:[%s12 + $0x98] sm:$0xff]
      %v5323 = vld [vmem:[%s12 + $0xa0] sm:$0xff]
      %v5324 = vld [vmem:[%s12 + $0xa8] sm:$0xff]
      %v5325 = vld [vmem:[%s12 + $0xb0] sm:$0xff]
      %v5326 = vld [vmem:[%s12 + $0xb8] sm:$0xff]
      %v5327 = vld [vmem:[%s12 + $0xc0] sm:$0xff]
      %v5328 = vld [vmem:[%s12 + $0xc8] sm:$0xff]
      %v5329 = vld [vmem:[%s12 + $0xd0] sm:$0xff]
      %v5330 = vld [vmem:[%s12 + $0xd8] sm:$0xff]
      %v5331 = vld [vmem:[%s12 + $0xe0] sm:$0xff]
      %v5332 = vld [vmem:[%s12 + $0xe8] sm:$0xff]
      %v5333 = vld [vmem:[%s12 + $0xf0] sm:$0xff]
      %v5334 = vld [vmem:[%s12 + $0xf8] sm:$0xff]
      %v5335 = vld [vmem:[%s13] sm:$0x3]
      %v5337 = vlaneseq
      %v5338 = vshrl.u32 %v5337, 7
      %v5339 = vsub.s32 0, %v5338
      %v5340 = vrot.slane %v5335, %v5339
      %v5341 = vlaneseq
      %v5342 = vshrl.u32 %v5341, 7
      %v5343 = vsub.s32 1, %v5342
      %v5344 = vrot.slane %v5335, %v5343
      %5347 = vmatprep.subr.mxu0 %v5334
      %5348 = vmatpush1.msra.mxu0 %v5333
      %5349 = vmatprep.subr.mxu0 %v5332
      %5350 = vmatpush1.msra.mxu0 %v5331
      %5351 = vmatprep.subr.mxu0 %v5330
      %5352 = vmatpush1.msra.mxu0 %v5329
      %5353 = vmatprep.subr.mxu0 %v5328
      %5354 = vmatpush1.msra.mxu0 %v5327
      %5355 = vmatprep.subr.mxu0 %v5326
      %5356 = vmatpush1.msra.mxu0 %v5325
      %5357 = vmatprep.subr.mxu0 %v5324
      %5358 = vmatpush1.msra.mxu0 %v5323
      %5359 = vmatprep.subr.mxu0 %v5322
      %5360 = vmatpush1.msra.mxu0 %v5321
      %5361 = vmatprep.subr.mxu0 %v5320
      %5362 = vmatpush1.msra.mxu0 %v5319
      %5363 = vmatprep.subr.mxu0 %v5318
      %5364 = vmatpush1.msra.mxu0 %v5317
      %5365 = vmatprep.subr.mxu0 %v5316
      %5366 = vmatpush1.msra.mxu0 %v5315
      %5367 = vmatprep.subr.mxu0 %v5314
      %5368 = vmatpush1.msra.mxu0 %v5313
      %5369 = vmatprep.subr.mxu0 %v5312
      %5370 = vmatpush1.msra.mxu0 %v5311
      %5371 = vmatprep.subr.mxu0 %v5310
      %5372 = vmatpush1.msra.mxu0 %v5309
      %5373 = vmatprep.subr.mxu0 %v5308
      %5374 = vmatpush1.msra.mxu0 %v5307
      %5375 = vmatprep.subr.mxu0 %v5306
      %5376 = vmatpush1.msra.mxu0 %v5305
      %5377 = vmatprep.subr.mxu0 %v5304
      %5378 = vmatpush1.msra.mxu0 %v5303
      %5379 = vmatprep.subr.mxu0 0.0
      %5380 = vmatpush2.msra.mxu0 0.0
      %5381 = vmatprep.subr.mxu0 0.0
      %5382 = vmatpush2.msra.mxu0 0.0
      %5383 = vmatprep.subr.mxu0 0.0
      %5384 = vmatpush2.msra.mxu0 0.0
      %5385 = vmatprep.subr.mxu0 0.0
      %5386 = vmatpush2.msra.mxu0 0.0
      %5387 = vmatprep.subr.mxu0 0.0
      %5388 = vmatpush2.msra.mxu0 0.0
      %5389 = vmatprep.subr.mxu0 0.0
      %5390 = vmatpush2.msra.mxu0 0.0
      %5391 = vmatprep.subr.mxu0 0.0
      %5392 = vmatpush2.msra.mxu0 0.0
      %5393 = vmatprep.subr.mxu0 0.0
      %5394 = vmatpush2.msra.mxu0 0.0
      %5395 = vmatprep.subr.mxu0 0.0
      %5396 = vmatpush2.msra.mxu0 0.0
      %5397 = vmatprep.subr.mxu0 0.0
      %5398 = vmatpush2.msra.mxu0 0.0
      %5399 = vmatprep.subr.mxu0 0.0
      %5400 = vmatpush2.msra.mxu0 0.0
      %5401 = vmatprep.subr.mxu0 0.0
      %5402 = vmatpush2.msra.mxu0 0.0
      %5403 = vmatprep.subr.mxu0 0.0
      %5404 = vmatpush2.msra.mxu0 0.0
      %5405 = vmatprep.subr.mxu0 0.0
      %5406 = vmatpush2.msra.mxu0 0.0
      %5407 = vmatprep.subr.mxu0 0.0
      %5408 = vmatpush2.msra.mxu0 0.0
      %5409 = vmatprep.subr.mxu0 0.0
      %5410 = vmatpush2.msra.mxu0 0.0
      %5411 = vmatprep.mubr.f32.mxu0 0.0
      %5412 = vmatmul.mubr.f32.gmra.mxu0 %v5302
      %v5413 = vpop.f32.mrf.mxu0
      %v5414 = vadd.f32 %v5340, %v5413
      %v5415 = vpop.f32.mrf.mxu0
      %v5416 = vadd.f32 %v5344, %v5415
      %5417 = vdwg.mxu0
      %v5420 = vcombine.low %v5414, %v5416
      %v5422 = vunpack.c.l.s4 1966171168
      %v5423 = vunpack.c.0.s8 %v5422
      %v5424 = vlaneseq
      %v5425 = vshrl.u32 %v5424, 7
      %v5426 = vsub.s32 %v5423, %v5425
      %v5427 = vrot.slane %v5420, %v5426
      %v5429 = vunpack.c.l.s4 1966171168
      %v5430 = vunpack.c.0.s8 %v5429
      %v5431 = vlaneseq
      %v5432 = vshrl.u32 %v5431, 7
      %v5433 = vsub.s32 %v5430, %v5432
      %v5434 = vrot.slane %v5427, %v5433
      %v5436 = vlaneseq
      %vm5437 = vcmp.ge.s32.totalorder %v5436, 0
      %vm5438 = vcmp.lt.s32.totalorder %v5436, 256
      %vm5439 = vmand %vm5437, %vm5438
      %5440 = vst.msk [vmem:[%s465] sm:$0x3] %vm5439, %v5434
      %p5441 = scmp.lt.s32.totalorder %s25, 1
      %s5442 = scalar_select %p5441, %s25, 1
      %s5443 = smul.addr %s5442, 2
      %s5444 = scalar_lea.vmem %s14, %s5443
      // Predicated region
      $region77: #{conv_backbone_forward.1} parent=75 // pred_check
        %p5445 = pneg %p342
      $region78: #{conv_backbone_forward.1} parent=75 // pred_check_branch
        %5447 = sbr.rel (%p5445) target = $region80
      $region79: #{conv_backbone_forward.1} parent=75 // pred_region
        _
      $region80: #{conv_backbone_forward.1} parent=75 // pred_fallthru
        _
    $region76: #{conv_backbone_forward.1} parent=5 // pred_fallthru
      _
    %p5448 = scmp.le.s32.totalorder 2, %s20
    // Predicated region
    $region81: #{conv_backbone_forward.1} parent=5 // pred_check
      %p5449 = pneg %p5448
    $region82: #{conv_backbone_forward.1} parent=5 // pred_check_branch
      %5451 = sbr.rel (%p5449) target = $region84
    $region83: #{conv_backbone_forward.1} parent=5 // pred_region
      %s5452 = ssub.s32 %s20, 2
      // Predicated region
      $region85: #{conv_backbone_forward.1} parent=83 // pred_check
        %p5453 = pneg %p348
      $region86: #{conv_backbone_forward.1} parent=83 // pred_check_branch
        %5455 = sbr.rel (%p5453) target = $region88
      $region87: #{conv_backbone_forward.1} parent=83 // pred_region
        %p5456 = scmp.lt.s32.totalorder %s26, 1
        %s5457 = scalar_select %p5456, %s26, 1
        %s5458 = smul.addr %s5457, 2
        %s5459 = scalar_lea.vmem %s14, %s5458
      $region88: #{conv_backbone_forward.1} parent=83 // pred_fallthru
        _
    $region84: #{conv_backbone_forward.1} parent=5 // pred_fallthru
      _
  $region6: #{conv_backbone_forward.1} parent=0 // loop_footer
    %s24 = sadd.s32 1, %s20
  $region7: #{conv_backbone_forward.1} parent=0 // loop_footer_branch
    %19 = sbr.rel target = $region3
  $region8: #{conv_backbone_forward.1} parent=0 // loop_exit
    _

</llo_original>
